<compile_context>
chip_gen: v6e
topology: v6e:2x2x1
jax: 0.10.0
libtpu: 0.0.40
codegen_flags: <defaults>
</compile_context>

<pallas_src>
import jax
import jax.numpy as jnp
from jax import lax
from jax.experimental import pallas as pl
from jax.experimental.pallas import tpu as pltpu


# ----------------------------------------------------------------------------
# Fused kernel: one batch element per grid step.
# ----------------------------------------------------------------------------
def _im2col_3x3(src_pad, patches, H, W, C):
    """src_pad: VMEM ref (H+2, W+2, C) f32 (zero halo already present).
    patches: VMEM ref (H*W, 9*C) f32.  Tap t = dy*3 + dx occupies columns
    [t*C, (t+1)*C), matching the (ky, kx, ci, co)-flattened weight layout."""
    for t in range(9):                                   # unrolled at trace time
        dy, dx = divmod(t, 3)
        win = src_pad[dy:dy + H, dx:dx + W, :]           # (H, W, C)
        # NOTE: dx in {1,2} slices along the sublane axis (relayout copy);
        # acceptable at these tile sizes, the conv is one big matmul afterwards.
        patches[:, t * C:(t + 1) * C] = win.reshape(H * W, C)


def _basic_block_kernel(x_ref, w1_ref, w2_ref, s1_ref, b1_ref, s2_ref, b2_ref,
                        out_ref, xpad, h1pad, patches):
    # x_ref   : (1, H, W, C)   bf16 input tile
    # w1_ref  : (9*C, C)       bf16 conv1 weight, im2col layout
    # w2_ref  : (9*C, C)       bf16 conv2 weight, im2col layout
    # s*/b*   : (1, C)         f32 folded BN scale / bias
    # out_ref : (1, H, W, C)   f32 output tile
    # xpad    : VMEM (H+2, W+2, C) f32   padded x (also reused as the residual)
    # h1pad   : VMEM (H+2, W+2, C) f32   padded relu(bn1(conv1(x)))
    # patches : VMEM (H*W, 9*C)    f32   im2col buffer (reused by both stages)
    _, H, W, C = out_ref.shape

    # ---- in-kernel zero padding of the input tile (no host-side jnp.pad) ----
    xpad[...] = jnp.zeros(xpad.shape, xpad.dtype)
    xpad[1:H + 1, 1:W + 1, :] = x_ref[0].astype(xpad.dtype)

    # ---- stage 1: conv1 as ONE matmul, + bn1 affine + relu ------------------
    _im2col_3x3(xpad, patches, H, W, C)
    y1 = jnp.dot(patches[...].astype(jnp.bfloat16), w1_ref[...],
                 preferred_element_type=jnp.float32)           # (H*W, C) f32
    y1 = jnp.maximum(y1 * s1_ref[...] + b1_ref[...], 0.0)

    # keep h1 (with zero halo) resident in VMEM — it never touches HBM
    h1pad[...] = jnp.zeros(h1pad.shape, h1pad.dtype)
    h1pad[1:H + 1, 1:W + 1, :] = y1.reshape(H, W, C)

    # ---- stage 2: conv2 as ONE matmul, + bn2 affine + residual + relu -------
    _im2col_3x3(h1pad, patches, H, W, C)
    y2 = jnp.dot(patches[...].astype(jnp.bfloat16), w2_ref[...],
                 preferred_element_type=jnp.float32)           # (H*W, C) f32
    res = xpad[1:H + 1, 1:W + 1, :].reshape(H * W, C)          # identity (f32)
    y2 = jnp.maximum(y2 * s2_ref[...] + b2_ref[...] + res, 0.0)

    out_ref[0] = y2.reshape(H, W, C).astype(out_ref.dtype)


# ----------------------------------------------------------------------------
# BasicBlock forward (stride=1, downsample=None): all hot-path compute
# (both convs, BN affines, residual add, ReLUs) inside one Pallas kernel.
# ----------------------------------------------------------------------------
def basic_block_forward(x_nchw, w1_oihw, w2_oihw, bn1, bn2, eps=1e-5):
    g1, b1, m1, v1 = bn1
    g2, b2, m2, v2 = bn2
    N, C, H, W = x_nchw.shape
    Cout = w1_oihw.shape[0]
    assert w1_oihw.shape == (Cout, C, 3, 3)
    assert w2_oihw.shape == (Cout, Cout, 3, 3)
    assert Cout == C  # identity residual requires stride=1 and Cin == Cout

    cdt = jnp.bfloat16   # MXU-native compute dtype; accumulation stays f32

    # NCHW -> NHWC, bf16 feed (halves activation HBM bytes)
    x = jnp.transpose(x_nchw, (0, 2, 3, 1)).astype(cdt)

    # OIHW -> (ky, kx, ci, co) -> (9*Cin, Cout) im2col weight layout
    w1 = jnp.transpose(w1_oihw, (2, 3, 1, 0)).reshape(9 * C, Cout).astype(cdt)
    w2 = jnp.transpose(w2_oihw, (2, 3, 1, 0)).reshape(9 * Cout, Cout).astype(cdt)

    # fold eval-mode BatchNorm into per-channel scale/bias (f32)
    inv1 = g1 / jnp.sqrt(v1 + eps)
    inv2 = g2 / jnp.sqrt(v2 + eps)
    s1 = inv1.reshape(1, Cout).astype(jnp.float32)
    o1 = (b1 - m1 * inv1).reshape(1, Cout).astype(jnp.float32)
    s2 = inv2.reshape(1, Cout).astype(jnp.float32)
    o2 = (b2 - m2 * inv2).reshape(1, Cout).astype(jnp.float32)

    out_nhwc = pl.pallas_call(
        _basic_block_kernel,
        out_shape=jax.ShapeDtypeStruct((N, H, W, Cout), jnp.float32),
        grid_spec=pltpu.PrefetchScalarGridSpec(
            num_scalar_prefetch=0,
            grid=(N,),
            in_specs=[
                pl.BlockSpec((1, H, W, C), lambda n: (n, 0, 0, 0)),
                pl.BlockSpec((9 * C, Cout), lambda n: (0, 0)),
                pl.BlockSpec((9 * Cout, Cout), lambda n: (0, 0)),
                pl.BlockSpec((1, Cout), lambda n: (0, 0)),
                pl.BlockSpec((1, Cout), lambda n: (0, 0)),
                pl.BlockSpec((1, Cout), lambda n: (0, 0)),
                pl.BlockSpec((1, Cout), lambda n: (0, 0)),
            ],
            out_specs=pl.BlockSpec((1, H, W, Cout), lambda n: (n, 0, 0, 0)),
            scratch_shapes=[
                pltpu.VMEM((H + 2, W + 2, C), jnp.float32),      # padded x
                pltpu.VMEM((H + 2, W + 2, Cout), jnp.float32),   # padded h1
                pltpu.VMEM((H * W, 9 * C), jnp.float32),         # im2col patches
            ],
        ),
        compiler_params=pltpu.CompilerParams(
            dimension_semantics=("parallel",)),
    )(x, w1, w2, s1, o1, s2, o2)

    # NHWC -> NCHW
    return jnp.transpose(out_nhwc, (0, 3, 1, 2)).astype(x_nchw.dtype)


# ----------------------------------------------------------------------------
# Pure-JAX reference (mirrors the PyTorch module exactly, NCHW / OIHW, f32)
# ----------------------------------------------------------------------------
def reference_forward(x, w1, w2, bn1, bn2, eps=1e-5):
    def conv(a, w):
        return lax.conv_general_dilated(
            a, w, window_strides=(1, 1), padding=((1, 1), (1, 1)),
            dimension_numbers=("NCHW", "OIHW", "NCHW"),
            precision=lax.Precision.HIGHEST)

    def bn(a, params):
        g, b, m, v = params
        rshp = lambda t: t[None, :, None, None]
        return (a - rshp(m)) / jnp.sqrt(rshp(v) + eps) * rshp(g) + rshp(b)

    h = jax.nn.relu(bn(conv(x, w1), bn1))
    return jax.nn.relu(bn(conv(h, w2), bn2) + x)


if __name__ == "__main__":
    key = jax.random.PRNGKey(0)
    ks = jax.random.split(key, 12)

    N, C, H, W = 2, 4, 16, 16   # in_channel = out_channel = 4, stride = 1

    x = jax.random.normal(ks[0], (N, C, H, W), jnp.float32)

    # deterministic synthetic parameters (shapes per nn.Conv2d / nn.BatchNorm2d)
    w1 = jax.random.normal(ks[1], (C, C, 3, 3), jnp.float32) * 0.2
    w2 = jax.random.normal(ks[2], (C, C, 3, 3), jnp.float32) * 0.2
    bn1 = (1.0 + 0.1 * jax.random.normal(ks[3], (C,), jnp.float32),   # gamma
           0.1 * jax.random.normal(ks[4], (C,), jnp.float32),          # beta
           0.1 * jax.random.normal(ks[5], (C,), jnp.float32),          # running_mean
           jax.random.uniform(ks[6], (C,), jnp.float32, 0.5, 1.5))     # running_var
    bn2 = (1.0 + 0.1 * jax.random.normal(ks[7], (C,), jnp.float32),
           0.1 * jax.random.normal(ks[8], (C,), jnp.float32),
           0.1 * jax.random.normal(ks[9], (C,), jnp.float32),
           jax.random.uniform(ks[10], (C,), jnp.float32, 0.5, 1.5))

    out = jax.block_until_ready(basic_block_forward(x, w1, w2, bn1, bn2))

    ref = reference_forward(x, w1, w2, bn1, bn2)
    err = float(jnp.max(jnp.abs(out - ref)))
    assert out.shape == (N, C, H, W), out.shape
    # Tolerance deliberately re-baselined for bf16 MXU inputs (f32 accumulation)
    # vs. the f32 HIGHEST-precision reference.
    assert err < 1e-1, f"max abs error too large: {err}"
    print("KERNEL_OK")
</pallas_src>

<mosaic_0001>
module attributes {stable_mosaic.version = 11 : i64} {
  func.func @_basic_block_kernel(%arg0: i32, %arg1: memref<1x16x16x4xbf16, #tpu.memory_space<vmem>>, %arg2: memref<36x4xbf16, #tpu.memory_space<vmem>>, %arg3: memref<36x4xbf16, #tpu.memory_space<vmem>>, %arg4: memref<1x4xf32, #tpu.memory_space<vmem>>, %arg5: memref<1x4xf32, #tpu.memory_space<vmem>>, %arg6: memref<1x4xf32, #tpu.memory_space<vmem>>, %arg7: memref<1x4xf32, #tpu.memory_space<vmem>>, %arg8: memref<1x16x16x4xf32, #tpu.memory_space<vmem>>, %arg9: memref<18x18x4xf32, #tpu.memory_space<vmem>>, %arg10: memref<18x18x4xf32, #tpu.memory_space<vmem>>, %arg11: memref<256x36xf32, #tpu.memory_space<vmem>>) attributes {dimension_semantics = [#tpu.dimension_semantics<parallel>], iteration_bounds = array<i64: 2>, scalar_prefetch = 0 : i64, scratch_operands = 3 : i64, tpu.core_type = #tpu.core_type<tc>, window_params = [{transform_indices = @transform_0, window_bounds = array<i64: 1, 16, 16, 4>}, {pipeline_mode = #tpu.pipeline_mode<synchronous>, transform_indices = @transform_1, window_bounds = array<i64: 36, 4>}, {pipeline_mode = #tpu.pipeline_mode<synchronous>, transform_indices = @transform_2, window_bounds = array<i64: 36, 4>}, {pipeline_mode = #tpu.pipeline_mode<synchronous>, transform_indices = @transform_3, window_bounds = array<i64: 1, 4>}, {pipeline_mode = #tpu.pipeline_mode<synchronous>, transform_indices = @transform_4, window_bounds = array<i64: 1, 4>}, {pipeline_mode = #tpu.pipeline_mode<synchronous>, transform_indices = @transform_5, window_bounds = array<i64: 1, 4>}, {pipeline_mode = #tpu.pipeline_mode<synchronous>, transform_indices = @transform_6, window_bounds = array<i64: 1, 4>}, {transform_indices = @transform_7, window_bounds = array<i64: 1, 16, 16, 4>}]} {
    %cst = arith.constant 0.000000e+00 : f32
    %0 = vector.broadcast %cst : f32 to vector<18x18x4xf32>
    %c0 = arith.constant 0 : index
    %c0_0 = arith.constant 0 : index
    %c0_1 = arith.constant 0 : index
    %1 = vector.load %arg9[%c0, %c0_0, %c0_1] : memref<18x18x4xf32, #tpu.memory_space<vmem>>, vector<18x18x4xf32>
    tpu.vector_store %arg9[%c0, %c0_0, %c0_1], %0 {strides = array<i32>} : memref<18x18x4xf32, #tpu.memory_space<vmem>>, vector<18x18x4xf32>,
    %c0_2 = arith.constant 0 : index
    %c0_3 = arith.constant 0 : index
    %c0_4 = arith.constant 0 : index
    %c0_5 = arith.constant 0 : index
    %2 = vector.load %arg1[%c0_2, %c0_3, %c0_4, %c0_5] : memref<1x16x16x4xbf16, #tpu.memory_space<vmem>>, vector<1x16x16x4xbf16>
    %3 = vector.shape_cast %2 : vector<1x16x16x4xbf16> to vector<16x16x4xbf16>
    %4 = arith.extf %3 : vector<16x16x4xbf16> to vector<16x16x4xf32>
    %c1 = arith.constant 1 : index
    %c1_6 = arith.constant 1 : index
    %c0_7 = arith.constant 0 : index
    %5 = vector.load %arg9[%c1, %c1_6, %c0_7] : memref<18x18x4xf32, #tpu.memory_space<vmem>>, vector<16x16x4xf32>
    tpu.vector_store %arg9[%c1, %c1_6, %c0_7], %4 {strides = array<i32>} : memref<18x18x4xf32, #tpu.memory_space<vmem>>, vector<16x16x4xf32>,
    %c0_8 = arith.constant 0 : index
    %c0_9 = arith.constant 0 : index
    %c0_10 = arith.constant 0 : index
    %6 = vector.load %arg9[%c0_8, %c0_9, %c0_10] : memref<18x18x4xf32, #tpu.memory_space<vmem>>, vector<16x16x4xf32>
    %7 = vector.shape_cast %6 : vector<16x16x4xf32> to vector<256x4xf32>
    %c0_11 = arith.constant 0 : index
    %c0_12 = arith.constant 0 : index
    %8 = vector.load %arg11[%c0_11, %c0_12] : memref<256x36xf32, #tpu.memory_space<vmem>>, vector<256x4xf32>
    tpu.vector_store %arg11[%c0_11, %c0_12], %7 {strides = array<i32>} : memref<256x36xf32, #tpu.memory_space<vmem>>, vector<256x4xf32>,
    %c0_13 = arith.constant 0 : index
    %c1_14 = arith.constant 1 : index
    %c0_15 = arith.constant 0 : index
    %9 = vector.load %arg9[%c0_13, %c1_14, %c0_15] : memref<18x18x4xf32, #tpu.memory_space<vmem>>, vector<16x16x4xf32>
    %10 = vector.shape_cast %9 : vector<16x16x4xf32> to vector<256x4xf32>
    %c0_16 = arith.constant 0 : index
    %c4 = arith.constant 4 : index
    %11 = vector.load %arg11[%c0_16, %c4] : memref<256x36xf32, #tpu.memory_space<vmem>>, vector<256x4xf32>
    tpu.vector_store %arg11[%c0_16, %c4], %10 {strides = array<i32>} : memref<256x36xf32, #tpu.memory_space<vmem>>, vector<256x4xf32>,
    %c0_17 = arith.constant 0 : index
    %c2 = arith.constant 2 : index
    %c0_18 = arith.constant 0 : index
    %12 = vector.load %arg9[%c0_17, %c2, %c0_18] : memref<18x18x4xf32, #tpu.memory_space<vmem>>, vector<16x16x4xf32>
    %13 = vector.shape_cast %12 : vector<16x16x4xf32> to vector<256x4xf32>
    %c0_19 = arith.constant 0 : index
    %c8 = arith.constant 8 : index
    %14 = vector.load %arg11[%c0_19, %c8] : memref<256x36xf32, #tpu.memory_space<vmem>>, vector<256x4xf32>
    tpu.vector_store %arg11[%c0_19, %c8], %13 {strides = array<i32>} : memref<256x36xf32, #tpu.memory_space<vmem>>, vector<256x4xf32>,
    %c1_20 = arith.constant 1 : index
    %c0_21 = arith.constant 0 : index
    %c0_22 = arith.constant 0 : index
    %15 = vector.load %arg9[%c1_20, %c0_21, %c0_22] : memref<18x18x4xf32, #tpu.memory_space<vmem>>, vector<16x16x4xf32>
    %16 = vector.shape_cast %15 : vector<16x16x4xf32> to vector<256x4xf32>
    %c0_23 = arith.constant 0 : index
    %c12 = arith.constant 12 : index
    %17 = vector.load %arg11[%c0_23, %c12] : memref<256x36xf32, #tpu.memory_space<vmem>>, vector<256x4xf32>
    tpu.vector_store %arg11[%c0_23, %c12], %16 {strides = array<i32>} : memref<256x36xf32, #tpu.memory_space<vmem>>, vector<256x4xf32>,
    %c1_24 = arith.constant 1 : index
    %c1_25 = arith.constant 1 : index
    %c0_26 = arith.constant 0 : index
    %18 = vector.load %arg9[%c1_24, %c1_25, %c0_26] : memref<18x18x4xf32, #tpu.memory_space<vmem>>, vector<16x16x4xf32>
    %19 = vector.shape_cast %18 : vector<16x16x4xf32> to vector<256x4xf32>
    %c0_27 = arith.constant 0 : index
    %c16 = arith.constant 16 : index
    %20 = vector.load %arg11[%c0_27, %c16] : memref<256x36xf32, #tpu.memory_space<vmem>>, vector<256x4xf32>
    tpu.vector_store %arg11[%c0_27, %c16], %19 {strides = array<i32>} : memref<256x36xf32, #tpu.memory_space<vmem>>, vector<256x4xf32>,
    %c1_28 = arith.constant 1 : index
    %c2_29 = arith.constant 2 : index
    %c0_30 = arith.constant 0 : index
    %21 = vector.load %arg9[%c1_28, %c2_29, %c0_30] : memref<18x18x4xf32, #tpu.memory_space<vmem>>, vector<16x16x4xf32>
    %22 = vector.shape_cast %21 : vector<16x16x4xf32> to vector<256x4xf32>
    %c0_31 = arith.constant 0 : index
    %c20 = arith.constant 20 : index
    %23 = vector.load %arg11[%c0_31, %c20] : memref<256x36xf32, #tpu.memory_space<vmem>>, vector<256x4xf32>
    tpu.vector_store %arg11[%c0_31, %c20], %22 {strides = array<i32>} : memref<256x36xf32, #tpu.memory_space<vmem>>, vector<256x4xf32>,
    %c2_32 = arith.constant 2 : index
    %c0_33 = arith.constant 0 : index
    %c0_34 = arith.constant 0 : index
    %24 = vector.load %arg9[%c2_32, %c0_33, %c0_34] : memref<18x18x4xf32, #tpu.memory_space<vmem>>, vector<16x16x4xf32>
    %25 = vector.shape_cast %24 : vector<16x16x4xf32> to vector<256x4xf32>
    %c0_35 = arith.constant 0 : index
    %c24 = arith.constant 24 : index
    %26 = vector.load %arg11[%c0_35, %c24] : memref<256x36xf32, #tpu.memory_space<vmem>>, vector<256x4xf32>
    tpu.vector_store %arg11[%c0_35, %c24], %25 {strides = array<i32>} : memref<256x36xf32, #tpu.memory_space<vmem>>, vector<256x4xf32>,
    %c2_36 = arith.constant 2 : index
    %c1_37 = arith.constant 1 : index
    %c0_38 = arith.constant 0 : index
    %27 = vector.load %arg9[%c2_36, %c1_37, %c0_38] : memref<18x18x4xf32, #tpu.memory_space<vmem>>, vector<16x16x4xf32>
    %28 = vector.shape_cast %27 : vector<16x16x4xf32> to vector<256x4xf32>
    %c0_39 = arith.constant 0 : index
    %c28 = arith.constant 28 : index
    %29 = vector.load %arg11[%c0_39, %c28] : memref<256x36xf32, #tpu.memory_space<vmem>>, vector<256x4xf32>
    tpu.vector_store %arg11[%c0_39, %c28], %28 {strides = array<i32>} : memref<256x36xf32, #tpu.memory_space<vmem>>, vector<256x4xf32>,
    %c2_40 = arith.constant 2 : index
    %c2_41 = arith.constant 2 : index
    %c0_42 = arith.constant 0 : index
    %30 = vector.load %arg9[%c2_40, %c2_41, %c0_42] : memref<18x18x4xf32, #tpu.memory_space<vmem>>, vector<16x16x4xf32>
    %31 = vector.shape_cast %30 : vector<16x16x4xf32> to vector<256x4xf32>
    %c0_43 = arith.constant 0 : index
    %c32 = arith.constant 32 : index
    %32 = vector.load %arg11[%c0_43, %c32] : memref<256x36xf32, #tpu.memory_space<vmem>>, vector<256x4xf32>
    tpu.vector_store %arg11[%c0_43, %c32], %31 {strides = array<i32>} : memref<256x36xf32, #tpu.memory_space<vmem>>, vector<256x4xf32>,
    %c0_44 = arith.constant 0 : index
    %c0_45 = arith.constant 0 : index
    %33 = vector.load %arg11[%c0_44, %c0_45] : memref<256x36xf32, #tpu.memory_space<vmem>>, vector<256x36xf32>
    %34 = arith.truncf %33 : vector<256x36xf32> to vector<256x36xbf16>
    %c0_46 = arith.constant 0 : index
    %c0_47 = arith.constant 0 : index
    %35 = vector.load %arg2[%c0_46, %c0_47] : memref<36x4xbf16, #tpu.memory_space<vmem>>, vector<36x4xbf16>
    %cst_48 = arith.constant dense<0.000000e+00> : vector<256x4xf32>
    %36 = tpu.matmul %34, %35, %cst_48 {dimension_numbers = #tpu.dot_dimension_numbers<[1], [0], [0], [1], [0, 0, 1, 1], [], []>} : vector<256x36xbf16>, vector<36x4xbf16>, vector<256x4xf32> -> vector<256x4xf32>
    %c0_49 = arith.constant 0 : index
    %c0_50 = arith.constant 0 : index
    %37 = vector.load %arg4[%c0_49, %c0_50] : memref<1x4xf32, #tpu.memory_space<vmem>>, vector<1x4xf32>
    %38 = vector.broadcast %37 : vector<1x4xf32> to vector<256x4xf32>
    %39 = arith.mulf %36, %38 : vector<256x4xf32>
    %c0_51 = arith.constant 0 : index
    %c0_52 = arith.constant 0 : index
    %40 = vector.load %arg5[%c0_51, %c0_52] : memref<1x4xf32, #tpu.memory_space<vmem>>, vector<1x4xf32>
    %41 = vector.broadcast %40 : vector<1x4xf32> to vector<256x4xf32>
    %42 = arith.addf %39, %41 : vector<256x4xf32>
    %cst_53 = arith.constant 0.000000e+00 : f32
    %43 = vector.broadcast %cst_53 : f32 to vector<256x4xf32>
    %44 = arith.maximumf %42, %43 : vector<256x4xf32>
    %cst_54 = arith.constant 0.000000e+00 : f32
    %45 = vector.broadcast %cst_54 : f32 to vector<18x18x4xf32>
    %c0_55 = arith.constant 0 : index
    %c0_56 = arith.constant 0 : index
    %c0_57 = arith.constant 0 : index
    %46 = vector.load %arg10[%c0_55, %c0_56, %c0_57] : memref<18x18x4xf32, #tpu.memory_space<vmem>>, vector<18x18x4xf32>
    tpu.vector_store %arg10[%c0_55, %c0_56, %c0_57], %45 {strides = array<i32>} : memref<18x18x4xf32, #tpu.memory_space<vmem>>, vector<18x18x4xf32>,
    %47 = vector.shape_cast %44 : vector<256x4xf32> to vector<16x16x4xf32>
    %c1_58 = arith.constant 1 : index
    %c1_59 = arith.constant 1 : index
    %c0_60 = arith.constant 0 : index
    %48 = vector.load %arg10[%c1_58, %c1_59, %c0_60] : memref<18x18x4xf32, #tpu.memory_space<vmem>>, vector<16x16x4xf32>
    tpu.vector_store %arg10[%c1_58, %c1_59, %c0_60], %47 {strides = array<i32>} : memref<18x18x4xf32, #tpu.memory_space<vmem>>, vector<16x16x4xf32>,
    %c0_61 = arith.constant 0 : index
    %c0_62 = arith.constant 0 : index
    %c0_63 = arith.constant 0 : index
    %49 = vector.load %arg10[%c0_61, %c0_62, %c0_63] : memref<18x18x4xf32, #tpu.memory_space<vmem>>, vector<16x16x4xf32>
    %50 = vector.shape_cast %49 : vector<16x16x4xf32> to vector<256x4xf32>
    %c0_64 = arith.constant 0 : index
    %c0_65 = arith.constant 0 : index
    %51 = vector.load %arg11[%c0_64, %c0_65] : memref<256x36xf32, #tpu.memory_space<vmem>>, vector<256x4xf32>
    tpu.vector_store %arg11[%c0_64, %c0_65], %50 {strides = array<i32>} : memref<256x36xf32, #tpu.memory_space<vmem>>, vector<256x4xf32>,
    %c0_66 = arith.constant 0 : index
    %c1_67 = arith.constant 1 : index
    %c0_68 = arith.constant 0 : index
    %52 = vector.load %arg10[%c0_66, %c1_67, %c0_68] : memref<18x18x4xf32, #tpu.memory_space<vmem>>, vector<16x16x4xf32>
    %53 = vector.shape_cast %52 : vector<16x16x4xf32> to vector<256x4xf32>
    %c0_69 = arith.constant 0 : index
    %c4_70 = arith.constant 4 : index
    %54 = vector.load %arg11[%c0_69, %c4_70] : memref<256x36xf32, #tpu.memory_space<vmem>>, vector<256x4xf32>
    tpu.vector_store %arg11[%c0_69, %c4_70], %53 {strides = array<i32>} : memref<256x36xf32, #tpu.memory_space<vmem>>, vector<256x4xf32>,
    %c0_71 = arith.constant 0 : index
    %c2_72 = arith.constant 2 : index
    %c0_73 = arith.constant 0 : index
    %55 = vector.load %arg10[%c0_71, %c2_72, %c0_73] : memref<18x18x4xf32, #tpu.memory_space<vmem>>, vector<16x16x4xf32>
    %56 = vector.shape_cast %55 : vector<16x16x4xf32> to vector<256x4xf32>
    %c0_74 = arith.constant 0 : index
    %c8_75 = arith.constant 8 : index
    %57 = vector.load %arg11[%c0_74, %c8_75] : memref<256x36xf32, #tpu.memory_space<vmem>>, vector<256x4xf32>
    tpu.vector_store %arg11[%c0_74, %c8_75], %56 {strides = array<i32>} : memref<256x36xf32, #tpu.memory_space<vmem>>, vector<256x4xf32>,
    %c1_76 = arith.constant 1 : index
    %c0_77 = arith.constant 0 : index
    %c0_78 = arith.constant 0 : index
    %58 = vector.load %arg10[%c1_76, %c0_77, %c0_78] : memref<18x18x4xf32, #tpu.memory_space<vmem>>, vector<16x16x4xf32>
    %59 = vector.shape_cast %58 : vector<16x16x4xf32> to vector<256x4xf32>
    %c0_79 = arith.constant 0 : index
    %c12_80 = arith.constant 12 : index
    %60 = vector.load %arg11[%c0_79, %c12_80] : memref<256x36xf32, #tpu.memory_space<vmem>>, vector<256x4xf32>
    tpu.vector_store %arg11[%c0_79, %c12_80], %59 {strides = array<i32>} : memref<256x36xf32, #tpu.memory_space<vmem>>, vector<256x4xf32>,
    %c1_81 = arith.constant 1 : index
    %c1_82 = arith.constant 1 : index
    %c0_83 = arith.constant 0 : index
    %61 = vector.load %arg10[%c1_81, %c1_82, %c0_83] : memref<18x18x4xf32, #tpu.memory_space<vmem>>, vector<16x16x4xf32>
    %62 = vector.shape_cast %61 : vector<16x16x4xf32> to vector<256x4xf32>
    %c0_84 = arith.constant 0 : index
    %c16_85 = arith.constant 16 : index
    %63 = vector.load %arg11[%c0_84, %c16_85] : memref<256x36xf32, #tpu.memory_space<vmem>>, vector<256x4xf32>
    tpu.vector_store %arg11[%c0_84, %c16_85], %62 {strides = array<i32>} : memref<256x36xf32, #tpu.memory_space<vmem>>, vector<256x4xf32>,
    %c1_86 = arith.constant 1 : index
    %c2_87 = arith.constant 2 : index
    %c0_88 = arith.constant 0 : index
    %64 = vector.load %arg10[%c1_86, %c2_87, %c0_88] : memref<18x18x4xf32, #tpu.memory_space<vmem>>, vector<16x16x4xf32>
    %65 = vector.shape_cast %64 : vector<16x16x4xf32> to vector<256x4xf32>
    %c0_89 = arith.constant 0 : index
    %c20_90 = arith.constant 20 : index
    %66 = vector.load %arg11[%c0_89, %c20_90] : memref<256x36xf32, #tpu.memory_space<vmem>>, vector<256x4xf32>
    tpu.vector_store %arg11[%c0_89, %c20_90], %65 {strides = array<i32>} : memref<256x36xf32, #tpu.memory_space<vmem>>, vector<256x4xf32>,
    %c2_91 = arith.constant 2 : index
    %c0_92 = arith.constant 0 : index
    %c0_93 = arith.constant 0 : index
    %67 = vector.load %arg10[%c2_91, %c0_92, %c0_93] : memref<18x18x4xf32, #tpu.memory_space<vmem>>, vector<16x16x4xf32>
    %68 = vector.shape_cast %67 : vector<16x16x4xf32> to vector<256x4xf32>
    %c0_94 = arith.constant 0 : index
    %c24_95 = arith.constant 24 : index
    %69 = vector.load %arg11[%c0_94, %c24_95] : memref<256x36xf32, #tpu.memory_space<vmem>>, vector<256x4xf32>
    tpu.vector_store %arg11[%c0_94, %c24_95], %68 {strides = array<i32>} : memref<256x36xf32, #tpu.memory_space<vmem>>, vector<256x4xf32>,
    %c2_96 = arith.constant 2 : index
    %c1_97 = arith.constant 1 : index
    %c0_98 = arith.constant 0 : index
    %70 = vector.load %arg10[%c2_96, %c1_97, %c0_98] : memref<18x18x4xf32, #tpu.memory_space<vmem>>, vector<16x16x4xf32>
    %71 = vector.shape_cast %70 : vector<16x16x4xf32> to vector<256x4xf32>
    %c0_99 = arith.constant 0 : index
    %c28_100 = arith.constant 28 : index
    %72 = vector.load %arg11[%c0_99, %c28_100] : memref<256x36xf32, #tpu.memory_space<vmem>>, vector<256x4xf32>
    tpu.vector_store %arg11[%c0_99, %c28_100], %71 {strides = array<i32>} : memref<256x36xf32, #tpu.memory_space<vmem>>, vector<256x4xf32>,
    %c2_101 = arith.constant 2 : index
    %c2_102 = arith.constant 2 : index
    %c0_103 = arith.constant 0 : index
    %73 = vector.load %arg10[%c2_101, %c2_102, %c0_103] : memref<18x18x4xf32, #tpu.memory_space<vmem>>, vector<16x16x4xf32>
    %74 = vector.shape_cast %73 : vector<16x16x4xf32> to vector<256x4xf32>
    %c0_104 = arith.constant 0 : index
    %c32_105 = arith.constant 32 : index
    %75 = vector.load %arg11[%c0_104, %c32_105] : memref<256x36xf32, #tpu.memory_space<vmem>>, vector<256x4xf32>
    tpu.vector_store %arg11[%c0_104, %c32_105], %74 {strides = array<i32>} : memref<256x36xf32, #tpu.memory_space<vmem>>, vector<256x4xf32>,
    %c0_106 = arith.constant 0 : index
    %c0_107 = arith.constant 0 : index
    %76 = vector.load %arg11[%c0_106, %c0_107] : memref<256x36xf32, #tpu.memory_space<vmem>>, vector<256x36xf32>
    %77 = arith.truncf %76 : vector<256x36xf32> to vector<256x36xbf16>
    %c0_108 = arith.constant 0 : index
    %c0_109 = arith.constant 0 : index
    %78 = vector.load %arg3[%c0_108, %c0_109] : memref<36x4xbf16, #tpu.memory_space<vmem>>, vector<36x4xbf16>
    %cst_110 = arith.constant dense<0.000000e+00> : vector<256x4xf32>
    %79 = tpu.matmul %77, %78, %cst_110 {dimension_numbers = #tpu.dot_dimension_numbers<[1], [0], [0], [1], [0, 0, 1, 1], [], []>} : vector<256x36xbf16>, vector<36x4xbf16>, vector<256x4xf32> -> vector<256x4xf32>
    %c1_111 = arith.constant 1 : index
    %c1_112 = arith.constant 1 : index
    %c0_113 = arith.constant 0 : index
    %80 = vector.load %arg9[%c1_111, %c1_112, %c0_113] : memref<18x18x4xf32, #tpu.memory_space<vmem>>, vector<16x16x4xf32>
    %81 = vector.shape_cast %80 : vector<16x16x4xf32> to vector<256x4xf32>
    %c0_114 = arith.constant 0 : index
    %c0_115 = arith.constant 0 : index
    %82 = vector.load %arg6[%c0_114, %c0_115] : memref<1x4xf32, #tpu.memory_space<vmem>>, vector<1x4xf32>
    %83 = vector.broadcast %82 : vector<1x4xf32> to vector<256x4xf32>
    %84 = arith.mulf %79, %83 : vector<256x4xf32>
    %c0_116 = arith.constant 0 : index
    %c0_117 = arith.constant 0 : index
    %85 = vector.load %arg7[%c0_116, %c0_117] : memref<1x4xf32, #tpu.memory_space<vmem>>, vector<1x4xf32>
    %86 = vector.broadcast %85 : vector<1x4xf32> to vector<256x4xf32>
    %87 = arith.addf %84, %86 : vector<256x4xf32>
    %88 = arith.addf %87, %81 : vector<256x4xf32>
    %cst_118 = arith.constant 0.000000e+00 : f32
    %89 = vector.broadcast %cst_118 : f32 to vector<256x4xf32>
    %90 = arith.maximumf %88, %89 : vector<256x4xf32>
    %91 = vector.shape_cast %90 : vector<256x4xf32> to vector<16x16x4xf32>
    %c0_119 = arith.constant 0 : index
    %c0_120 = arith.constant 0 : index
    %c0_121 = arith.constant 0 : index
    %c0_122 = arith.constant 0 : index
    %92 = vector.load %arg8[%c0_119, %c0_120, %c0_121, %c0_122] : memref<1x16x16x4xf32, #tpu.memory_space<vmem>>, vector<1x16x16x4xf32>
    %93 = vector.shape_cast %92 : vector<1x16x16x4xf32> to vector<16x16x4xf32>
    %94 = vector.shape_cast %91 : vector<16x16x4xf32> to vector<1x16x16x4xf32>
    tpu.vector_store %arg8[%c0_119, %c0_120, %c0_121, %c0_122], %94 {strides = array<i32>} : memref<1x16x16x4xf32, #tpu.memory_space<vmem>>, vector<1x16x16x4xf32>,
    return
  }
  func.func @transform_0(%arg0: i32) -> (i32, i32, i32, i32) {
    %c0_i32 = arith.constant 0 : i32
    %c0_i32_0 = arith.constant 0 : i32
    %c0_i32_1 = arith.constant 0 : i32
    %c0_i32_2 = arith.constant 0 : i32
    return %arg0, %c0_i32, %c0_i32_0, %c0_i32_1 : i32, i32, i32, i32
  }
  func.func @transform_1(%arg0: i32) -> (i32, i32) {
    %c0_i32 = arith.constant 0 : i32
    %c0_i32_0 = arith.constant 0 : i32
    %c0_i32_1 = arith.constant 0 : i32
    return %c0_i32, %c0_i32_0 : i32, i32
  }
  func.func @transform_2(%arg0: i32) -> (i32, i32) {
    %c0_i32 = arith.constant 0 : i32
    %c0_i32_0 = arith.constant 0 : i32
    %c0_i32_1 = arith.constant 0 : i32
    return %c0_i32, %c0_i32_0 : i32, i32
  }
  func.func @transform_3(%arg0: i32) -> (i32, i32) {
    %c0_i32 = arith.constant 0 : i32
    %c0_i32_0 = arith.constant 0 : i32
    %c0_i32_1 = arith.constant 0 : i32
    return %c0_i32, %c0_i32_0 : i32, i32
  }
  func.func @transform_4(%arg0: i32) -> (i32, i32) {
    %c0_i32 = arith.constant 0 : i32
    %c0_i32_0 = arith.constant 0 : i32
    %c0_i32_1 = arith.constant 0 : i32
    return %c0_i32, %c0_i32_0 : i32, i32
  }
  func.func @transform_5(%arg0: i32) -> (i32, i32) {
    %c0_i32 = arith.constant 0 : i32
    %c0_i32_0 = arith.constant 0 : i32
    %c0_i32_1 = arith.constant 0 : i32
    return %c0_i32, %c0_i32_0 : i32, i32
  }
  func.func @transform_6(%arg0: i32) -> (i32, i32) {
    %c0_i32 = arith.constant 0 : i32
    %c0_i32_0 = arith.constant 0 : i32
    %c0_i32_1 = arith.constant 0 : i32
    return %c0_i32, %c0_i32_0 : i32, i32
  }
  func.func @transform_7(%arg0: i32) -> (i32, i32, i32, i32) {
    %c0_i32 = arith.constant 0 : i32
    %c0_i32_0 = arith.constant 0 : i32
    %c0_i32_1 = arith.constant 0 : i32
    %c0_i32_2 = arith.constant 0 : i32
    return %arg0, %c0_i32, %c0_i32_0, %c0_i32_1 : i32, i32, i32, i32
  }
}

</mosaic_0001>

<llo_original>
// kernel: tpu_custom_call.1
$region0: #{tpu_custom_call.1}
  #allocation0 [shape = 'u32[]', space=smem, size = 0x4, offset = 0x4, fixed_abs, tag = 'smem constant byte address 0x4 - core index']
  #allocation1 [shape = 'u32[144,128]{1,0:T(1,128)}', space=vmem, size = 0x12000, scoped, tag = 'internal scratch']
  #allocation2 [shape = 'f32[18,18,4]{2,1,0:T(8,128)}', space=vmem, size = 0x36000, scoped, tag = 'scratch operand']
  #allocation3 [shape = 'f32[18,18,4]{2,1,0:T(8,128)}', space=vmem, size = 0x36000, scoped, tag = 'scratch operand']
  #allocation4 [shape = 'f32[256,36]{1,0:T(8,128)}', space=vmem, size = 0x20000, scoped, tag = 'scratch operand']
  %s0 = inlined_call_operand.vmem [shape: bf16[2,16,16,4], index: 0, kind: input, shape index: {}]
  %s1 = inlined_call_operand.vmem [shape: bf16[36,4], index: 1, kind: input, shape index: {}]
  %s2 = inlined_call_operand.vmem [shape: bf16[36,4], index: 2, kind: input, shape index: {}]
  %s3 = inlined_call_operand.vmem [shape: f32[1,4], index: 3, kind: input, shape index: {}]
  %s4 = inlined_call_operand.vmem [shape: f32[1,4], index: 4, kind: input, shape index: {}]
  %s5 = inlined_call_operand.vmem [shape: f32[1,4], index: 5, kind: input, shape index: {}]
  %s6 = inlined_call_operand.vmem [shape: f32[1,4], index: 6, kind: input, shape index: {}]
  %s7 = inlined_call_operand.vmem [shape: f32[2,16,16,4], index: 7, kind: output, shape index: {}]
  %s8 = sld [smem:[#allocation0]]
  $region61: #{tpu_custom_call.1} parent=0
    _
  %s10 = ssub.s32 1, %s8
  %s11 = scalar_select 0, %s10, %s8
  loop: start=0, step=1, limit=4
  $region2: #{tpu_custom_call.1} parent=0 // loop_pre_header
    _
  $region3: #{tpu_custom_call.1} parent=0 // loop_header
    %s13 = sphi 0, %s17
    %p14 = scmp.ge.s32.totalorder %s13, 4
    %s23 = sphi 0, %s25
    %s26 = sphi 0, %s23
    %s27 = sphi 0, %s26
    %s43 = sphi 0, %s27
    %s47 = sphi 0, %s47
    %s49 = sphi 0, %s47
    %s50 = sphi 0, %s49
    %s64 = sphi 0, %s50
    %s68 = sphi 0, %s68
    %s70 = sphi 0, %s68
    %s71 = sphi 0, %s70
    %s85 = sphi 0, %s71
    %s89 = sphi 0, %s89
    %s91 = sphi 0, %s89
    %s92 = sphi 0, %s91
    %s106 = sphi 0, %s92
    %s110 = sphi 0, %s110
    %s112 = sphi 0, %s110
    %s113 = sphi 0, %s112
    %s127 = sphi 0, %s113
    %s131 = sphi 0, %s131
    %s133 = sphi 0, %s131
    %s134 = sphi 0, %s133
    %s148 = sphi 0, %s134
    %s152 = sphi 0, %s152
    %s154 = sphi 0, %s152
    %s155 = sphi 0, %s154
    %s169 = sphi 0, %s155
    %s175 = sphi 0, %s177
    %s178 = sphi 0, %s175
    %s179 = sphi 0, %s178
    %s195 = sphi 0, %s179
  $region4: #{tpu_custom_call.1} parent=0 // loop_header_branch
    %16 = sbr.rel (%p14) target = $region8
  $region5: #{tpu_custom_call.1} parent=0 // loop_body
    %s18 = ssub.s32 %s13, 1
    %s19 = ssub.s32 %s13, 2
    %s20 = sadd.s32 %s13, 1
    %s21 = ssub.s32 %s13, %s20
    %p22 = scmp.eq.s32.totalorder %s21, 0
    %s24 = sadd.s32 %s23, 1
    %s25 = scalar_select %p22, %s23, %s24
    %p28 = pneg %p22
    %p29 = scmp.eq.s32.totalorder %s13, 1
    %p30 = por %p28, %p29
    %p31 = scmp.ne.s32.totalorder %s23, %s26
    %p32 = scmp.eq.s32.totalorder %s13, 0
    %p33 = por %p31, %p32
    %p34 = scmp.ne.s32.totalorder %s23, %s26
    %p35 = scmp.eq.s32.totalorder %s18, 1
    %p36 = por %p34, %p35
    %p37 = scmp.ne.s32.totalorder %s26, %s27
    %p38 = scmp.eq.s32.totalorder %s18, 0
    %p39 = por %p37, %p38
    %p40 = scmp.ne.s32.totalorder %s26, %s27
    %p41 = scmp.eq.s32.totalorder %s19, 1
    %p42 = por %p40, %p41
    %p44 = scmp.ne.s32.totalorder %s27, %s43
    %p45 = scmp.eq.s32.totalorder %s19, 0
    %p46 = por %p44, %p45
    %s48 = sadd.s32 %s47, 1
    %p51 = scmp.eq.s32.totalorder %s13, 1
    %p52 = scmp.ne.s32.totalorder %s47, %s49
    %p53 = scmp.eq.s32.totalorder %s13, 0
    %p54 = por %p52, %p53
    %p55 = scmp.ne.s32.totalorder %s47, %s49
    %p56 = scmp.eq.s32.totalorder %s18, 1
    %p57 = por %p55, %p56
    %p58 = scmp.ne.s32.totalorder %s49, %s50
    %p59 = scmp.eq.s32.totalorder %s18, 0
    %p60 = por %p58, %p59
    %p61 = scmp.ne.s32.totalorder %s49, %s50
    %p62 = scmp.eq.s32.totalorder %s19, 1
    %p63 = por %p61, %p62
    %p65 = scmp.ne.s32.totalorder %s50, %s64
    %p66 = scmp.eq.s32.totalorder %s19, 0
    %p67 = por %p65, %p66
    %s69 = sadd.s32 %s68, 1
    %p72 = scmp.eq.s32.totalorder %s13, 1
    %p73 = scmp.ne.s32.totalorder %s68, %s70
    %p74 = scmp.eq.s32.totalorder %s13, 0
    %p75 = por %p73, %p74
    %p76 = scmp.ne.s32.totalorder %s68, %s70
    %p77 = scmp.eq.s32.totalorder %s18, 1
    %p78 = por %p76, %p77
    %p79 = scmp.ne.s32.totalorder %s70, %s71
    %p80 = scmp.eq.s32.totalorder %s18, 0
    %p81 = por %p79, %p80
    %p82 = scmp.ne.s32.totalorder %s70, %s71
    %p83 = scmp.eq.s32.totalorder %s19, 1
    %p84 = por %p82, %p83
    %p86 = scmp.ne.s32.totalorder %s71, %s85
    %p87 = scmp.eq.s32.totalorder %s19, 0
    %p88 = por %p86, %p87
    %s90 = sadd.s32 %s89, 1
    %p93 = scmp.eq.s32.totalorder %s13, 1
    %p94 = scmp.ne.s32.totalorder %s89, %s91
    %p95 = scmp.eq.s32.totalorder %s13, 0
    %p96 = por %p94, %p95
    %p97 = scmp.ne.s32.totalorder %s89, %s91
    %p98 = scmp.eq.s32.totalorder %s18, 1
    %p99 = por %p97, %p98
    %p100 = scmp.ne.s32.totalorder %s91, %s92
    %p101 = scmp.eq.s32.totalorder %s18, 0
    %p102 = por %p100, %p101
    %p103 = scmp.ne.s32.totalorder %s91, %s92
    %p104 = scmp.eq.s32.totalorder %s19, 1
    %p105 = por %p103, %p104
    %p107 = scmp.ne.s32.totalorder %s92, %s106
    %p108 = scmp.eq.s32.totalorder %s19, 0
    %p109 = por %p107, %p108
    %s111 = sadd.s32 %s110, 1
    %p114 = scmp.eq.s32.totalorder %s13, 1
    %p115 = scmp.ne.s32.totalorder %s110, %s112
    %p116 = scmp.eq.s32.totalorder %s13, 0
    %p117 = por %p115, %p116
    %p118 = scmp.ne.s32.totalorder %s110, %s112
    %p119 = scmp.eq.s32.totalorder %s18, 1
    %p120 = por %p118, %p119
    %p121 = scmp.ne.s32.totalorder %s112, %s113
    %p122 = scmp.eq.s32.totalorder %s18, 0
    %p123 = por %p121, %p122
    %p124 = scmp.ne.s32.totalorder %s112, %s113
    %p125 = scmp.eq.s32.totalorder %s19, 1
    %p126 = por %p124, %p125
    %p128 = scmp.ne.s32.totalorder %s113, %s127
    %p129 = scmp.eq.s32.totalorder %s19, 0
    %p130 = por %p128, %p129
    %s132 = sadd.s32 %s131, 1
    %p135 = scmp.eq.s32.totalorder %s13, 1
    %p136 = scmp.ne.s32.totalorder %s131, %s133
    %p137 = scmp.eq.s32.totalorder %s13, 0
    %p138 = por %p136, %p137
    %p139 = scmp.ne.s32.totalorder %s131, %s133
    %p140 = scmp.eq.s32.totalorder %s18, 1
    %p141 = por %p139, %p140
    %p142 = scmp.ne.s32.totalorder %s133, %s134
    %p143 = scmp.eq.s32.totalorder %s18, 0
    %p144 = por %p142, %p143
    %p145 = scmp.ne.s32.totalorder %s133, %s134
    %p146 = scmp.eq.s32.totalorder %s19, 1
    %p147 = por %p145, %p146
    %p149 = scmp.ne.s32.totalorder %s134, %s148
    %p150 = scmp.eq.s32.totalorder %s19, 0
    %p151 = por %p149, %p150
    %s153 = sadd.s32 %s152, 1
    %p156 = scmp.eq.s32.totalorder %s13, 1
    %p157 = scmp.ne.s32.totalorder %s152, %s154
    %p158 = scmp.eq.s32.totalorder %s13, 0
    %p159 = por %p157, %p158
    %p160 = scmp.ne.s32.totalorder %s152, %s154
    %p161 = scmp.eq.s32.totalorder %s18, 1
    %p162 = por %p160, %p161
    %p163 = scmp.ne.s32.totalorder %s154, %s155
    %p164 = scmp.eq.s32.totalorder %s18, 0
    %p165 = por %p163, %p164
    %p166 = scmp.ne.s32.totalorder %s154, %s155
    %p167 = scmp.eq.s32.totalorder %s19, 1
    %p168 = por %p166, %p167
    %p170 = scmp.ne.s32.totalorder %s155, %s169
    %p171 = scmp.eq.s32.totalorder %s19, 0
    %p172 = por %p170, %p171
    %s173 = ssub.s32 %s13, %s20
    %p174 = scmp.eq.s32.totalorder %s173, 0
    %s176 = sadd.s32 %s175, 1
    %s177 = scalar_select %p174, %s175, %s176
    %p180 = pneg %p174
    %p181 = scmp.eq.s32.totalorder %s13, 1
    %p182 = por %p180, %p181
    %p183 = scmp.ne.s32.totalorder %s175, %s178
    %p184 = scmp.eq.s32.totalorder %s13, 0
    %p185 = por %p183, %p184
    %p186 = scmp.ne.s32.totalorder %s175, %s178
    %p187 = scmp.eq.s32.totalorder %s18, 1
    %p188 = por %p186, %p187
    %p189 = scmp.ne.s32.totalorder %s178, %s179
    %p190 = scmp.eq.s32.totalorder %s18, 0
    %p191 = por %p189, %p190
    %p192 = scmp.ne.s32.totalorder %s178, %s179
    %p193 = scmp.eq.s32.totalorder %s19, 1
    %p194 = por %p192, %p193
    %p196 = scmp.ne.s32.totalorder %s179, %s195
    %p197 = scmp.eq.s32.totalorder %s19, 0
    %p198 = por %p196, %p197
    %p199 = scmp.le.s32.totalorder 1, %s13
    %p200 = scmp.lt.s32.totalorder %s13, 3
    %p201 = pnand %p199, %p200
    %p202 = pneg %p201
    // Predicated region
    $region9: #{tpu_custom_call.1} parent=5 // pred_check
      _
    $region10: #{tpu_custom_call.1} parent=5 // pred_check_branch
      %204 = sbr.rel (%p201) target = $region12
    $region11: #{tpu_custom_call.1} parent=5 // pred_region
      %s205 = ssub.s32 %s13, 1
      // Predicated region
      $region13: #{tpu_custom_call.1} parent=11 // pred_check
        %p206 = pneg %p60
      $region14: #{tpu_custom_call.1} parent=11 // pred_check_branch
        %208 = sbr.rel (%p206) target = $region16
      $region15: #{tpu_custom_call.1} parent=11 // pred_region
        _
      $region16: #{tpu_custom_call.1} parent=11 // pred_fallthru
        _
      // Predicated region
      $region17: #{tpu_custom_call.1} parent=11 // pred_check
        %p209 = pneg %p81
      $region18: #{tpu_custom_call.1} parent=11 // pred_check_branch
        %211 = sbr.rel (%p209) target = $region20
      $region19: #{tpu_custom_call.1} parent=11 // pred_region
        _
      $region20: #{tpu_custom_call.1} parent=11 // pred_fallthru
        _
      // Predicated region
      $region21: #{tpu_custom_call.1} parent=11 // pred_check
        %p212 = pneg %p102
      $region22: #{tpu_custom_call.1} parent=11 // pred_check_branch
        %214 = sbr.rel (%p212) target = $region24
      $region23: #{tpu_custom_call.1} parent=11 // pred_region
        _
      $region24: #{tpu_custom_call.1} parent=11 // pred_fallthru
        _
      // Predicated region
      $region25: #{tpu_custom_call.1} parent=11 // pred_check
        %p215 = pneg %p123
      $region26: #{tpu_custom_call.1} parent=11 // pred_check_branch
        %217 = sbr.rel (%p215) target = $region28
      $region27: #{tpu_custom_call.1} parent=11 // pred_region
        _
      $region28: #{tpu_custom_call.1} parent=11 // pred_fallthru
        _
      // Predicated region
      $region29: #{tpu_custom_call.1} parent=11 // pred_check
        %p218 = pneg %p144
      $region30: #{tpu_custom_call.1} parent=11 // pred_check_branch
        %220 = sbr.rel (%p218) target = $region32
      $region31: #{tpu_custom_call.1} parent=11 // pred_region
        _
      $region32: #{tpu_custom_call.1} parent=11 // pred_fallthru
        _
      // Predicated region
      $region33: #{tpu_custom_call.1} parent=11 // pred_check
        %p221 = pneg %p165
      $region34: #{tpu_custom_call.1} parent=11 // pred_check_branch
        %223 = sbr.rel (%p221) target = $region36
      $region35: #{tpu_custom_call.1} parent=11 // pred_region
        _
      $region36: #{tpu_custom_call.1} parent=11 // pred_fallthru
        _
    $region12: #{tpu_custom_call.1} parent=5 // pred_fallthru
      _
    %p224 = scmp.lt.s32.totalorder %s13, 2
    // Predicated region
    $region37: #{tpu_custom_call.1} parent=5 // pred_check
      %p225 = pneg %p224
    $region38: #{tpu_custom_call.1} parent=5 // pred_check_branch
      %227 = sbr.rel (%p225) target = $region40
    $region39: #{tpu_custom_call.1} parent=5 // pred_region
      // Predicated region
      $region41: #{tpu_custom_call.1} parent=39 // pred_check
        %p228 = pneg %p33
      $region42: #{tpu_custom_call.1} parent=39 // pred_check_branch
        %230 = sbr.rel (%p228) target = $region44
      $region43: #{tpu_custom_call.1} parent=39 // pred_region
        %p231 = scmp.lt.s32.totalorder %s13, 1
        %s232 = scalar_select %p231, %s13, 1
        %s233 = smul.addr %s232, 32
        %s234 = smul.addr %s233, 4
        %s235 = scalar_lea.vmem %s0, %s234
      $region44: #{tpu_custom_call.1} parent=39 // pred_fallthru
        _
    $region40: #{tpu_custom_call.1} parent=5 // pred_fallthru
      _
    %p236 = scmp.le.s32.totalorder 1, %s13
    %p237 = scmp.lt.s32.totalorder %s13, 3
    %p238 = pnand %p236, %p237
    %p239 = pneg %p238
    // Predicated region
    $region45: #{tpu_custom_call.1} parent=5 // pred_check
      _
    $region46: #{tpu_custom_call.1} parent=5 // pred_check_branch
      %241 = sbr.rel (%p238) target = $region48
    $region47: #{tpu_custom_call.1} parent=5 // pred_region
      %s242 = ssub.s32 %s13, 1
      %p243 = scmp.lt.s32.totalorder %s18, 1
      %s244 = scalar_select %p243, %s18, 1
      %s245 = smul.addr %s244, 32
      %s246 = smul.addr %s245, 4
      %s247 = scalar_lea.vmem %s0, %s246
      %p248 = pneg %p39
      %p249 = pneg %p36
      %p250 = pneg %p60
      %p251 = pneg %p57
      %p252 = pneg %p81
      %p253 = pneg %p78
      %p254 = pneg %p102
      %p255 = pneg %p99
      %p256 = pneg %p123
      %p257 = pneg %p120
      %p258 = pneg %p144
      %p259 = pneg %p141
      %p260 = pneg %p165
      %p261 = pneg %p162
      %p262 = pneg %p191
      %p263 = pneg %p188
      %p264 = scmp.lt.s32.totalorder %s18, 1
      %s265 = scalar_select %p264, %s18, 1
      %s266 = smul.addr %s265, 32
      %s267 = smul.addr %s266, 8
      %s268 = scalar_lea.vmem %s7, %s267
      %p269 = scmp.lt.s32.totalorder %s18, 1
      %s270 = scalar_select %p269, %s18, 1
      %s271 = smul.addr %s270, 32
      %s272 = smul.addr %s271, 4
      %s273 = scalar_lea.vmem %s0, %s272
      %p274 = scmp.lt.s32.totalorder %s18, 1
      %s275 = scalar_select %p274, %s18, 1
      %s276 = smul.addr %s275, 32
      %s277 = smul.addr %s276, 8
      %s278 = scalar_lea.vmem %s7, %s277
      %vm280 = vcmask 31744
      %281 = vst.msk [vmem:[#allocation2] sm:$0xff] %vm280, 0.0
      %282 = vst.msk [vmem:[#allocation2 + $0x8] sm:$0xff] %vm280, 0.0
      %vm283 = vcmask 25600
      %284 = vst.msk [vmem:[#allocation2 + $0x10] sm:$0x3] %vm283, 0.0
      %285 = vst.msk [vmem:[#allocation2 + $0x18] sm:$0xff] %vm280, 0.0
      %286 = vst.msk [vmem:[#allocation2 + $0x20] sm:$0xff] %vm280, 0.0
      %287 = vst.msk [vmem:[#allocation2 + $0x28] sm:$0x3] %vm283, 0.0
      %288 = vst.msk [vmem:[#allocation2 + $0x30] sm:$0xff] %vm280, 0.0
      %289 = vst.msk [vmem:[#allocation2 + $0x38] sm:$0xff] %vm280, 0.0
      %290 = vst.msk [vmem:[#allocation2 + $0x40] sm:$0x3] %vm283, 0.0
      %291 = vst.msk [vmem:[#allocation2 + $0x48] sm:$0xff] %vm280, 0.0
      %292 = vst.msk [vmem:[#allocation2 + $0x50] sm:$0xff] %vm280, 0.0
      %293 = vst.msk [vmem:[#allocation2 + $0x58] sm:$0x3] %vm283, 0.0
      %294 = vst.msk [vmem:[#allocation2 + $0x60] sm:$0xff] %vm280, 0.0
      %295 = vst.msk [vmem:[#allocation2 + $0x68] sm:$0xff] %vm280, 0.0
      %296 = vst.msk [vmem:[#allocation2 + $0x70] sm:$0x3] %vm283, 0.0
      %297 = vst.msk [vmem:[#allocation2 + $0x78] sm:$0xff] %vm280, 0.0
      %298 = vst.msk [vmem:[#allocation2 + $0x80] sm:$0xff] %vm280, 0.0
      %299 = vst.msk [vmem:[#allocation2 + $0x88] sm:$0x3] %vm283, 0.0
      %300 = vst.msk [vmem:[#allocation2 + $0x90] sm:$0xff] %vm280, 0.0
      %301 = vst.msk [vmem:[#allocation2 + $0x98] sm:$0xff] %vm280, 0.0
      %302 = vst.msk [vmem:[#allocation2 + $0xa0] sm:$0x3] %vm283, 0.0
      %303 = vst.msk [vmem:[#allocation2 + $0xa8] sm:$0xff] %vm280, 0.0
      %304 = vst.msk [vmem:[#allocation2 + $0xb0] sm:$0xff] %vm280, 0.0
      %305 = vst.msk [vmem:[#allocation2 + $0xb8] sm:$0x3] %vm283, 0.0
      %306 = vst.msk [vmem:[#allocation2 + $0xc0] sm:$0xff] %vm280, 0.0
      %307 = vst.msk [vmem:[#allocation2 + $0xc8] sm:$0xff] %vm280, 0.0
      %308 = vst.msk [vmem:[#allocation2 + $0xd0] sm:$0x3] %vm283, 0.0
      %309 = vst.msk [vmem:[#allocation2 + $0xd8] sm:$0xff] %vm280, 0.0
      %310 = vst.msk [vmem:[#allocation2 + $0xe0] sm:$0xff] %vm280, 0.0
      %311 = vst.msk [vmem:[#allocation2 + $0xe8] sm:$0x3] %vm283, 0.0
      %312 = vst.msk [vmem:[#allocation2 + $0xf0] sm:$0xff] %vm280, 0.0
      %313 = vst.msk [vmem:[#allocation2 + $0xf8] sm:$0xff] %vm280, 0.0
      %314 = vst.msk [vmem:[#allocation2 + $0x100] sm:$0x3] %vm283, 0.0
      %315 = vst.msk [vmem:[#allocation2 + $0x108] sm:$0xff] %vm280, 0.0
      %316 = vst.msk [vmem:[#allocation2 + $0x110] sm:$0xff] %vm280, 0.0
      %317 = vst.msk [vmem:[#allocation2 + $0x118] sm:$0x3] %vm283, 0.0
      %318 = vst.msk [vmem:[#allocation2 + $0x120] sm:$0xff] %vm280, 0.0
      %319 = vst.msk [vmem:[#allocation2 + $0x128] sm:$0xff] %vm280, 0.0
      %320 = vst.msk [vmem:[#allocation2 + $0x130] sm:$0x3] %vm283, 0.0
      %321 = vst.msk [vmem:[#allocation2 + $0x138] sm:$0xff] %vm280, 0.0
      %322 = vst.msk [vmem:[#allocation2 + $0x140] sm:$0xff] %vm280, 0.0
      %323 = vst.msk [vmem:[#allocation2 + $0x148] sm:$0x3] %vm283, 0.0
      %324 = vst.msk [vmem:[#allocation2 + $0x150] sm:$0xff] %vm280, 0.0
      %325 = vst.msk [vmem:[#allocation2 + $0x158] sm:$0xff] %vm280, 0.0
      %326 = vst.msk [vmem:[#allocation2 + $0x160] sm:$0x3] %vm283, 0.0
      %327 = vst.msk [vmem:[#allocation2 + $0x168] sm:$0xff] %vm280, 0.0
      %328 = vst.msk [vmem:[#allocation2 + $0x170] sm:$0xff] %vm280, 0.0
      %329 = vst.msk [vmem:[#allocation2 + $0x178] sm:$0x3] %vm283, 0.0
      %330 = vst.msk [vmem:[#allocation2 + $0x180] sm:$0xff] %vm280, 0.0
      %331 = vst.msk [vmem:[#allocation2 + $0x188] sm:$0xff] %vm280, 0.0
      %332 = vst.msk [vmem:[#allocation2 + $0x190] sm:$0x3] %vm283, 0.0
      %333 = vst.msk [vmem:[#allocation2 + $0x198] sm:$0xff] %vm280, 0.0
      %334 = vst.msk [vmem:[#allocation2 + $0x1a0] sm:$0xff] %vm280, 0.0
      %335 = vst.msk [vmem:[#allocation2 + $0x1a8] sm:$0x3] %vm283, 0.0
      %v336 = vld [vmem:[%s273] sm:$0xf]
      %v337 = vld [vmem:[%s273 + $0x4] sm:$0xf]
      %v338 = vld [vmem:[%s273 + $0x8] sm:$0xf]
      %v339 = vld [vmem:[%s273 + $0xc] sm:$0xf]
      %v340 = vld [vmem:[%s273 + $0x10] sm:$0xf]
      %v341 = vld [vmem:[%s273 + $0x14] sm:$0xf]
      %v342 = vld [vmem:[%s273 + $0x18] sm:$0xf]
      %v343 = vld [vmem:[%s273 + $0x1c] sm:$0xf]
      %v344 = vld [vmem:[%s273 + $0x20] sm:$0xf]
      %v345 = vld [vmem:[%s273 + $0x24] sm:$0xf]
      %v346 = vld [vmem:[%s273 + $0x28] sm:$0xf]
      %v347 = vld [vmem:[%s273 + $0x2c] sm:$0xf]
      %v348 = vld [vmem:[%s273 + $0x30] sm:$0xf]
      %v349 = vld [vmem:[%s273 + $0x34] sm:$0xf]
      %v350 = vld [vmem:[%s273 + $0x38] sm:$0xf]
      %v351 = vld [vmem:[%s273 + $0x3c] sm:$0xf]
      %v352 = vld [vmem:[%s273 + $0x40] sm:$0xf]
      %v353 = vld [vmem:[%s273 + $0x44] sm:$0xf]
      %v354 = vld [vmem:[%s273 + $0x48] sm:$0xf]
      %v355 = vld [vmem:[%s273 + $0x4c] sm:$0xf]
      %v356 = vld [vmem:[%s273 + $0x50] sm:$0xf]
      %v357 = vld [vmem:[%s273 + $0x54] sm:$0xf]
      %v358 = vld [vmem:[%s273 + $0x58] sm:$0xf]
      %v359 = vld [vmem:[%s273 + $0x5c] sm:$0xf]
      %v360 = vld [vmem:[%s273 + $0x60] sm:$0xf]
      %v361 = vld [vmem:[%s273 + $0x64] sm:$0xf]
      %v362 = vld [vmem:[%s273 + $0x68] sm:$0xf]
      %v363 = vld [vmem:[%s273 + $0x6c] sm:$0xf]
      %v364 = vld [vmem:[%s273 + $0x70] sm:$0xf]
      %v365 = vld [vmem:[%s273 + $0x74] sm:$0xf]
      %v366 = vld [vmem:[%s273 + $0x78] sm:$0xf]
      %v367 = vld [vmem:[%s273 + $0x7c] sm:$0xf]
      %v368 = vunpack.c.l.bf16 %v336
      %v369 = vunpack.c.l.bf16 %v337
      %v370 = vunpack.c.l.bf16 %v338
      %v371 = vunpack.c.l.bf16 %v339
      %v372 = vunpack.c.l.bf16 %v340
      %v373 = vunpack.c.l.bf16 %v341
      %v374 = vunpack.c.l.bf16 %v342
      %v375 = vunpack.c.l.bf16 %v343
      %v376 = vunpack.c.l.bf16 %v344
      %v377 = vunpack.c.l.bf16 %v345
      %v378 = vunpack.c.l.bf16 %v346
      %v379 = vunpack.c.l.bf16 %v347
      %v380 = vunpack.c.l.bf16 %v348
      %v381 = vunpack.c.l.bf16 %v349
      %v382 = vunpack.c.l.bf16 %v350
      %v383 = vunpack.c.l.bf16 %v351
      %v384 = vunpack.c.l.bf16 %v352
      %v385 = vunpack.c.l.bf16 %v353
      %v386 = vunpack.c.l.bf16 %v354
      %v387 = vunpack.c.l.bf16 %v355
      %v388 = vunpack.c.l.bf16 %v356
      %v389 = vunpack.c.l.bf16 %v357
      %v390 = vunpack.c.l.bf16 %v358
      %v391 = vunpack.c.l.bf16 %v359
      %v392 = vunpack.c.l.bf16 %v360
      %v393 = vunpack.c.l.bf16 %v361
      %v394 = vunpack.c.l.bf16 %v362
      %v395 = vunpack.c.l.bf16 %v363
      %v396 = vunpack.c.l.bf16 %v364
      %v397 = vunpack.c.l.bf16 %v365
      %v398 = vunpack.c.l.bf16 %v366
      %v399 = vunpack.c.l.bf16 %v367
      %s400 = scalar_lea.vmem [#allocation2], 24
      %401 = vst.msk [vmem:[%s400 + $0x1] sm:$0xff] %vm280, %v368
      %402 = vst.msk [vmem:[%s400 + $0x9] sm:$0xff] %vm280, %v369
      %403 = vst.msk [vmem:[%s400 + $0x19] sm:$0xff] %vm280, %v370
      %404 = vst.msk [vmem:[%s400 + $0x21] sm:$0xff] %vm280, %v371
      %405 = vst.msk [vmem:[%s400 + $0x31] sm:$0xff] %vm280, %v372
      %406 = vst.msk [vmem:[%s400 + $0x39] sm:$0xff] %vm280, %v373
      %407 = vst.msk [vmem:[%s400 + $0x49] sm:$0xff] %vm280, %v374
      %408 = vst.msk [vmem:[%s400 + $0x51] sm:$0xff] %vm280, %v375
      %409 = vst.msk [vmem:[%s400 + $0x61] sm:$0xff] %vm280, %v376
      %410 = vst.msk [vmem:[%s400 + $0x69] sm:$0xff] %vm280, %v377
      %411 = vst.msk [vmem:[%s400 + $0x79] sm:$0xff] %vm280, %v378
      %412 = vst.msk [vmem:[%s400 + $0x81] sm:$0xff] %vm280, %v379
      %413 = vst.msk [vmem:[%s400 + $0x91] sm:$0xff] %vm280, %v380
      %414 = vst.msk [vmem:[%s400 + $0x99] sm:$0xff] %vm280, %v381
      %415 = vst.msk [vmem:[%s400 + $0xa9] sm:$0xff] %vm280, %v382
      %416 = vst.msk [vmem:[%s400 + $0xb1] sm:$0xff] %vm280, %v383
      %417 = vst.msk [vmem:[%s400 + $0xc1] sm:$0xff] %vm280, %v384
      %418 = vst.msk [vmem:[%s400 + $0xc9] sm:$0xff] %vm280, %v385
      %419 = vst.msk [vmem:[%s400 + $0xd9] sm:$0xff] %vm280, %v386
      %420 = vst.msk [vmem:[%s400 + $0xe1] sm:$0xff] %vm280, %v387
      %421 = vst.msk [vmem:[%s400 + $0xf1] sm:$0xff] %vm280, %v388
      %422 = vst.msk [vmem:[%s400 + $0xf9] sm:$0xff] %vm280, %v389
      %423 = vst.msk [vmem:[%s400 + $0x109] sm:$0xff] %vm280, %v390
      %424 = vst.msk [vmem:[%s400 + $0x111] sm:$0xff] %vm280, %v391
      %425 = vst.msk [vmem:[%s400 + $0x121] sm:$0xff] %vm280, %v392
      %426 = vst.msk [vmem:[%s400 + $0x129] sm:$0xff] %vm280, %v393
      %427 = vst.msk [vmem:[%s400 + $0x139] sm:$0xff] %vm280, %v394
      %428 = vst.msk [vmem:[%s400 + $0x141] sm:$0xff] %vm280, %v395
      %429 = vst.msk [vmem:[%s400 + $0x151] sm:$0xff] %vm280, %v396
      %430 = vst.msk [vmem:[%s400 + $0x159] sm:$0xff] %vm280, %v397
      %431 = vst.msk [vmem:[%s400 + $0x169] sm:$0xff] %vm280, %v398
      %432 = vst.msk [vmem:[%s400 + $0x171] sm:$0xff] %vm280, %v399
      %v433 = vld [vmem:[#allocation2] sm:$0xff]
      %v434 = vld [vmem:[#allocation2 + $0x8] sm:$0xff]
      %v435 = vld [vmem:[#allocation2 + $0x18] sm:$0xff]
      %v436 = vld [vmem:[#allocation2 + $0x20] sm:$0xff]
      %v437 = vld [vmem:[#allocation2 + $0x30] sm:$0xff]
      %v438 = vld [vmem:[#allocation2 + $0x38] sm:$0xff]
      %v439 = vld [vmem:[#allocation2 + $0x48] sm:$0xff]
      %v440 = vld [vmem:[#allocation2 + $0x50] sm:$0xff]
      %v441 = vld [vmem:[#allocation2 + $0x60] sm:$0xff]
      %v442 = vld [vmem:[#allocation2 + $0x68] sm:$0xff]
      %v443 = vld [vmem:[#allocation2 + $0x78] sm:$0xff]
      %v444 = vld [vmem:[#allocation2 + $0x80] sm:$0xff]
      %v445 = vld [vmem:[#allocation2 + $0x90] sm:$0xff]
      %v446 = vld [vmem:[#allocation2 + $0x98] sm:$0xff]
      %v447 = vld [vmem:[#allocation2 + $0xa8] sm:$0xff]
      %v448 = vld [vmem:[#allocation2 + $0xb0] sm:$0xff]
      %v449 = vld [vmem:[#allocation2 + $0xc0] sm:$0xff]
      %v450 = vld [vmem:[#allocation2 + $0xc8] sm:$0xff]
      %v451 = vld [vmem:[#allocation2 + $0xd8] sm:$0xff]
      %v452 = vld [vmem:[#allocation2 + $0xe0] sm:$0xff]
      %v453 = vld [vmem:[#allocation2 + $0xf0] sm:$0xff]
      %v454 = vld [vmem:[#allocation2 + $0xf8] sm:$0xff]
      %v455 = vld [vmem:[#allocation2 + $0x108] sm:$0xff]
      %v456 = vld [vmem:[#allocation2 + $0x110] sm:$0xff]
      %v457 = vld [vmem:[#allocation2 + $0x120] sm:$0xff]
      %v458 = vld [vmem:[#allocation2 + $0x128] sm:$0xff]
      %v459 = vld [vmem:[#allocation2 + $0x138] sm:$0xff]
      %v460 = vld [vmem:[#allocation2 + $0x140] sm:$0xff]
      %v461 = vld [vmem:[#allocation2 + $0x150] sm:$0xff]
      %v462 = vld [vmem:[#allocation2 + $0x158] sm:$0xff]
      %v463 = vld [vmem:[#allocation2 + $0x168] sm:$0xff]
      %v464 = vld [vmem:[#allocation2 + $0x170] sm:$0xff]
      %465 = vst.msk [vmem:[#allocation4] sm:$0xff] %vm280, %v433
      %466 = vst.msk [vmem:[#allocation4 + $0x8] sm:$0xff] %vm280, %v434
      %467 = vst.msk [vmem:[#allocation4 + $0x10] sm:$0xff] %vm280, %v435
      %468 = vst.msk [vmem:[#allocation4 + $0x18] sm:$0xff] %vm280, %v436
      %469 = vst.msk [vmem:[#allocation4 + $0x20] sm:$0xff] %vm280, %v437
      %470 = vst.msk [vmem:[#allocation4 + $0x28] sm:$0xff] %vm280, %v438
      %471 = vst.msk [vmem:[#allocation4 + $0x30] sm:$0xff] %vm280, %v439
      %472 = vst.msk [vmem:[#allocation4 + $0x38] sm:$0xff] %vm280, %v440
      %473 = vst.msk [vmem:[#allocation4 + $0x40] sm:$0xff] %vm280, %v441
      %474 = vst.msk [vmem:[#allocation4 + $0x48] sm:$0xff] %vm280, %v442
      %475 = vst.msk [vmem:[#allocation4 + $0x50] sm:$0xff] %vm280, %v443
      %476 = vst.msk [vmem:[#allocation4 + $0x58] sm:$0xff] %vm280, %v444
      %477 = vst.msk [vmem:[#allocation4 + $0x60] sm:$0xff] %vm280, %v445
      %478 = vst.msk [vmem:[#allocation4 + $0x68] sm:$0xff] %vm280, %v446
      %479 = vst.msk [vmem:[#allocation4 + $0x70] sm:$0xff] %vm280, %v447
      %480 = vst.msk [vmem:[#allocation4 + $0x78] sm:$0xff] %vm280, %v448
      %481 = vst.msk [vmem:[#allocation4 + $0x80] sm:$0xff] %vm280, %v449
      %482 = vst.msk [vmem:[#allocation4 + $0x88] sm:$0xff] %vm280, %v450
      %483 = vst.msk [vmem:[#allocation4 + $0x90] sm:$0xff] %vm280, %v451
      %484 = vst.msk [vmem:[#allocation4 + $0x98] sm:$0xff] %vm280, %v452
      %485 = vst.msk [vmem:[#allocation4 + $0xa0] sm:$0xff] %vm280, %v453
      %486 = vst.msk [vmem:[#allocation4 + $0xa8] sm:$0xff] %vm280, %v454
      %487 = vst.msk [vmem:[#allocation4 + $0xb0] sm:$0xff] %vm280, %v455
      %488 = vst.msk [vmem:[#allocation4 + $0xb8] sm:$0xff] %vm280, %v456
      %489 = vst.msk [vmem:[#allocation4 + $0xc0] sm:$0xff] %vm280, %v457
      %490 = vst.msk [vmem:[#allocation4 + $0xc8] sm:$0xff] %vm280, %v458
      %491 = vst.msk [vmem:[#allocation4 + $0xd0] sm:$0xff] %vm280, %v459
      %492 = vst.msk [vmem:[#allocation4 + $0xd8] sm:$0xff] %vm280, %v460
      %493 = vst.msk [vmem:[#allocation4 + $0xe0] sm:$0xff] %vm280, %v461
      %494 = vst.msk [vmem:[#allocation4 + $0xe8] sm:$0xff] %vm280, %v462
      %495 = vst.msk [vmem:[#allocation4 + $0xf0] sm:$0xff] %vm280, %v463
      %496 = vst.msk [vmem:[#allocation4 + $0xf8] sm:$0xff] %vm280, %v464
      %v497 = vld [vmem:[#allocation2 + $0x1] sm:$0xff]
      %v498 = vld [vmem:[#allocation2 + $0x9] sm:$0xff]
      %v499 = vld [vmem:[#allocation2 + $0x19] sm:$0xff]
      %v500 = vld [vmem:[#allocation2 + $0x21] sm:$0xff]
      %v501 = vld [vmem:[#allocation2 + $0x31] sm:$0xff]
      %v502 = vld [vmem:[#allocation2 + $0x39] sm:$0xff]
      %v503 = vld [vmem:[#allocation2 + $0x49] sm:$0xff]
      %v504 = vld [vmem:[#allocation2 + $0x51] sm:$0xff]
      %v505 = vld [vmem:[#allocation2 + $0x61] sm:$0xff]
      %v506 = vld [vmem:[#allocation2 + $0x69] sm:$0xff]
      %v507 = vld [vmem:[#allocation2 + $0x79] sm:$0xff]
      %v508 = vld [vmem:[#allocation2 + $0x81] sm:$0xff]
      %v509 = vld [vmem:[#allocation2 + $0x91] sm:$0xff]
      %v510 = vld [vmem:[#allocation2 + $0x99] sm:$0xff]
      %v511 = vld [vmem:[#allocation2 + $0xa9] sm:$0xff]
      %v512 = vld [vmem:[#allocation2 + $0xb1] sm:$0xff]
      %v513 = vld [vmem:[#allocation2 + $0xc1] sm:$0xff]
      %v514 = vld [vmem:[#allocation2 + $0xc9] sm:$0xff]
      %v515 = vld [vmem:[#allocation2 + $0xd9] sm:$0xff]
      %v516 = vld [vmem:[#allocation2 + $0xe1] sm:$0xff]
      %v517 = vld [vmem:[#allocation2 + $0xf1] sm:$0xff]
      %v518 = vld [vmem:[#allocation2 + $0xf9] sm:$0xff]
      %v519 = vld [vmem:[#allocation2 + $0x109] sm:$0xff]
      %v520 = vld [vmem:[#allocation2 + $0x111] sm:$0xff]
      %v521 = vld [vmem:[#allocation2 + $0x121] sm:$0xff]
      %v522 = vld [vmem:[#allocation2 + $0x129] sm:$0xff]
      %v523 = vld [vmem:[#allocation2 + $0x139] sm:$0xff]
      %v524 = vld [vmem:[#allocation2 + $0x141] sm:$0xff]
      %v525 = vld [vmem:[#allocation2 + $0x151] sm:$0xff]
      %v526 = vld [vmem:[#allocation2 + $0x159] sm:$0xff]
      %v527 = vld [vmem:[#allocation2 + $0x169] sm:$0xff]
      %v528 = vld [vmem:[#allocation2 + $0x171] sm:$0xff]
      %561 = vrot.lane.b32.xlu0 %v497, 4
      %v562 = vpop.permute.xlu0 %561
      %563 = vrot.lane.b32.xlu0 %v498, 4
      %v564 = vpop.permute.xlu0 %563
      %565 = vrot.lane.b32.xlu0 %v499, 4
      %v566 = vpop.permute.xlu0 %565
      %567 = vrot.lane.b32.xlu0 %v500, 4
      %v568 = vpop.permute.xlu0 %567
      %569 = vrot.lane.b32.xlu0 %v501, 4
      %v570 = vpop.permute.xlu0 %569
      %571 = vrot.lane.b32.xlu0 %v502, 4
      %v572 = vpop.permute.xlu0 %571
      %573 = vrot.lane.b32.xlu0 %v503, 4
      %v574 = vpop.permute.xlu0 %573
      %575 = vrot.lane.b32.xlu0 %v504, 4
      %v576 = vpop.permute.xlu0 %575
      %577 = vrot.lane.b32.xlu0 %v505, 4
      %v578 = vpop.permute.xlu0 %577
      %579 = vrot.lane.b32.xlu0 %v506, 4
      %v580 = vpop.permute.xlu0 %579
      %581 = vrot.lane.b32.xlu0 %v507, 4
      %v582 = vpop.permute.xlu0 %581
      %583 = vrot.lane.b32.xlu0 %v508, 4
      %v584 = vpop.permute.xlu0 %583
      %585 = vrot.lane.b32.xlu0 %v509, 4
      %v586 = vpop.permute.xlu0 %585
      %587 = vrot.lane.b32.xlu0 %v510, 4
      %v588 = vpop.permute.xlu0 %587
      %589 = vrot.lane.b32.xlu0 %v511, 4
      %v590 = vpop.permute.xlu0 %589
      %591 = vrot.lane.b32.xlu0 %v512, 4
      %v592 = vpop.permute.xlu0 %591
      %593 = vrot.lane.b32.xlu0 %v513, 4
      %v594 = vpop.permute.xlu0 %593
      %595 = vrot.lane.b32.xlu0 %v514, 4
      %v596 = vpop.permute.xlu0 %595
      %597 = vrot.lane.b32.xlu0 %v515, 4
      %v598 = vpop.permute.xlu0 %597
      %599 = vrot.lane.b32.xlu0 %v516, 4
      %v600 = vpop.permute.xlu0 %599
      %601 = vrot.lane.b32.xlu0 %v517, 4
      %v602 = vpop.permute.xlu0 %601
      %603 = vrot.lane.b32.xlu0 %v518, 4
      %v604 = vpop.permute.xlu0 %603
      %605 = vrot.lane.b32.xlu0 %v519, 4
      %v606 = vpop.permute.xlu0 %605
      %607 = vrot.lane.b32.xlu0 %v520, 4
      %v608 = vpop.permute.xlu0 %607
      %609 = vrot.lane.b32.xlu0 %v521, 4
      %v610 = vpop.permute.xlu0 %609
      %611 = vrot.lane.b32.xlu0 %v522, 4
      %v612 = vpop.permute.xlu0 %611
      %613 = vrot.lane.b32.xlu0 %v523, 4
      %v614 = vpop.permute.xlu0 %613
      %615 = vrot.lane.b32.xlu0 %v524, 4
      %v616 = vpop.permute.xlu0 %615
      %617 = vrot.lane.b32.xlu0 %v525, 4
      %v618 = vpop.permute.xlu0 %617
      %619 = vrot.lane.b32.xlu0 %v526, 4
      %v620 = vpop.permute.xlu0 %619
      %621 = vrot.lane.b32.xlu0 %v527, 4
      %v622 = vpop.permute.xlu0 %621
      %623 = vrot.lane.b32.xlu0 %v528, 4
      %v624 = vpop.permute.xlu0 %623
      %vm657 = vcmask 64544
      %658 = vst.msk [vmem:[#allocation4] sm:$0xff] %vm657, %v562
      %659 = vst.msk [vmem:[#allocation4 + $0x8] sm:$0xff] %vm657, %v564
      %660 = vst.msk [vmem:[#allocation4 + $0x10] sm:$0xff] %vm657, %v566
      %661 = vst.msk [vmem:[#allocation4 + $0x18] sm:$0xff] %vm657, %v568
      %662 = vst.msk [vmem:[#allocation4 + $0x20] sm:$0xff] %vm657, %v570
      %663 = vst.msk [vmem:[#allocation4 + $0x28] sm:$0xff] %vm657, %v572
      %664 = vst.msk [vmem:[#allocation4 + $0x30] sm:$0xff] %vm657, %v574
      %665 = vst.msk [vmem:[#allocation4 + $0x38] sm:$0xff] %vm657, %v576
      %666 = vst.msk [vmem:[#allocation4 + $0x40] sm:$0xff] %vm657, %v578
      %667 = vst.msk [vmem:[#allocation4 + $0x48] sm:$0xff] %vm657, %v580
      %668 = vst.msk [vmem:[#allocation4 + $0x50] sm:$0xff] %vm657, %v582
      %669 = vst.msk [vmem:[#allocation4 + $0x58] sm:$0xff] %vm657, %v584
      %670 = vst.msk [vmem:[#allocation4 + $0x60] sm:$0xff] %vm657, %v586
      %671 = vst.msk [vmem:[#allocation4 + $0x68] sm:$0xff] %vm657, %v588
      %672 = vst.msk [vmem:[#allocation4 + $0x70] sm:$0xff] %vm657, %v590
      %673 = vst.msk [vmem:[#allocation4 + $0x78] sm:$0xff] %vm657, %v592
      %674 = vst.msk [vmem:[#allocation4 + $0x80] sm:$0xff] %vm657, %v594
      %675 = vst.msk [vmem:[#allocation4 + $0x88] sm:$0xff] %vm657, %v596
      %676 = vst.msk [vmem:[#allocation4 + $0x90] sm:$0xff] %vm657, %v598
      %677 = vst.msk [vmem:[#allocation4 + $0x98] sm:$0xff] %vm657, %v600
      %678 = vst.msk [vmem:[#allocation4 + $0xa0] sm:$0xff] %vm657, %v602
      %679 = vst.msk [vmem:[#allocation4 + $0xa8] sm:$0xff] %vm657, %v604
      %680 = vst.msk [vmem:[#allocation4 + $0xb0] sm:$0xff] %vm657, %v606
      %681 = vst.msk [vmem:[#allocation4 + $0xb8] sm:$0xff] %vm657, %v608
      %682 = vst.msk [vmem:[#allocation4 + $0xc0] sm:$0xff] %vm657, %v610
      %683 = vst.msk [vmem:[#allocation4 + $0xc8] sm:$0xff] %vm657, %v612
      %684 = vst.msk [vmem:[#allocation4 + $0xd0] sm:$0xff] %vm657, %v614
      %685 = vst.msk [vmem:[#allocation4 + $0xd8] sm:$0xff] %vm657, %v616
      %686 = vst.msk [vmem:[#allocation4 + $0xe0] sm:$0xff] %vm657, %v618
      %687 = vst.msk [vmem:[#allocation4 + $0xe8] sm:$0xff] %vm657, %v620
      %688 = vst.msk [vmem:[#allocation4 + $0xf0] sm:$0xff] %vm657, %v622
      %689 = vst.msk [vmem:[#allocation4 + $0xf8] sm:$0xff] %vm657, %v624
      %v690 = vld [vmem:[#allocation2 + $0x2] sm:$0xff]
      %v691 = vld [vmem:[#allocation2 + $0xa] sm:$0xff]
      %v692 = vld [vmem:[#allocation2 + $0x1a] sm:$0xff]
      %v693 = vld [vmem:[#allocation2 + $0x22] sm:$0xff]
      %v694 = vld [vmem:[#allocation2 + $0x32] sm:$0xff]
      %v695 = vld [vmem:[#allocation2 + $0x3a] sm:$0xff]
      %v696 = vld [vmem:[#allocation2 + $0x4a] sm:$0xff]
      %v697 = vld [vmem:[#allocation2 + $0x52] sm:$0xff]
      %v698 = vld [vmem:[#allocation2 + $0x62] sm:$0xff]
      %v699 = vld [vmem:[#allocation2 + $0x6a] sm:$0xff]
      %v700 = vld [vmem:[#allocation2 + $0x7a] sm:$0xff]
      %v701 = vld [vmem:[#allocation2 + $0x82] sm:$0xff]
      %v702 = vld [vmem:[#allocation2 + $0x92] sm:$0xff]
      %v703 = vld [vmem:[#allocation2 + $0x9a] sm:$0xff]
      %v704 = vld [vmem:[#allocation2 + $0xaa] sm:$0xff]
      %v705 = vld [vmem:[#allocation2 + $0xb2] sm:$0xff]
      %v706 = vld [vmem:[#allocation2 + $0xc2] sm:$0xff]
      %v707 = vld [vmem:[#allocation2 + $0xca] sm:$0xff]
      %v708 = vld [vmem:[#allocation2 + $0xda] sm:$0xff]
      %v709 = vld [vmem:[#allocation2 + $0xe2] sm:$0xff]
      %v710 = vld [vmem:[#allocation2 + $0xf2] sm:$0xff]
      %v711 = vld [vmem:[#allocation2 + $0xfa] sm:$0xff]
      %v712 = vld [vmem:[#allocation2 + $0x10a] sm:$0xff]
      %v713 = vld [vmem:[#allocation2 + $0x112] sm:$0xff]
      %v714 = vld [vmem:[#allocation2 + $0x122] sm:$0xff]
      %v715 = vld [vmem:[#allocation2 + $0x12a] sm:$0xff]
      %v716 = vld [vmem:[#allocation2 + $0x13a] sm:$0xff]
      %v717 = vld [vmem:[#allocation2 + $0x142] sm:$0xff]
      %v718 = vld [vmem:[#allocation2 + $0x152] sm:$0xff]
      %v719 = vld [vmem:[#allocation2 + $0x15a] sm:$0xff]
      %v720 = vld [vmem:[#allocation2 + $0x16a] sm:$0xff]
      %v721 = vld [vmem:[#allocation2 + $0x172] sm:$0xff]
      %754 = vrot.lane.b32.xlu0 %v690, 8
      %v755 = vpop.permute.xlu0 %754
      %756 = vrot.lane.b32.xlu0 %v691, 8
      %v757 = vpop.permute.xlu0 %756
      %758 = vrot.lane.b32.xlu0 %v692, 8
      %v759 = vpop.permute.xlu0 %758
      %760 = vrot.lane.b32.xlu0 %v693, 8
      %v761 = vpop.permute.xlu0 %760
      %762 = vrot.lane.b32.xlu0 %v694, 8
      %v763 = vpop.permute.xlu0 %762
      %764 = vrot.lane.b32.xlu0 %v695, 8
      %v765 = vpop.permute.xlu0 %764
      %766 = vrot.lane.b32.xlu0 %v696, 8
      %v767 = vpop.permute.xlu0 %766
      %768 = vrot.lane.b32.xlu0 %v697, 8
      %v769 = vpop.permute.xlu0 %768
      %770 = vrot.lane.b32.xlu0 %v698, 8
      %v771 = vpop.permute.xlu0 %770
      %772 = vrot.lane.b32.xlu0 %v699, 8
      %v773 = vpop.permute.xlu0 %772
      %774 = vrot.lane.b32.xlu0 %v700, 8
      %v775 = vpop.permute.xlu0 %774
      %776 = vrot.lane.b32.xlu0 %v701, 8
      %v777 = vpop.permute.xlu0 %776
      %778 = vrot.lane.b32.xlu0 %v702, 8
      %v779 = vpop.permute.xlu0 %778
      %780 = vrot.lane.b32.xlu0 %v703, 8
      %v781 = vpop.permute.xlu0 %780
      %782 = vrot.lane.b32.xlu0 %v704, 8
      %v783 = vpop.permute.xlu0 %782
      %784 = vrot.lane.b32.xlu0 %v705, 8
      %v785 = vpop.permute.xlu0 %784
      %786 = vrot.lane.b32.xlu0 %v706, 8
      %v787 = vpop.permute.xlu0 %786
      %788 = vrot.lane.b32.xlu0 %v707, 8
      %v789 = vpop.permute.xlu0 %788
      %790 = vrot.lane.b32.xlu0 %v708, 8
      %v791 = vpop.permute.xlu0 %790
      %792 = vrot.lane.b32.xlu0 %v709, 8
      %v793 = vpop.permute.xlu0 %792
      %794 = vrot.lane.b32.xlu0 %v710, 8
      %v795 = vpop.permute.xlu0 %794
      %796 = vrot.lane.b32.xlu0 %v711, 8
      %v797 = vpop.permute.xlu0 %796
      %798 = vrot.lane.b32.xlu0 %v712, 8
      %v799 = vpop.permute.xlu0 %798
      %800 = vrot.lane.b32.xlu0 %v713, 8
      %v801 = vpop.permute.xlu0 %800
      %802 = vrot.lane.b32.xlu0 %v714, 8
      %v803 = vpop.permute.xlu0 %802
      %804 = vrot.lane.b32.xlu0 %v715, 8
      %v805 = vpop.permute.xlu0 %804
      %806 = vrot.lane.b32.xlu0 %v716, 8
      %v807 = vpop.permute.xlu0 %806
      %808 = vrot.lane.b32.xlu0 %v717, 8
      %v809 = vpop.permute.xlu0 %808
      %810 = vrot.lane.b32.xlu0 %v718, 8
      %v811 = vpop.permute.xlu0 %810
      %812 = vrot.lane.b32.xlu0 %v719, 8
      %v813 = vpop.permute.xlu0 %812
      %814 = vrot.lane.b32.xlu0 %v720, 8
      %v815 = vpop.permute.xlu0 %814
      %816 = vrot.lane.b32.xlu0 %v721, 8
      %v817 = vpop.permute.xlu0 %816
      %vm850 = vcmask 97344
      %851 = vst.msk [vmem:[#allocation4] sm:$0xff] %vm850, %v755
      %852 = vst.msk [vmem:[#allocation4 + $0x8] sm:$0xff] %vm850, %v757
      %853 = vst.msk [vmem:[#allocation4 + $0x10] sm:$0xff] %vm850, %v759
      %854 = vst.msk [vmem:[#allocation4 + $0x18] sm:$0xff] %vm850, %v761
      %855 = vst.msk [vmem:[#allocation4 + $0x20] sm:$0xff] %vm850, %v763
      %856 = vst.msk [vmem:[#allocation4 + $0x28] sm:$0xff] %vm850, %v765
      %857 = vst.msk [vmem:[#allocation4 + $0x30] sm:$0xff] %vm850, %v767
      %858 = vst.msk [vmem:[#allocation4 + $0x38] sm:$0xff] %vm850, %v769
      %859 = vst.msk [vmem:[#allocation4 + $0x40] sm:$0xff] %vm850, %v771
      %860 = vst.msk [vmem:[#allocation4 + $0x48] sm:$0xff] %vm850, %v773
      %861 = vst.msk [vmem:[#allocation4 + $0x50] sm:$0xff] %vm850, %v775
      %862 = vst.msk [vmem:[#allocation4 + $0x58] sm:$0xff] %vm850, %v777
      %863 = vst.msk [vmem:[#allocation4 + $0x60] sm:$0xff] %vm850, %v779
      %864 = vst.msk [vmem:[#allocation4 + $0x68] sm:$0xff] %vm850, %v781
      %865 = vst.msk [vmem:[#allocation4 + $0x70] sm:$0xff] %vm850, %v783
      %866 = vst.msk [vmem:[#allocation4 + $0x78] sm:$0xff] %vm850, %v785
      %867 = vst.msk [vmem:[#allocation4 + $0x80] sm:$0xff] %vm850, %v787
      %868 = vst.msk [vmem:[#allocation4 + $0x88] sm:$0xff] %vm850, %v789
      %869 = vst.msk [vmem:[#allocation4 + $0x90] sm:$0xff] %vm850, %v791
      %870 = vst.msk [vmem:[#allocation4 + $0x98] sm:$0xff] %vm850, %v793
      %871 = vst.msk [vmem:[#allocation4 + $0xa0] sm:$0xff] %vm850, %v795
      %872 = vst.msk [vmem:[#allocation4 + $0xa8] sm:$0xff] %vm850, %v797
      %873 = vst.msk [vmem:[#allocation4 + $0xb0] sm:$0xff] %vm850, %v799
      %874 = vst.msk [vmem:[#allocation4 + $0xb8] sm:$0xff] %vm850, %v801
      %875 = vst.msk [vmem:[#allocation4 + $0xc0] sm:$0xff] %vm850, %v803
      %876 = vst.msk [vmem:[#allocation4 + $0xc8] sm:$0xff] %vm850, %v805
      %877 = vst.msk [vmem:[#allocation4 + $0xd0] sm:$0xff] %vm850, %v807
      %878 = vst.msk [vmem:[#allocation4 + $0xd8] sm:$0xff] %vm850, %v809
      %879 = vst.msk [vmem:[#allocation4 + $0xe0] sm:$0xff] %vm850, %v811
      %880 = vst.msk [vmem:[#allocation4 + $0xe8] sm:$0xff] %vm850, %v813
      %881 = vst.msk [vmem:[#allocation4 + $0xf0] sm:$0xff] %vm850, %v815
      %882 = vst.msk [vmem:[#allocation4 + $0xf8] sm:$0xff] %vm850, %v817
      %v883 = vld [vmem:[%s400] sm:$0xff]
      %v884 = vld [vmem:[%s400 + $0x8] sm:$0xff]
      %v885 = vld [vmem:[%s400 + $0x18] sm:$0xff]
      %v886 = vld [vmem:[%s400 + $0x20] sm:$0xff]
      %v887 = vld [vmem:[%s400 + $0x30] sm:$0xff]
      %v888 = vld [vmem:[%s400 + $0x38] sm:$0xff]
      %v889 = vld [vmem:[%s400 + $0x48] sm:$0xff]
      %v890 = vld [vmem:[%s400 + $0x50] sm:$0xff]
      %v891 = vld [vmem:[%s400 + $0x60] sm:$0xff]
      %v892 = vld [vmem:[%s400 + $0x68] sm:$0xff]
      %v893 = vld [vmem:[%s400 + $0x78] sm:$0xff]
      %v894 = vld [vmem:[%s400 + $0x80] sm:$0xff]
      %v895 = vld [vmem:[%s400 + $0x90] sm:$0xff]
      %v896 = vld [vmem:[%s400 + $0x98] sm:$0xff]
      %v897 = vld [vmem:[%s400 + $0xa8] sm:$0xff]
      %v898 = vld [vmem:[%s400 + $0xb0] sm:$0xff]
      %v899 = vld [vmem:[%s400 + $0xc0] sm:$0xff]
      %v900 = vld [vmem:[%s400 + $0xc8] sm:$0xff]
      %v901 = vld [vmem:[%s400 + $0xd8] sm:$0xff]
      %v902 = vld [vmem:[%s400 + $0xe0] sm:$0xff]
      %v903 = vld [vmem:[%s400 + $0xf0] sm:$0xff]
      %v904 = vld [vmem:[%s400 + $0xf8] sm:$0xff]
      %v905 = vld [vmem:[%s400 + $0x108] sm:$0xff]
      %v906 = vld [vmem:[%s400 + $0x110] sm:$0xff]
      %v907 = vld [vmem:[%s400 + $0x120] sm:$0xff]
      %v908 = vld [vmem:[%s400 + $0x128] sm:$0xff]
      %v909 = vld [vmem:[%s400 + $0x138] sm:$0xff]
      %v910 = vld [vmem:[%s400 + $0x140] sm:$0xff]
      %v911 = vld [vmem:[%s400 + $0x150] sm:$0xff]
      %v912 = vld [vmem:[%s400 + $0x158] sm:$0xff]
      %v913 = vld [vmem:[%s400 + $0x168] sm:$0xff]
      %v914 = vld [vmem:[%s400 + $0x170] sm:$0xff]
      %947 = vrot.lane.b32.xlu0 %v883, 12
      %v948 = vpop.permute.xlu0 %947
      %949 = vrot.lane.b32.xlu0 %v884, 12
      %v950 = vpop.permute.xlu0 %949
      %951 = vrot.lane.b32.xlu0 %v885, 12
      %v952 = vpop.permute.xlu0 %951
      %953 = vrot.lane.b32.xlu0 %v886, 12
      %v954 = vpop.permute.xlu0 %953
      %955 = vrot.lane.b32.xlu0 %v887, 12
      %v956 = vpop.permute.xlu0 %955
      %957 = vrot.lane.b32.xlu0 %v888, 12
      %v958 = vpop.permute.xlu0 %957
      %959 = vrot.lane.b32.xlu0 %v889, 12
      %v960 = vpop.permute.xlu0 %959
      %961 = vrot.lane.b32.xlu0 %v890, 12
      %v962 = vpop.permute.xlu0 %961
      %963 = vrot.lane.b32.xlu0 %v891, 12
      %v964 = vpop.permute.xlu0 %963
      %965 = vrot.lane.b32.xlu0 %v892, 12
      %v966 = vpop.permute.xlu0 %965
      %967 = vrot.lane.b32.xlu0 %v893, 12
      %v968 = vpop.permute.xlu0 %967
      %969 = vrot.lane.b32.xlu0 %v894, 12
      %v970 = vpop.permute.xlu0 %969
      %971 = vrot.lane.b32.xlu0 %v895, 12
      %v972 = vpop.permute.xlu0 %971
      %973 = vrot.lane.b32.xlu0 %v896, 12
      %v974 = vpop.permute.xlu0 %973
      %975 = vrot.lane.b32.xlu0 %v897, 12
      %v976 = vpop.permute.xlu0 %975
      %977 = vrot.lane.b32.xlu0 %v898, 12
      %v978 = vpop.permute.xlu0 %977
      %979 = vrot.lane.b32.xlu0 %v899, 12
      %v980 = vpop.permute.xlu0 %979
      %981 = vrot.lane.b32.xlu0 %v900, 12
      %v982 = vpop.permute.xlu0 %981
      %983 = vrot.lane.b32.xlu0 %v901, 12
      %v984 = vpop.permute.xlu0 %983
      %985 = vrot.lane.b32.xlu0 %v902, 12
      %v986 = vpop.permute.xlu0 %985
      %987 = vrot.lane.b32.xlu0 %v903, 12
      %v988 = vpop.permute.xlu0 %987
      %989 = vrot.lane.b32.xlu0 %v904, 12
      %v990 = vpop.permute.xlu0 %989
      %991 = vrot.lane.b32.xlu0 %v905, 12
      %v992 = vpop.permute.xlu0 %991
      %993 = vrot.lane.b32.xlu0 %v906, 12
      %v994 = vpop.permute.xlu0 %993
      %995 = vrot.lane.b32.xlu0 %v907, 12
      %v996 = vpop.permute.xlu0 %995
      %997 = vrot.lane.b32.xlu0 %v908, 12
      %v998 = vpop.permute.xlu0 %997
      %999 = vrot.lane.b32.xlu0 %v909, 12
      %v1000 = vpop.permute.xlu0 %999
      %1001 = vrot.lane.b32.xlu0 %v910, 12
      %v1002 = vpop.permute.xlu0 %1001
      %1003 = vrot.lane.b32.xlu0 %v911, 12
      %v1004 = vpop.permute.xlu0 %1003
      %1005 = vrot.lane.b32.xlu0 %v912, 12
      %v1006 = vpop.permute.xlu0 %1005
      %1007 = vrot.lane.b32.xlu0 %v913, 12
      %v1008 = vpop.permute.xlu0 %1007
      %1009 = vrot.lane.b32.xlu0 %v914, 12
      %v1010 = vpop.permute.xlu0 %1009
      %vm1043 = vcmask 130144
      %1044 = vst.msk [vmem:[#allocation4] sm:$0xff] %vm1043, %v948
      %1045 = vst.msk [vmem:[#allocation4 + $0x8] sm:$0xff] %vm1043, %v950
      %1046 = vst.msk [vmem:[#allocation4 + $0x10] sm:$0xff] %vm1043, %v952
      %1047 = vst.msk [vmem:[#allocation4 + $0x18] sm:$0xff] %vm1043, %v954
      %1048 = vst.msk [vmem:[#allocation4 + $0x20] sm:$0xff] %vm1043, %v956
      %1049 = vst.msk [vmem:[#allocation4 + $0x28] sm:$0xff] %vm1043, %v958
      %1050 = vst.msk [vmem:[#allocation4 + $0x30] sm:$0xff] %vm1043, %v960
      %1051 = vst.msk [vmem:[#allocation4 + $0x38] sm:$0xff] %vm1043, %v962
      %1052 = vst.msk [vmem:[#allocation4 + $0x40] sm:$0xff] %vm1043, %v964
      %1053 = vst.msk [vmem:[#allocation4 + $0x48] sm:$0xff] %vm1043, %v966
      %1054 = vst.msk [vmem:[#allocation4 + $0x50] sm:$0xff] %vm1043, %v968
      %1055 = vst.msk [vmem:[#allocation4 + $0x58] sm:$0xff] %vm1043, %v970
      %1056 = vst.msk [vmem:[#allocation4 + $0x60] sm:$0xff] %vm1043, %v972
      %1057 = vst.msk [vmem:[#allocation4 + $0x68] sm:$0xff] %vm1043, %v974
      %1058 = vst.msk [vmem:[#allocation4 + $0x70] sm:$0xff] %vm1043, %v976
      %1059 = vst.msk [vmem:[#allocation4 + $0x78] sm:$0xff] %vm1043, %v978
      %1060 = vst.msk [vmem:[#allocation4 + $0x80] sm:$0xff] %vm1043, %v980
      %1061 = vst.msk [vmem:[#allocation4 + $0x88] sm:$0xff] %vm1043, %v982
      %1062 = vst.msk [vmem:[#allocation4 + $0x90] sm:$0xff] %vm1043, %v984
      %1063 = vst.msk [vmem:[#allocation4 + $0x98] sm:$0xff] %vm1043, %v986
      %1064 = vst.msk [vmem:[#allocation4 + $0xa0] sm:$0xff] %vm1043, %v988
      %1065 = vst.msk [vmem:[#allocation4 + $0xa8] sm:$0xff] %vm1043, %v990
      %1066 = vst.msk [vmem:[#allocation4 + $0xb0] sm:$0xff] %vm1043, %v992
      %1067 = vst.msk [vmem:[#allocation4 + $0xb8] sm:$0xff] %vm1043, %v994
      %1068 = vst.msk [vmem:[#allocation4 + $0xc0] sm:$0xff] %vm1043, %v996
      %1069 = vst.msk [vmem:[#allocation4 + $0xc8] sm:$0xff] %vm1043, %v998
      %1070 = vst.msk [vmem:[#allocation4 + $0xd0] sm:$0xff] %vm1043, %v1000
      %1071 = vst.msk [vmem:[#allocation4 + $0xd8] sm:$0xff] %vm1043, %v1002
      %1072 = vst.msk [vmem:[#allocation4 + $0xe0] sm:$0xff] %vm1043, %v1004
      %1073 = vst.msk [vmem:[#allocation4 + $0xe8] sm:$0xff] %vm1043, %v1006
      %1074 = vst.msk [vmem:[#allocation4 + $0xf0] sm:$0xff] %vm1043, %v1008
      %1075 = vst.msk [vmem:[#allocation4 + $0xf8] sm:$0xff] %vm1043, %v1010
      %v1076 = vld [vmem:[%s400 + $0x1] sm:$0xff]
      %v1077 = vld [vmem:[%s400 + $0x9] sm:$0xff]
      %v1078 = vld [vmem:[%s400 + $0x19] sm:$0xff]
      %v1079 = vld [vmem:[%s400 + $0x21] sm:$0xff]
      %v1080 = vld [vmem:[%s400 + $0x31] sm:$0xff]
      %v1081 = vld [vmem:[%s400 + $0x39] sm:$0xff]
      %v1082 = vld [vmem:[%s400 + $0x49] sm:$0xff]
      %v1083 = vld [vmem:[%s400 + $0x51] sm:$0xff]
      %v1084 = vld [vmem:[%s400 + $0x61] sm:$0xff]
      %v1085 = vld [vmem:[%s400 + $0x69] sm:$0xff]
      %v1086 = vld [vmem:[%s400 + $0x79] sm:$0xff]
      %v1087 = vld [vmem:[%s400 + $0x81] sm:$0xff]
      %v1088 = vld [vmem:[%s400 + $0x91] sm:$0xff]
      %v1089 = vld [vmem:[%s400 + $0x99] sm:$0xff]
      %v1090 = vld [vmem:[%s400 + $0xa9] sm:$0xff]
      %v1091 = vld [vmem:[%s400 + $0xb1] sm:$0xff]
      %v1092 = vld [vmem:[%s400 + $0xc1] sm:$0xff]
      %v1093 = vld [vmem:[%s400 + $0xc9] sm:$0xff]
      %v1094 = vld [vmem:[%s400 + $0xd9] sm:$0xff]
      %v1095 = vld [vmem:[%s400 + $0xe1] sm:$0xff]
      %v1096 = vld [vmem:[%s400 + $0xf1] sm:$0xff]
      %v1097 = vld [vmem:[%s400 + $0xf9] sm:$0xff]
      %v1098 = vld [vmem:[%s400 + $0x109] sm:$0xff]
      %v1099 = vld [vmem:[%s400 + $0x111] sm:$0xff]
      %v1100 = vld [vmem:[%s400 + $0x121] sm:$0xff]
      %v1101 = vld [vmem:[%s400 + $0x129] sm:$0xff]
      %v1102 = vld [vmem:[%s400 + $0x139] sm:$0xff]
      %v1103 = vld [vmem:[%s400 + $0x141] sm:$0xff]
      %v1104 = vld [vmem:[%s400 + $0x151] sm:$0xff]
      %v1105 = vld [vmem:[%s400 + $0x159] sm:$0xff]
      %v1106 = vld [vmem:[%s400 + $0x169] sm:$0xff]
      %v1107 = vld [vmem:[%s400 + $0x171] sm:$0xff]
      %1140 = vrot.lane.b32.xlu0 %v1076, 16
      %v1141 = vpop.permute.xlu0 %1140
      %1142 = vrot.lane.b32.xlu0 %v1077, 16
      %v1143 = vpop.permute.xlu0 %1142
      %1144 = vrot.lane.b32.xlu0 %v1078, 16
      %v1145 = vpop.permute.xlu0 %1144
      %1146 = vrot.lane.b32.xlu0 %v1079, 16
      %v1147 = vpop.permute.xlu0 %1146
      %1148 = vrot.lane.b32.xlu0 %v1080, 16
      %v1149 = vpop.permute.xlu0 %1148
      %1150 = vrot.lane.b32.xlu0 %v1081, 16
      %v1151 = vpop.permute.xlu0 %1150
      %1152 = vrot.lane.b32.xlu0 %v1082, 16
      %v1153 = vpop.permute.xlu0 %1152
      %1154 = vrot.lane.b32.xlu0 %v1083, 16
      %v1155 = vpop.permute.xlu0 %1154
      %1156 = vrot.lane.b32.xlu0 %v1084, 16
      %v1157 = vpop.permute.xlu0 %1156
      %1158 = vrot.lane.b32.xlu0 %v1085, 16
      %v1159 = vpop.permute.xlu0 %1158
      %1160 = vrot.lane.b32.xlu0 %v1086, 16
      %v1161 = vpop.permute.xlu0 %1160
      %1162 = vrot.lane.b32.xlu0 %v1087, 16
      %v1163 = vpop.permute.xlu0 %1162
      %1164 = vrot.lane.b32.xlu0 %v1088, 16
      %v1165 = vpop.permute.xlu0 %1164
      %1166 = vrot.lane.b32.xlu0 %v1089, 16
      %v1167 = vpop.permute.xlu0 %1166
      %1168 = vrot.lane.b32.xlu0 %v1090, 16
      %v1169 = vpop.permute.xlu0 %1168
      %1170 = vrot.lane.b32.xlu0 %v1091, 16
      %v1171 = vpop.permute.xlu0 %1170
      %1172 = vrot.lane.b32.xlu0 %v1092, 16
      %v1173 = vpop.permute.xlu0 %1172
      %1174 = vrot.lane.b32.xlu0 %v1093, 16
      %v1175 = vpop.permute.xlu0 %1174
      %1176 = vrot.lane.b32.xlu0 %v1094, 16
      %v1177 = vpop.permute.xlu0 %1176
      %1178 = vrot.lane.b32.xlu0 %v1095, 16
      %v1179 = vpop.permute.xlu0 %1178
      %1180 = vrot.lane.b32.xlu0 %v1096, 16
      %v1181 = vpop.permute.xlu0 %1180
      %1182 = vrot.lane.b32.xlu0 %v1097, 16
      %v1183 = vpop.permute.xlu0 %1182
      %1184 = vrot.lane.b32.xlu0 %v1098, 16
      %v1185 = vpop.permute.xlu0 %1184
      %1186 = vrot.lane.b32.xlu0 %v1099, 16
      %v1187 = vpop.permute.xlu0 %1186
      %1188 = vrot.lane.b32.xlu0 %v1100, 16
      %v1189 = vpop.permute.xlu0 %1188
      %1190 = vrot.lane.b32.xlu0 %v1101, 16
      %v1191 = vpop.permute.xlu0 %1190
      %1192 = vrot.lane.b32.xlu0 %v1102, 16
      %v1193 = vpop.permute.xlu0 %1192
      %1194 = vrot.lane.b32.xlu0 %v1103, 16
      %v1195 = vpop.permute.xlu0 %1194
      %1196 = vrot.lane.b32.xlu0 %v1104, 16
      %v1197 = vpop.permute.xlu0 %1196
      %1198 = vrot.lane.b32.xlu0 %v1105, 16
      %v1199 = vpop.permute.xlu0 %1198
      %1200 = vrot.lane.b32.xlu0 %v1106, 16
      %v1201 = vpop.permute.xlu0 %1200
      %1202 = vrot.lane.b32.xlu0 %v1107, 16
      %v1203 = vpop.permute.xlu0 %1202
      %vm1236 = vcmask 162944
      %1237 = vst.msk [vmem:[#allocation4] sm:$0xff] %vm1236, %v1141
      %1238 = vst.msk [vmem:[#allocation4 + $0x8] sm:$0xff] %vm1236, %v1143
      %1239 = vst.msk [vmem:[#allocation4 + $0x10] sm:$0xff] %vm1236, %v1145
      %1240 = vst.msk [vmem:[#allocation4 + $0x18] sm:$0xff] %vm1236, %v1147
      %1241 = vst.msk [vmem:[#allocation4 + $0x20] sm:$0xff] %vm1236, %v1149
      %1242 = vst.msk [vmem:[#allocation4 + $0x28] sm:$0xff] %vm1236, %v1151
      %1243 = vst.msk [vmem:[#allocation4 + $0x30] sm:$0xff] %vm1236, %v1153
      %1244 = vst.msk [vmem:[#allocation4 + $0x38] sm:$0xff] %vm1236, %v1155
      %1245 = vst.msk [vmem:[#allocation4 + $0x40] sm:$0xff] %vm1236, %v1157
      %1246 = vst.msk [vmem:[#allocation4 + $0x48] sm:$0xff] %vm1236, %v1159
      %1247 = vst.msk [vmem:[#allocation4 + $0x50] sm:$0xff] %vm1236, %v1161
      %1248 = vst.msk [vmem:[#allocation4 + $0x58] sm:$0xff] %vm1236, %v1163
      %1249 = vst.msk [vmem:[#allocation4 + $0x60] sm:$0xff] %vm1236, %v1165
      %1250 = vst.msk [vmem:[#allocation4 + $0x68] sm:$0xff] %vm1236, %v1167
      %1251 = vst.msk [vmem:[#allocation4 + $0x70] sm:$0xff] %vm1236, %v1169
      %1252 = vst.msk [vmem:[#allocation4 + $0x78] sm:$0xff] %vm1236, %v1171
      %1253 = vst.msk [vmem:[#allocation4 + $0x80] sm:$0xff] %vm1236, %v1173
      %1254 = vst.msk [vmem:[#allocation4 + $0x88] sm:$0xff] %vm1236, %v1175
      %1255 = vst.msk [vmem:[#allocation4 + $0x90] sm:$0xff] %vm1236, %v1177
      %1256 = vst.msk [vmem:[#allocation4 + $0x98] sm:$0xff] %vm1236, %v1179
      %1257 = vst.msk [vmem:[#allocation4 + $0xa0] sm:$0xff] %vm1236, %v1181
      %1258 = vst.msk [vmem:[#allocation4 + $0xa8] sm:$0xff] %vm1236, %v1183
      %1259 = vst.msk [vmem:[#allocation4 + $0xb0] sm:$0xff] %vm1236, %v1185
      %1260 = vst.msk [vmem:[#allocation4 + $0xb8] sm:$0xff] %vm1236, %v1187
      %1261 = vst.msk [vmem:[#allocation4 + $0xc0] sm:$0xff] %vm1236, %v1189
      %1262 = vst.msk [vmem:[#allocation4 + $0xc8] sm:$0xff] %vm1236, %v1191
      %1263 = vst.msk [vmem:[#allocation4 + $0xd0] sm:$0xff] %vm1236, %v1193
      %1264 = vst.msk [vmem:[#allocation4 + $0xd8] sm:$0xff] %vm1236, %v1195
      %1265 = vst.msk [vmem:[#allocation4 + $0xe0] sm:$0xff] %vm1236, %v1197
      %1266 = vst.msk [vmem:[#allocation4 + $0xe8] sm:$0xff] %vm1236, %v1199
      %1267 = vst.msk [vmem:[#allocation4 + $0xf0] sm:$0xff] %vm1236, %v1201
      %1268 = vst.msk [vmem:[#allocation4 + $0xf8] sm:$0xff] %vm1236, %v1203
      %v1269 = vld [vmem:[%s400 + $0x2] sm:$0xff]
      %v1270 = vld [vmem:[%s400 + $0xa] sm:$0xff]
      %v1271 = vld [vmem:[%s400 + $0x1a] sm:$0xff]
      %v1272 = vld [vmem:[%s400 + $0x22] sm:$0xff]
      %v1273 = vld [vmem:[%s400 + $0x32] sm:$0xff]
      %v1274 = vld [vmem:[%s400 + $0x3a] sm:$0xff]
      %v1275 = vld [vmem:[%s400 + $0x4a] sm:$0xff]
      %v1276 = vld [vmem:[%s400 + $0x52] sm:$0xff]
      %v1277 = vld [vmem:[%s400 + $0x62] sm:$0xff]
      %v1278 = vld [vmem:[%s400 + $0x6a] sm:$0xff]
      %v1279 = vld [vmem:[%s400 + $0x7a] sm:$0xff]
      %v1280 = vld [vmem:[%s400 + $0x82] sm:$0xff]
      %v1281 = vld [vmem:[%s400 + $0x92] sm:$0xff]
      %v1282 = vld [vmem:[%s400 + $0x9a] sm:$0xff]
      %v1283 = vld [vmem:[%s400 + $0xaa] sm:$0xff]
      %v1284 = vld [vmem:[%s400 + $0xb2] sm:$0xff]
      %v1285 = vld [vmem:[%s400 + $0xc2] sm:$0xff]
      %v1286 = vld [vmem:[%s400 + $0xca] sm:$0xff]
      %v1287 = vld [vmem:[%s400 + $0xda] sm:$0xff]
      %v1288 = vld [vmem:[%s400 + $0xe2] sm:$0xff]
      %v1289 = vld [vmem:[%s400 + $0xf2] sm:$0xff]
      %v1290 = vld [vmem:[%s400 + $0xfa] sm:$0xff]
      %v1291 = vld [vmem:[%s400 + $0x10a] sm:$0xff]
      %v1292 = vld [vmem:[%s400 + $0x112] sm:$0xff]
      %v1293 = vld [vmem:[%s400 + $0x122] sm:$0xff]
      %v1294 = vld [vmem:[%s400 + $0x12a] sm:$0xff]
      %v1295 = vld [vmem:[%s400 + $0x13a] sm:$0xff]
      %v1296 = vld [vmem:[%s400 + $0x142] sm:$0xff]
      %v1297 = vld [vmem:[%s400 + $0x152] sm:$0xff]
      %v1298 = vld [vmem:[%s400 + $0x15a] sm:$0xff]
      %v1299 = vld [vmem:[%s400 + $0x16a] sm:$0xff]
      %v1300 = vld [vmem:[%s400 + $0x172] sm:$0xff]
      %1333 = vrot.lane.b32.xlu0 %v1269, 20
      %v1334 = vpop.permute.xlu0 %1333
      %1335 = vrot.lane.b32.xlu0 %v1270, 20
      %v1336 = vpop.permute.xlu0 %1335
      %1337 = vrot.lane.b32.xlu0 %v1271, 20
      %v1338 = vpop.permute.xlu0 %1337
      %1339 = vrot.lane.b32.xlu0 %v1272, 20
      %v1340 = vpop.permute.xlu0 %1339
      %1341 = vrot.lane.b32.xlu0 %v1273, 20
      %v1342 = vpop.permute.xlu0 %1341
      %1343 = vrot.lane.b32.xlu0 %v1274, 20
      %v1344 = vpop.permute.xlu0 %1343
      %1345 = vrot.lane.b32.xlu0 %v1275, 20
      %v1346 = vpop.permute.xlu0 %1345
      %1347 = vrot.lane.b32.xlu0 %v1276, 20
      %v1348 = vpop.permute.xlu0 %1347
      %1349 = vrot.lane.b32.xlu0 %v1277, 20
      %v1350 = vpop.permute.xlu0 %1349
      %1351 = vrot.lane.b32.xlu0 %v1278, 20
      %v1352 = vpop.permute.xlu0 %1351
      %1353 = vrot.lane.b32.xlu0 %v1279, 20
      %v1354 = vpop.permute.xlu0 %1353
      %1355 = vrot.lane.b32.xlu0 %v1280, 20
      %v1356 = vpop.permute.xlu0 %1355
      %1357 = vrot.lane.b32.xlu0 %v1281, 20
      %v1358 = vpop.permute.xlu0 %1357
      %1359 = vrot.lane.b32.xlu0 %v1282, 20
      %v1360 = vpop.permute.xlu0 %1359
      %1361 = vrot.lane.b32.xlu0 %v1283, 20
      %v1362 = vpop.permute.xlu0 %1361
      %1363 = vrot.lane.b32.xlu0 %v1284, 20
      %v1364 = vpop.permute.xlu0 %1363
      %1365 = vrot.lane.b32.xlu0 %v1285, 20
      %v1366 = vpop.permute.xlu0 %1365
      %1367 = vrot.lane.b32.xlu0 %v1286, 20
      %v1368 = vpop.permute.xlu0 %1367
      %1369 = vrot.lane.b32.xlu0 %v1287, 20
      %v1370 = vpop.permute.xlu0 %1369
      %1371 = vrot.lane.b32.xlu0 %v1288, 20
      %v1372 = vpop.permute.xlu0 %1371
      %1373 = vrot.lane.b32.xlu0 %v1289, 20
      %v1374 = vpop.permute.xlu0 %1373
      %1375 = vrot.lane.b32.xlu0 %v1290, 20
      %v1376 = vpop.permute.xlu0 %1375
      %1377 = vrot.lane.b32.xlu0 %v1291, 20
      %v1378 = vpop.permute.xlu0 %1377
      %1379 = vrot.lane.b32.xlu0 %v1292, 20
      %v1380 = vpop.permute.xlu0 %1379
      %1381 = vrot.lane.b32.xlu0 %v1293, 20
      %v1382 = vpop.permute.xlu0 %1381
      %1383 = vrot.lane.b32.xlu0 %v1294, 20
      %v1384 = vpop.permute.xlu0 %1383
      %1385 = vrot.lane.b32.xlu0 %v1295, 20
      %v1386 = vpop.permute.xlu0 %1385
      %1387 = vrot.lane.b32.xlu0 %v1296, 20
      %v1388 = vpop.permute.xlu0 %1387
      %1389 = vrot.lane.b32.xlu0 %v1297, 20
      %v1390 = vpop.permute.xlu0 %1389
      %1391 = vrot.lane.b32.xlu0 %v1298, 20
      %v1392 = vpop.permute.xlu0 %1391
      %1393 = vrot.lane.b32.xlu0 %v1299, 20
      %v1394 = vpop.permute.xlu0 %1393
      %1395 = vrot.lane.b32.xlu0 %v1300, 20
      %v1396 = vpop.permute.xlu0 %1395
      %vm1429 = vcmask 195744
      %1430 = vst.msk [vmem:[#allocation4] sm:$0xff] %vm1429, %v1334
      %1431 = vst.msk [vmem:[#allocation4 + $0x8] sm:$0xff] %vm1429, %v1336
      %1432 = vst.msk [vmem:[#allocation4 + $0x10] sm:$0xff] %vm1429, %v1338
      %1433 = vst.msk [vmem:[#allocation4 + $0x18] sm:$0xff] %vm1429, %v1340
      %1434 = vst.msk [vmem:[#allocation4 + $0x20] sm:$0xff] %vm1429, %v1342
      %1435 = vst.msk [vmem:[#allocation4 + $0x28] sm:$0xff] %vm1429, %v1344
      %1436 = vst.msk [vmem:[#allocation4 + $0x30] sm:$0xff] %vm1429, %v1346
      %1437 = vst.msk [vmem:[#allocation4 + $0x38] sm:$0xff] %vm1429, %v1348
      %1438 = vst.msk [vmem:[#allocation4 + $0x40] sm:$0xff] %vm1429, %v1350
      %1439 = vst.msk [vmem:[#allocation4 + $0x48] sm:$0xff] %vm1429, %v1352
      %1440 = vst.msk [vmem:[#allocation4 + $0x50] sm:$0xff] %vm1429, %v1354
      %1441 = vst.msk [vmem:[#allocation4 + $0x58] sm:$0xff] %vm1429, %v1356
      %1442 = vst.msk [vmem:[#allocation4 + $0x60] sm:$0xff] %vm1429, %v1358
      %1443 = vst.msk [vmem:[#allocation4 + $0x68] sm:$0xff] %vm1429, %v1360
      %1444 = vst.msk [vmem:[#allocation4 + $0x70] sm:$0xff] %vm1429, %v1362
      %1445 = vst.msk [vmem:[#allocation4 + $0x78] sm:$0xff] %vm1429, %v1364
      %1446 = vst.msk [vmem:[#allocation4 + $0x80] sm:$0xff] %vm1429, %v1366
      %1447 = vst.msk [vmem:[#allocation4 + $0x88] sm:$0xff] %vm1429, %v1368
      %1448 = vst.msk [vmem:[#allocation4 + $0x90] sm:$0xff] %vm1429, %v1370
      %1449 = vst.msk [vmem:[#allocation4 + $0x98] sm:$0xff] %vm1429, %v1372
      %1450 = vst.msk [vmem:[#allocation4 + $0xa0] sm:$0xff] %vm1429, %v1374
      %1451 = vst.msk [vmem:[#allocation4 + $0xa8] sm:$0xff] %vm1429, %v1376
      %1452 = vst.msk [vmem:[#allocation4 + $0xb0] sm:$0xff] %vm1429, %v1378
      %1453 = vst.msk [vmem:[#allocation4 + $0xb8] sm:$0xff] %vm1429, %v1380
      %1454 = vst.msk [vmem:[#allocation4 + $0xc0] sm:$0xff] %vm1429, %v1382
      %1455 = vst.msk [vmem:[#allocation4 + $0xc8] sm:$0xff] %vm1429, %v1384
      %1456 = vst.msk [vmem:[#allocation4 + $0xd0] sm:$0xff] %vm1429, %v1386
      %1457 = vst.msk [vmem:[#allocation4 + $0xd8] sm:$0xff] %vm1429, %v1388
      %1458 = vst.msk [vmem:[#allocation4 + $0xe0] sm:$0xff] %vm1429, %v1390
      %1459 = vst.msk [vmem:[#allocation4 + $0xe8] sm:$0xff] %vm1429, %v1392
      %1460 = vst.msk [vmem:[#allocation4 + $0xf0] sm:$0xff] %vm1429, %v1394
      %1461 = vst.msk [vmem:[#allocation4 + $0xf8] sm:$0xff] %vm1429, %v1396
      %s1462 = scalar_lea.vmem [#allocation2], 48
      %v1463 = vld [vmem:[%s1462] sm:$0xff]
      %v1464 = vld [vmem:[%s1462 + $0x8] sm:$0xff]
      %v1465 = vld [vmem:[%s1462 + $0x18] sm:$0xff]
      %v1466 = vld [vmem:[%s1462 + $0x20] sm:$0xff]
      %v1467 = vld [vmem:[%s1462 + $0x30] sm:$0xff]
      %v1468 = vld [vmem:[%s1462 + $0x38] sm:$0xff]
      %v1469 = vld [vmem:[%s1462 + $0x48] sm:$0xff]
      %v1470 = vld [vmem:[%s1462 + $0x50] sm:$0xff]
      %v1471 = vld [vmem:[%s1462 + $0x60] sm:$0xff]
      %v1472 = vld [vmem:[%s1462 + $0x68] sm:$0xff]
      %v1473 = vld [vmem:[%s1462 + $0x78] sm:$0xff]
      %v1474 = vld [vmem:[%s1462 + $0x80] sm:$0xff]
      %v1475 = vld [vmem:[%s1462 + $0x90] sm:$0xff]
      %v1476 = vld [vmem:[%s1462 + $0x98] sm:$0xff]
      %v1477 = vld [vmem:[%s1462 + $0xa8] sm:$0xff]
      %v1478 = vld [vmem:[%s1462 + $0xb0] sm:$0xff]
      %v1479 = vld [vmem:[%s1462 + $0xc0] sm:$0xff]
      %v1480 = vld [vmem:[%s1462 + $0xc8] sm:$0xff]
      %v1481 = vld [vmem:[%s1462 + $0xd8] sm:$0xff]
      %v1482 = vld [vmem:[%s1462 + $0xe0] sm:$0xff]
      %v1483 = vld [vmem:[%s1462 + $0xf0] sm:$0xff]
      %v1484 = vld [vmem:[%s1462 + $0xf8] sm:$0xff]
      %v1485 = vld [vmem:[%s1462 + $0x108] sm:$0xff]
      %v1486 = vld [vmem:[%s1462 + $0x110] sm:$0xff]
      %v1487 = vld [vmem:[%s1462 + $0x120] sm:$0xff]
      %v1488 = vld [vmem:[%s1462 + $0x128] sm:$0xff]
      %v1489 = vld [vmem:[%s1462 + $0x138] sm:$0xff]
      %v1490 = vld [vmem:[%s1462 + $0x140] sm:$0xff]
      %v1491 = vld [vmem:[%s1462 + $0x150] sm:$0xff]
      %v1492 = vld [vmem:[%s1462 + $0x158] sm:$0xff]
      %v1493 = vld [vmem:[%s1462 + $0x168] sm:$0xff]
      %v1494 = vld [vmem:[%s1462 + $0x170] sm:$0xff]
      %1527 = vrot.lane.b32.xlu0 %v1463, 24
      %v1528 = vpop.permute.xlu0 %1527
      %1529 = vrot.lane.b32.xlu0 %v1464, 24
      %v1530 = vpop.permute.xlu0 %1529
      %1531 = vrot.lane.b32.xlu0 %v1465, 24
      %v1532 = vpop.permute.xlu0 %1531
      %1533 = vrot.lane.b32.xlu0 %v1466, 24
      %v1534 = vpop.permute.xlu0 %1533
      %1535 = vrot.lane.b32.xlu0 %v1467, 24
      %v1536 = vpop.permute.xlu0 %1535
      %1537 = vrot.lane.b32.xlu0 %v1468, 24
      %v1538 = vpop.permute.xlu0 %1537
      %1539 = vrot.lane.b32.xlu0 %v1469, 24
      %v1540 = vpop.permute.xlu0 %1539
      %1541 = vrot.lane.b32.xlu0 %v1470, 24
      %v1542 = vpop.permute.xlu0 %1541
      %1543 = vrot.lane.b32.xlu0 %v1471, 24
      %v1544 = vpop.permute.xlu0 %1543
      %1545 = vrot.lane.b32.xlu0 %v1472, 24
      %v1546 = vpop.permute.xlu0 %1545
      %1547 = vrot.lane.b32.xlu0 %v1473, 24
      %v1548 = vpop.permute.xlu0 %1547
      %1549 = vrot.lane.b32.xlu0 %v1474, 24
      %v1550 = vpop.permute.xlu0 %1549
      %1551 = vrot.lane.b32.xlu0 %v1475, 24
      %v1552 = vpop.permute.xlu0 %1551
      %1553 = vrot.lane.b32.xlu0 %v1476, 24
      %v1554 = vpop.permute.xlu0 %1553
      %1555 = vrot.lane.b32.xlu0 %v1477, 24
      %v1556 = vpop.permute.xlu0 %1555
      %1557 = vrot.lane.b32.xlu0 %v1478, 24
      %v1558 = vpop.permute.xlu0 %1557
      %1559 = vrot.lane.b32.xlu0 %v1479, 24
      %v1560 = vpop.permute.xlu0 %1559
      %1561 = vrot.lane.b32.xlu0 %v1480, 24
      %v1562 = vpop.permute.xlu0 %1561
      %1563 = vrot.lane.b32.xlu0 %v1481, 24
      %v1564 = vpop.permute.xlu0 %1563
      %1565 = vrot.lane.b32.xlu0 %v1482, 24
      %v1566 = vpop.permute.xlu0 %1565
      %1567 = vrot.lane.b32.xlu0 %v1483, 24
      %v1568 = vpop.permute.xlu0 %1567
      %1569 = vrot.lane.b32.xlu0 %v1484, 24
      %v1570 = vpop.permute.xlu0 %1569
      %1571 = vrot.lane.b32.xlu0 %v1485, 24
      %v1572 = vpop.permute.xlu0 %1571
      %1573 = vrot.lane.b32.xlu0 %v1486, 24
      %v1574 = vpop.permute.xlu0 %1573
      %1575 = vrot.lane.b32.xlu0 %v1487, 24
      %v1576 = vpop.permute.xlu0 %1575
      %1577 = vrot.lane.b32.xlu0 %v1488, 24
      %v1578 = vpop.permute.xlu0 %1577
      %1579 = vrot.lane.b32.xlu0 %v1489, 24
      %v1580 = vpop.permute.xlu0 %1579
      %1581 = vrot.lane.b32.xlu0 %v1490, 24
      %v1582 = vpop.permute.xlu0 %1581
      %1583 = vrot.lane.b32.xlu0 %v1491, 24
      %v1584 = vpop.permute.xlu0 %1583
      %1585 = vrot.lane.b32.xlu0 %v1492, 24
      %v1586 = vpop.permute.xlu0 %1585
      %1587 = vrot.lane.b32.xlu0 %v1493, 24
      %v1588 = vpop.permute.xlu0 %1587
      %1589 = vrot.lane.b32.xlu0 %v1494, 24
      %v1590 = vpop.permute.xlu0 %1589
      %vm1623 = vcmask 228544
      %1624 = vst.msk [vmem:[#allocation4] sm:$0xff] %vm1623, %v1528
      %1625 = vst.msk [vmem:[#allocation4 + $0x8] sm:$0xff] %vm1623, %v1530
      %1626 = vst.msk [vmem:[#allocation4 + $0x10] sm:$0xff] %vm1623, %v1532
      %1627 = vst.msk [vmem:[#allocation4 + $0x18] sm:$0xff] %vm1623, %v1534
      %1628 = vst.msk [vmem:[#allocation4 + $0x20] sm:$0xff] %vm1623, %v1536
      %1629 = vst.msk [vmem:[#allocation4 + $0x28] sm:$0xff] %vm1623, %v1538
      %1630 = vst.msk [vmem:[#allocation4 + $0x30] sm:$0xff] %vm1623, %v1540
      %1631 = vst.msk [vmem:[#allocation4 + $0x38] sm:$0xff] %vm1623, %v1542
      %1632 = vst.msk [vmem:[#allocation4 + $0x40] sm:$0xff] %vm1623, %v1544
      %1633 = vst.msk [vmem:[#allocation4 + $0x48] sm:$0xff] %vm1623, %v1546
      %1634 = vst.msk [vmem:[#allocation4 + $0x50] sm:$0xff] %vm1623, %v1548
      %1635 = vst.msk [vmem:[#allocation4 + $0x58] sm:$0xff] %vm1623, %v1550
      %1636 = vst.msk [vmem:[#allocation4 + $0x60] sm:$0xff] %vm1623, %v1552
      %1637 = vst.msk [vmem:[#allocation4 + $0x68] sm:$0xff] %vm1623, %v1554
      %1638 = vst.msk [vmem:[#allocation4 + $0x70] sm:$0xff] %vm1623, %v1556
      %1639 = vst.msk [vmem:[#allocation4 + $0x78] sm:$0xff] %vm1623, %v1558
      %1640 = vst.msk [vmem:[#allocation4 + $0x80] sm:$0xff] %vm1623, %v1560
      %1641 = vst.msk [vmem:[#allocation4 + $0x88] sm:$0xff] %vm1623, %v1562
      %1642 = vst.msk [vmem:[#allocation4 + $0x90] sm:$0xff] %vm1623, %v1564
      %1643 = vst.msk [vmem:[#allocation4 + $0x98] sm:$0xff] %vm1623, %v1566
      %1644 = vst.msk [vmem:[#allocation4 + $0xa0] sm:$0xff] %vm1623, %v1568
      %1645 = vst.msk [vmem:[#allocation4 + $0xa8] sm:$0xff] %vm1623, %v1570
      %1646 = vst.msk [vmem:[#allocation4 + $0xb0] sm:$0xff] %vm1623, %v1572
      %1647 = vst.msk [vmem:[#allocation4 + $0xb8] sm:$0xff] %vm1623, %v1574
      %1648 = vst.msk [vmem:[#allocation4 + $0xc0] sm:$0xff] %vm1623, %v1576
      %1649 = vst.msk [vmem:[#allocation4 + $0xc8] sm:$0xff] %vm1623, %v1578
      %1650 = vst.msk [vmem:[#allocation4 + $0xd0] sm:$0xff] %vm1623, %v1580
      %1651 = vst.msk [vmem:[#allocation4 + $0xd8] sm:$0xff] %vm1623, %v1582
      %1652 = vst.msk [vmem:[#allocation4 + $0xe0] sm:$0xff] %vm1623, %v1584
      %1653 = vst.msk [vmem:[#allocation4 + $0xe8] sm:$0xff] %vm1623, %v1586
      %1654 = vst.msk [vmem:[#allocation4 + $0xf0] sm:$0xff] %vm1623, %v1588
      %1655 = vst.msk [vmem:[#allocation4 + $0xf8] sm:$0xff] %vm1623, %v1590
      %v1656 = vld [vmem:[%s1462 + $0x1] sm:$0xff]
      %v1657 = vld [vmem:[%s1462 + $0x9] sm:$0xff]
      %v1658 = vld [vmem:[%s1462 + $0x19] sm:$0xff]
      %v1659 = vld [vmem:[%s1462 + $0x21] sm:$0xff]
      %v1660 = vld [vmem:[%s1462 + $0x31] sm:$0xff]
      %v1661 = vld [vmem:[%s1462 + $0x39] sm:$0xff]
      %v1662 = vld [vmem:[%s1462 + $0x49] sm:$0xff]
      %v1663 = vld [vmem:[%s1462 + $0x51] sm:$0xff]
      %v1664 = vld [vmem:[%s1462 + $0x61] sm:$0xff]
      %v1665 = vld [vmem:[%s1462 + $0x69] sm:$0xff]
      %v1666 = vld [vmem:[%s1462 + $0x79] sm:$0xff]
      %v1667 = vld [vmem:[%s1462 + $0x81] sm:$0xff]
      %v1668 = vld [vmem:[%s1462 + $0x91] sm:$0xff]
      %v1669 = vld [vmem:[%s1462 + $0x99] sm:$0xff]
      %v1670 = vld [vmem:[%s1462 + $0xa9] sm:$0xff]
      %v1671 = vld [vmem:[%s1462 + $0xb1] sm:$0xff]
      %v1672 = vld [vmem:[%s1462 + $0xc1] sm:$0xff]
      %v1673 = vld [vmem:[%s1462 + $0xc9] sm:$0xff]
      %v1674 = vld [vmem:[%s1462 + $0xd9] sm:$0xff]
      %v1675 = vld [vmem:[%s1462 + $0xe1] sm:$0xff]
      %v1676 = vld [vmem:[%s1462 + $0xf1] sm:$0xff]
      %v1677 = vld [vmem:[%s1462 + $0xf9] sm:$0xff]
      %v1678 = vld [vmem:[%s1462 + $0x109] sm:$0xff]
      %v1679 = vld [vmem:[%s1462 + $0x111] sm:$0xff]
      %v1680 = vld [vmem:[%s1462 + $0x121] sm:$0xff]
      %v1681 = vld [vmem:[%s1462 + $0x129] sm:$0xff]
      %v1682 = vld [vmem:[%s1462 + $0x139] sm:$0xff]
      %v1683 = vld [vmem:[%s1462 + $0x141] sm:$0xff]
      %v1684 = vld [vmem:[%s1462 + $0x151] sm:$0xff]
      %v1685 = vld [vmem:[%s1462 + $0x159] sm:$0xff]
      %v1686 = vld [vmem:[%s1462 + $0x169] sm:$0xff]
      %v1687 = vld [vmem:[%s1462 + $0x171] sm:$0xff]
      %1720 = vrot.lane.b32.xlu0 %v1656, 28
      %v1721 = vpop.permute.xlu0 %1720
      %1722 = vrot.lane.b32.xlu0 %v1657, 28
      %v1723 = vpop.permute.xlu0 %1722
      %1724 = vrot.lane.b32.xlu0 %v1658, 28
      %v1725 = vpop.permute.xlu0 %1724
      %1726 = vrot.lane.b32.xlu0 %v1659, 28
      %v1727 = vpop.permute.xlu0 %1726
      %1728 = vrot.lane.b32.xlu0 %v1660, 28
      %v1729 = vpop.permute.xlu0 %1728
      %1730 = vrot.lane.b32.xlu0 %v1661, 28
      %v1731 = vpop.permute.xlu0 %1730
      %1732 = vrot.lane.b32.xlu0 %v1662, 28
      %v1733 = vpop.permute.xlu0 %1732
      %1734 = vrot.lane.b32.xlu0 %v1663, 28
      %v1735 = vpop.permute.xlu0 %1734
      %1736 = vrot.lane.b32.xlu0 %v1664, 28
      %v1737 = vpop.permute.xlu0 %1736
      %1738 = vrot.lane.b32.xlu0 %v1665, 28
      %v1739 = vpop.permute.xlu0 %1738
      %1740 = vrot.lane.b32.xlu0 %v1666, 28
      %v1741 = vpop.permute.xlu0 %1740
      %1742 = vrot.lane.b32.xlu0 %v1667, 28
      %v1743 = vpop.permute.xlu0 %1742
      %1744 = vrot.lane.b32.xlu0 %v1668, 28
      %v1745 = vpop.permute.xlu0 %1744
      %1746 = vrot.lane.b32.xlu0 %v1669, 28
      %v1747 = vpop.permute.xlu0 %1746
      %1748 = vrot.lane.b32.xlu0 %v1670, 28
      %v1749 = vpop.permute.xlu0 %1748
      %1750 = vrot.lane.b32.xlu0 %v1671, 28
      %v1751 = vpop.permute.xlu0 %1750
      %1752 = vrot.lane.b32.xlu0 %v1672, 28
      %v1753 = vpop.permute.xlu0 %1752
      %1754 = vrot.lane.b32.xlu0 %v1673, 28
      %v1755 = vpop.permute.xlu0 %1754
      %1756 = vrot.lane.b32.xlu0 %v1674, 28
      %v1757 = vpop.permute.xlu0 %1756
      %1758 = vrot.lane.b32.xlu0 %v1675, 28
      %v1759 = vpop.permute.xlu0 %1758
      %1760 = vrot.lane.b32.xlu0 %v1676, 28
      %v1761 = vpop.permute.xlu0 %1760
      %1762 = vrot.lane.b32.xlu0 %v1677, 28
      %v1763 = vpop.permute.xlu0 %1762
      %1764 = vrot.lane.b32.xlu0 %v1678, 28
      %v1765 = vpop.permute.xlu0 %1764
      %1766 = vrot.lane.b32.xlu0 %v1679, 28
      %v1767 = vpop.permute.xlu0 %1766
      %1768 = vrot.lane.b32.xlu0 %v1680, 28
      %v1769 = vpop.permute.xlu0 %1768
      %1770 = vrot.lane.b32.xlu0 %v1681, 28
      %v1771 = vpop.permute.xlu0 %1770
      %1772 = vrot.lane.b32.xlu0 %v1682, 28
      %v1773 = vpop.permute.xlu0 %1772
      %1774 = vrot.lane.b32.xlu0 %v1683, 28
      %v1775 = vpop.permute.xlu0 %1774
      %1776 = vrot.lane.b32.xlu0 %v1684, 28
      %v1777 = vpop.permute.xlu0 %1776
      %1778 = vrot.lane.b32.xlu0 %v1685, 28
      %v1779 = vpop.permute.xlu0 %1778
      %1780 = vrot.lane.b32.xlu0 %v1686, 28
      %v1781 = vpop.permute.xlu0 %1780
      %1782 = vrot.lane.b32.xlu0 %v1687, 28
      %v1783 = vpop.permute.xlu0 %1782
      %vm1816 = vcmask 261344
      %1817 = vst.msk [vmem:[#allocation4] sm:$0xff] %vm1816, %v1721
      %1818 = vst.msk [vmem:[#allocation4 + $0x8] sm:$0xff] %vm1816, %v1723
      %1819 = vst.msk [vmem:[#allocation4 + $0x10] sm:$0xff] %vm1816, %v1725
      %1820 = vst.msk [vmem:[#allocation4 + $0x18] sm:$0xff] %vm1816, %v1727
      %1821 = vst.msk [vmem:[#allocation4 + $0x20] sm:$0xff] %vm1816, %v1729
      %1822 = vst.msk [vmem:[#allocation4 + $0x28] sm:$0xff] %vm1816, %v1731
      %1823 = vst.msk [vmem:[#allocation4 + $0x30] sm:$0xff] %vm1816, %v1733
      %1824 = vst.msk [vmem:[#allocation4 + $0x38] sm:$0xff] %vm1816, %v1735
      %1825 = vst.msk [vmem:[#allocation4 + $0x40] sm:$0xff] %vm1816, %v1737
      %1826 = vst.msk [vmem:[#allocation4 + $0x48] sm:$0xff] %vm1816, %v1739
      %1827 = vst.msk [vmem:[#allocation4 + $0x50] sm:$0xff] %vm1816, %v1741
      %1828 = vst.msk [vmem:[#allocation4 + $0x58] sm:$0xff] %vm1816, %v1743
      %1829 = vst.msk [vmem:[#allocation4 + $0x60] sm:$0xff] %vm1816, %v1745
      %1830 = vst.msk [vmem:[#allocation4 + $0x68] sm:$0xff] %vm1816, %v1747
      %1831 = vst.msk [vmem:[#allocation4 + $0x70] sm:$0xff] %vm1816, %v1749
      %1832 = vst.msk [vmem:[#allocation4 + $0x78] sm:$0xff] %vm1816, %v1751
      %1833 = vst.msk [vmem:[#allocation4 + $0x80] sm:$0xff] %vm1816, %v1753
      %1834 = vst.msk [vmem:[#allocation4 + $0x88] sm:$0xff] %vm1816, %v1755
      %1835 = vst.msk [vmem:[#allocation4 + $0x90] sm:$0xff] %vm1816, %v1757
      %1836 = vst.msk [vmem:[#allocation4 + $0x98] sm:$0xff] %vm1816, %v1759
      %1837 = vst.msk [vmem:[#allocation4 + $0xa0] sm:$0xff] %vm1816, %v1761
      %1838 = vst.msk [vmem:[#allocation4 + $0xa8] sm:$0xff] %vm1816, %v1763
      %1839 = vst.msk [vmem:[#allocation4 + $0xb0] sm:$0xff] %vm1816, %v1765
      %1840 = vst.msk [vmem:[#allocation4 + $0xb8] sm:$0xff] %vm1816, %v1767
      %1841 = vst.msk [vmem:[#allocation4 + $0xc0] sm:$0xff] %vm1816, %v1769
      %1842 = vst.msk [vmem:[#allocation4 + $0xc8] sm:$0xff] %vm1816, %v1771
      %1843 = vst.msk [vmem:[#allocation4 + $0xd0] sm:$0xff] %vm1816, %v1773
      %1844 = vst.msk [vmem:[#allocation4 + $0xd8] sm:$0xff] %vm1816, %v1775
      %1845 = vst.msk [vmem:[#allocation4 + $0xe0] sm:$0xff] %vm1816, %v1777
      %1846 = vst.msk [vmem:[#allocation4 + $0xe8] sm:$0xff] %vm1816, %v1779
      %1847 = vst.msk [vmem:[#allocation4 + $0xf0] sm:$0xff] %vm1816, %v1781
      %1848 = vst.msk [vmem:[#allocation4 + $0xf8] sm:$0xff] %vm1816, %v1783
      %v1849 = vld [vmem:[%s1462 + $0x2] sm:$0xff]
      %v1850 = vld [vmem:[%s1462 + $0xa] sm:$0xff]
      %v1851 = vld [vmem:[%s1462 + $0x1a] sm:$0xff]
      %v1852 = vld [vmem:[%s1462 + $0x22] sm:$0xff]
      %v1853 = vld [vmem:[%s1462 + $0x32] sm:$0xff]
      %v1854 = vld [vmem:[%s1462 + $0x3a] sm:$0xff]
      %v1855 = vld [vmem:[%s1462 + $0x4a] sm:$0xff]
      %v1856 = vld [vmem:[%s1462 + $0x52] sm:$0xff]
      %v1857 = vld [vmem:[%s1462 + $0x62] sm:$0xff]
      %v1858 = vld [vmem:[%s1462 + $0x6a] sm:$0xff]
      %v1859 = vld [vmem:[%s1462 + $0x7a] sm:$0xff]
      %v1860 = vld [vmem:[%s1462 + $0x82] sm:$0xff]
      %v1861 = vld [vmem:[%s1462 + $0x92] sm:$0xff]
      %v1862 = vld [vmem:[%s1462 + $0x9a] sm:$0xff]
      %v1863 = vld [vmem:[%s1462 + $0xaa] sm:$0xff]
      %v1864 = vld [vmem:[%s1462 + $0xb2] sm:$0xff]
      %v1865 = vld [vmem:[%s1462 + $0xc2] sm:$0xff]
      %v1866 = vld [vmem:[%s1462 + $0xca] sm:$0xff]
      %v1867 = vld [vmem:[%s1462 + $0xda] sm:$0xff]
      %v1868 = vld [vmem:[%s1462 + $0xe2] sm:$0xff]
      %v1869 = vld [vmem:[%s1462 + $0xf2] sm:$0xff]
      %v1870 = vld [vmem:[%s1462 + $0xfa] sm:$0xff]
      %v1871 = vld [vmem:[%s1462 + $0x10a] sm:$0xff]
      %v1872 = vld [vmem:[%s1462 + $0x112] sm:$0xff]
      %v1873 = vld [vmem:[%s1462 + $0x122] sm:$0xff]
      %v1874 = vld [vmem:[%s1462 + $0x12a] sm:$0xff]
      %v1875 = vld [vmem:[%s1462 + $0x13a] sm:$0xff]
      %v1876 = vld [vmem:[%s1462 + $0x142] sm:$0xff]
      %v1877 = vld [vmem:[%s1462 + $0x152] sm:$0xff]
      %v1878 = vld [vmem:[%s1462 + $0x15a] sm:$0xff]
      %v1879 = vld [vmem:[%s1462 + $0x16a] sm:$0xff]
      %v1880 = vld [vmem:[%s1462 + $0x172] sm:$0xff]
      %1913 = vrot.lane.b32.xlu0 %v1849, 32
      %v1914 = vpop.permute.xlu0 %1913
      %1915 = vrot.lane.b32.xlu0 %v1850, 32
      %v1916 = vpop.permute.xlu0 %1915
      %1917 = vrot.lane.b32.xlu0 %v1851, 32
      %v1918 = vpop.permute.xlu0 %1917
      %1919 = vrot.lane.b32.xlu0 %v1852, 32
      %v1920 = vpop.permute.xlu0 %1919
      %1921 = vrot.lane.b32.xlu0 %v1853, 32
      %v1922 = vpop.permute.xlu0 %1921
      %1923 = vrot.lane.b32.xlu0 %v1854, 32
      %v1924 = vpop.permute.xlu0 %1923
      %1925 = vrot.lane.b32.xlu0 %v1855, 32
      %v1926 = vpop.permute.xlu0 %1925
      %1927 = vrot.lane.b32.xlu0 %v1856, 32
      %v1928 = vpop.permute.xlu0 %1927
      %1929 = vrot.lane.b32.xlu0 %v1857, 32
      %v1930 = vpop.permute.xlu0 %1929
      %1931 = vrot.lane.b32.xlu0 %v1858, 32
      %v1932 = vpop.permute.xlu0 %1931
      %1933 = vrot.lane.b32.xlu0 %v1859, 32
      %v1934 = vpop.permute.xlu0 %1933
      %1935 = vrot.lane.b32.xlu0 %v1860, 32
      %v1936 = vpop.permute.xlu0 %1935
      %1937 = vrot.lane.b32.xlu0 %v1861, 32
      %v1938 = vpop.permute.xlu0 %1937
      %1939 = vrot.lane.b32.xlu0 %v1862, 32
      %v1940 = vpop.permute.xlu0 %1939
      %1941 = vrot.lane.b32.xlu0 %v1863, 32
      %v1942 = vpop.permute.xlu0 %1941
      %1943 = vrot.lane.b32.xlu0 %v1864, 32
      %v1944 = vpop.permute.xlu0 %1943
      %1945 = vrot.lane.b32.xlu0 %v1865, 32
      %v1946 = vpop.permute.xlu0 %1945
      %1947 = vrot.lane.b32.xlu0 %v1866, 32
      %v1948 = vpop.permute.xlu0 %1947
      %1949 = vrot.lane.b32.xlu0 %v1867, 32
      %v1950 = vpop.permute.xlu0 %1949
      %1951 = vrot.lane.b32.xlu0 %v1868, 32
      %v1952 = vpop.permute.xlu0 %1951
      %1953 = vrot.lane.b32.xlu0 %v1869, 32
      %v1954 = vpop.permute.xlu0 %1953
      %1955 = vrot.lane.b32.xlu0 %v1870, 32
      %v1956 = vpop.permute.xlu0 %1955
      %1957 = vrot.lane.b32.xlu0 %v1871, 32
      %v1958 = vpop.permute.xlu0 %1957
      %1959 = vrot.lane.b32.xlu0 %v1872, 32
      %v1960 = vpop.permute.xlu0 %1959
      %1961 = vrot.lane.b32.xlu0 %v1873, 32
      %v1962 = vpop.permute.xlu0 %1961
      %1963 = vrot.lane.b32.xlu0 %v1874, 32
      %v1964 = vpop.permute.xlu0 %1963
      %1965 = vrot.lane.b32.xlu0 %v1875, 32
      %v1966 = vpop.permute.xlu0 %1965
      %1967 = vrot.lane.b32.xlu0 %v1876, 32
      %v1968 = vpop.permute.xlu0 %1967
      %1969 = vrot.lane.b32.xlu0 %v1877, 32
      %v1970 = vpop.permute.xlu0 %1969
      %1971 = vrot.lane.b32.xlu0 %v1878, 32
      %v1972 = vpop.permute.xlu0 %1971
      %1973 = vrot.lane.b32.xlu0 %v1879, 32
      %v1974 = vpop.permute.xlu0 %1973
      %1975 = vrot.lane.b32.xlu0 %v1880, 32
      %v1976 = vpop.permute.xlu0 %1975
      %vm2009 = vcmask 294144
      %2010 = vst.msk [vmem:[#allocation4] sm:$0xff] %vm2009, %v1914
      %2011 = vst.msk [vmem:[#allocation4 + $0x8] sm:$0xff] %vm2009, %v1916
      %2012 = vst.msk [vmem:[#allocation4 + $0x10] sm:$0xff] %vm2009, %v1918
      %2013 = vst.msk [vmem:[#allocation4 + $0x18] sm:$0xff] %vm2009, %v1920
      %2014 = vst.msk [vmem:[#allocation4 + $0x20] sm:$0xff] %vm2009, %v1922
      %2015 = vst.msk [vmem:[#allocation4 + $0x28] sm:$0xff] %vm2009, %v1924
      %2016 = vst.msk [vmem:[#allocation4 + $0x30] sm:$0xff] %vm2009, %v1926
      %2017 = vst.msk [vmem:[#allocation4 + $0x38] sm:$0xff] %vm2009, %v1928
      %2018 = vst.msk [vmem:[#allocation4 + $0x40] sm:$0xff] %vm2009, %v1930
      %2019 = vst.msk [vmem:[#allocation4 + $0x48] sm:$0xff] %vm2009, %v1932
      %2020 = vst.msk [vmem:[#allocation4 + $0x50] sm:$0xff] %vm2009, %v1934
      %2021 = vst.msk [vmem:[#allocation4 + $0x58] sm:$0xff] %vm2009, %v1936
      %2022 = vst.msk [vmem:[#allocation4 + $0x60] sm:$0xff] %vm2009, %v1938
      %2023 = vst.msk [vmem:[#allocation4 + $0x68] sm:$0xff] %vm2009, %v1940
      %2024 = vst.msk [vmem:[#allocation4 + $0x70] sm:$0xff] %vm2009, %v1942
      %2025 = vst.msk [vmem:[#allocation4 + $0x78] sm:$0xff] %vm2009, %v1944
      %2026 = vst.msk [vmem:[#allocation4 + $0x80] sm:$0xff] %vm2009, %v1946
      %2027 = vst.msk [vmem:[#allocation4 + $0x88] sm:$0xff] %vm2009, %v1948
      %2028 = vst.msk [vmem:[#allocation4 + $0x90] sm:$0xff] %vm2009, %v1950
      %2029 = vst.msk [vmem:[#allocation4 + $0x98] sm:$0xff] %vm2009, %v1952
      %2030 = vst.msk [vmem:[#allocation4 + $0xa0] sm:$0xff] %vm2009, %v1954
      %2031 = vst.msk [vmem:[#allocation4 + $0xa8] sm:$0xff] %vm2009, %v1956
      %2032 = vst.msk [vmem:[#allocation4 + $0xb0] sm:$0xff] %vm2009, %v1958
      %2033 = vst.msk [vmem:[#allocation4 + $0xb8] sm:$0xff] %vm2009, %v1960
      %2034 = vst.msk [vmem:[#allocation4 + $0xc0] sm:$0xff] %vm2009, %v1962
      %2035 = vst.msk [vmem:[#allocation4 + $0xc8] sm:$0xff] %vm2009, %v1964
      %2036 = vst.msk [vmem:[#allocation4 + $0xd0] sm:$0xff] %vm2009, %v1966
      %2037 = vst.msk [vmem:[#allocation4 + $0xd8] sm:$0xff] %vm2009, %v1968
      %2038 = vst.msk [vmem:[#allocation4 + $0xe0] sm:$0xff] %vm2009, %v1970
      %2039 = vst.msk [vmem:[#allocation4 + $0xe8] sm:$0xff] %vm2009, %v1972
      %2040 = vst.msk [vmem:[#allocation4 + $0xf0] sm:$0xff] %vm2009, %v1974
      %2041 = vst.msk [vmem:[#allocation4 + $0xf8] sm:$0xff] %vm2009, %v1976
      %v2042 = vld [vmem:[#allocation4] sm:$0xff]
      %v2043 = vld [vmem:[#allocation4 + $0x8] sm:$0xff]
      %v2044 = vld [vmem:[#allocation4 + $0x10] sm:$0xff]
      %v2045 = vld [vmem:[#allocation4 + $0x18] sm:$0xff]
      %v2046 = vld [vmem:[#allocation4 + $0x20] sm:$0xff]
      %v2047 = vld [vmem:[#allocation4 + $0x28] sm:$0xff]
      %v2048 = vld [vmem:[#allocation4 + $0x30] sm:$0xff]
      %v2049 = vld [vmem:[#allocation4 + $0x38] sm:$0xff]
      %v2050 = vld [vmem:[#allocation4 + $0x40] sm:$0xff]
      %v2051 = vld [vmem:[#allocation4 + $0x48] sm:$0xff]
      %v2052 = vld [vmem:[#allocation4 + $0x50] sm:$0xff]
      %v2053 = vld [vmem:[#allocation4 + $0x58] sm:$0xff]
      %v2054 = vld [vmem:[#allocation4 + $0x60] sm:$0xff]
      %v2055 = vld [vmem:[#allocation4 + $0x68] sm:$0xff]
      %v2056 = vld [vmem:[#allocation4 + $0x70] sm:$0xff]
      %v2057 = vld [vmem:[#allocation4 + $0x78] sm:$0xff]
      %v2058 = vld [vmem:[#allocation4 + $0x80] sm:$0xff]
      %v2059 = vld [vmem:[#allocation4 + $0x88] sm:$0xff]
      %v2060 = vld [vmem:[#allocation4 + $0x90] sm:$0xff]
      %v2061 = vld [vmem:[#allocation4 + $0x98] sm:$0xff]
      %v2062 = vld [vmem:[#allocation4 + $0xa0] sm:$0xff]
      %v2063 = vld [vmem:[#allocation4 + $0xa8] sm:$0xff]
      %v2064 = vld [vmem:[#allocation4 + $0xb0] sm:$0xff]
      %v2065 = vld [vmem:[#allocation4 + $0xb8] sm:$0xff]
      %v2066 = vld [vmem:[#allocation4 + $0xc0] sm:$0xff]
      %v2067 = vld [vmem:[#allocation4 + $0xc8] sm:$0xff]
      %v2068 = vld [vmem:[#allocation4 + $0xd0] sm:$0xff]
      %v2069 = vld [vmem:[#allocation4 + $0xd8] sm:$0xff]
      %v2070 = vld [vmem:[#allocation4 + $0xe0] sm:$0xff]
      %v2071 = vld [vmem:[#allocation4 + $0xe8] sm:$0xff]
      %v2072 = vld [vmem:[#allocation4 + $0xf0] sm:$0xff]
      %v2073 = vld [vmem:[#allocation4 + $0xf8] sm:$0xff]
      %v2074 = vpack.c.bf16 %v2043, %v2042
      %v2075 = vpack.c.bf16 %v2045, %v2044
      %v2076 = vpack.c.bf16 %v2047, %v2046
      %v2077 = vpack.c.bf16 %v2049, %v2048
      %v2078 = vpack.c.bf16 %v2051, %v2050
      %v2079 = vpack.c.bf16 %v2053, %v2052
      %v2080 = vpack.c.bf16 %v2055, %v2054
      %v2081 = vpack.c.bf16 %v2057, %v2056
      %v2082 = vpack.c.bf16 %v2059, %v2058
      %v2083 = vpack.c.bf16 %v2061, %v2060
      %v2084 = vpack.c.bf16 %v2063, %v2062
      %v2085 = vpack.c.bf16 %v2065, %v2064
      %v2086 = vpack.c.bf16 %v2067, %v2066
      %v2087 = vpack.c.bf16 %v2069, %v2068
      %v2088 = vpack.c.bf16 %v2071, %v2070
      %v2089 = vpack.c.bf16 %v2073, %v2072
      %v2090 = vld [vmem:[%s1] sm:$0xf]
      %v2091 = vld [vmem:[%s1 + $0x4] sm:$0xf]
      %v2092 = vld [vmem:[%s1 + $0x8] sm:$0xf]
      %v2093 = vld [vmem:[%s1 + $0xc] sm:$0xf]
      %v2094 = vld [vmem:[%s1 + $0x10] sm:$0x3]
      %v2100 = vunpack.c.l.b16 %v2090
      %v2101 = vunpack.c.l.b16 %v2091
      %v2102 = vunpack.c.l.b16 %v2092
      %v2103 = vunpack.c.l.b16 %v2093
      %v2104 = vunpack.c.l.b16 %v2094
      %v2105 = vpack.c.b16 %v2101, %v2100
      %v2106 = vpack.c.b16 %v2103, %v2102
      %v2107 = vpack.c.b16 %v2104, %v2104
      %vm2110 = vcmask 293888
      %v2112 = vsel %vm2110, %v2074, 0
      %v2115 = vsel %vm2110, %v2075, 0
      %v2118 = vsel %vm2110, %v2076, 0
      %v2121 = vsel %vm2110, %v2077, 0
      %v2124 = vsel %vm2110, %v2078, 0
      %v2127 = vsel %vm2110, %v2079, 0
      %v2130 = vsel %vm2110, %v2080, 0
      %v2133 = vsel %vm2110, %v2081, 0
      %v2136 = vsel %vm2110, %v2082, 0
      %v2139 = vsel %vm2110, %v2083, 0
      %v2142 = vsel %vm2110, %v2084, 0
      %v2145 = vsel %vm2110, %v2085, 0
      %v2148 = vsel %vm2110, %v2086, 0
      %v2151 = vsel %vm2110, %v2087, 0
      %v2154 = vsel %vm2110, %v2088, 0
      %v2157 = vsel %vm2110, %v2089, 0
      %vm2159 = vcmask 1041408
      %v2161 = vsel %vm2159, %v2107, 0
      %2163 = vmatprep.subr.bf16.mxu0 0
      %2164 = vmatpush1.bf16.msra.mxu0 0
      %2165 = vmatprep.subr.bf16.mxu0 0
      %2166 = vmatpush1.bf16.msra.mxu0 0
      %2167 = vmatprep.subr.bf16.mxu0 0
      %2168 = vmatpush1.bf16.msra.mxu0 0
      %2169 = vmatprep.subr.bf16.mxu0 0
      %2170 = vmatpush1.bf16.msra.mxu0 0
      %2171 = vmatprep.subr.bf16.mxu0 0
      %2172 = vmatpush1.bf16.msra.mxu0 0
      %2173 = vmatprep.subr.bf16.mxu0 0
      %2174 = vmatpush1.bf16.msra.mxu0 %v2161
      %2175 = vmatprep.subr.bf16.mxu0 0
      %2176 = vmatpush1.bf16.msra.mxu0 %v2106
      %2177 = vmatprep.subr.bf16.mxu0 0
      %2178 = vmatpush1.bf16.msra.mxu0 %v2105
      %2179 = vmatprep.subr.bf16.mxu0 0
      %2180 = vmatpush2.bf16.msra.mxu0 0
      %2181 = vmatprep.subr.bf16.mxu0 0
      %2182 = vmatpush2.bf16.msra.mxu0 0
      %2183 = vmatprep.subr.bf16.mxu0 0
      %2184 = vmatpush2.bf16.msra.mxu0 0
      %2185 = vmatprep.subr.bf16.mxu0 0
      %2186 = vmatpush2.bf16.msra.mxu0 0
      %2187 = vmatprep.subr.bf16.mxu0 0
      %2188 = vmatpush2.bf16.msra.mxu0 0
      %2189 = vmatprep.subr.bf16.mxu0 0
      %2190 = vmatpush2.bf16.msra.mxu0 0
      %2191 = vmatprep.subr.bf16.mxu0 0
      %2192 = vmatpush2.bf16.msra.mxu0 0
      %2193 = vmatprep.subr.bf16.mxu0 0
      %2194 = vmatpush2.bf16.msra.mxu0 0
      %2195 = vmatprep.mubr.bf16.mxu0 0
      %2196 = vmatmul.mubr.bf16.gmra.mxu0 %v2112
      %v2197 = vpop.f32.mrf.mxu0
      %v2198 = vadd.f32 0.0, %v2197
      %v2199 = vpop.f32.mrf.mxu0
      %v2200 = vpop.f32.mrf.mxu0
      %v2201 = vadd.f32 0.0, %v2200
      %v2202 = vpop.f32.mrf.mxu0
      %2203 = vmatprep.mubr.bf16.mxu0 0
      %2204 = vmatmul.mubr.bf16.gmra.mxu0 %v2115
      %v2205 = vpop.f32.mrf.mxu0
      %v2206 = vadd.f32 0.0, %v2205
      %v2207 = vpop.f32.mrf.mxu0
      %v2208 = vpop.f32.mrf.mxu0
      %v2209 = vadd.f32 0.0, %v2208
      %v2210 = vpop.f32.mrf.mxu0
      %2211 = vmatprep.mubr.bf16.mxu0 0
      %2212 = vmatmul.mubr.bf16.gmra.mxu0 %v2118
      %v2213 = vpop.f32.mrf.mxu0
      %v2214 = vadd.f32 0.0, %v2213
      %v2215 = vpop.f32.mrf.mxu0
      %v2216 = vpop.f32.mrf.mxu0
      %v2217 = vadd.f32 0.0, %v2216
      %v2218 = vpop.f32.mrf.mxu0
      %2219 = vmatprep.mubr.bf16.mxu0 0
      %2220 = vmatmul.mubr.bf16.gmra.mxu0 %v2121
      %v2221 = vpop.f32.mrf.mxu0
      %v2222 = vadd.f32 0.0, %v2221
      %v2223 = vpop.f32.mrf.mxu0
      %v2224 = vpop.f32.mrf.mxu0
      %v2225 = vadd.f32 0.0, %v2224
      %v2226 = vpop.f32.mrf.mxu0
      %2227 = vmatprep.mubr.bf16.mxu0 0
      %2228 = vmatmul.mubr.bf16.gmra.mxu0 %v2124
      %v2229 = vpop.f32.mrf.mxu0
      %v2230 = vadd.f32 0.0, %v2229
      %v2231 = vpop.f32.mrf.mxu0
      %v2232 = vpop.f32.mrf.mxu0
      %v2233 = vadd.f32 0.0, %v2232
      %v2234 = vpop.f32.mrf.mxu0
      %2235 = vmatprep.mubr.bf16.mxu0 0
      %2236 = vmatmul.mubr.bf16.gmra.mxu0 %v2127
      %v2237 = vpop.f32.mrf.mxu0
      %v2238 = vadd.f32 0.0, %v2237
      %v2239 = vpop.f32.mrf.mxu0
      %v2240 = vpop.f32.mrf.mxu0
      %v2241 = vadd.f32 0.0, %v2240
      %v2242 = vpop.f32.mrf.mxu0
      %2243 = vmatprep.mubr.bf16.mxu0 0
      %2244 = vmatmul.mubr.bf16.gmra.mxu0 %v2130
      %v2245 = vpop.f32.mrf.mxu0
      %v2246 = vadd.f32 0.0, %v2245
      %v2247 = vpop.f32.mrf.mxu0
      %v2248 = vpop.f32.mrf.mxu0
      %v2249 = vadd.f32 0.0, %v2248
      %v2250 = vpop.f32.mrf.mxu0
      %2251 = vmatprep.mubr.bf16.mxu0 0
      %2252 = vmatmul.mubr.bf16.gmra.mxu0 %v2133
      %v2253 = vpop.f32.mrf.mxu0
      %v2254 = vadd.f32 0.0, %v2253
      %v2255 = vpop.f32.mrf.mxu0
      %v2256 = vpop.f32.mrf.mxu0
      %v2257 = vadd.f32 0.0, %v2256
      %v2258 = vpop.f32.mrf.mxu0
      %2259 = vmatprep.mubr.bf16.mxu0 0
      %2260 = vmatmul.mubr.bf16.gmra.mxu0 %v2136
      %v2261 = vpop.f32.mrf.mxu0
      %v2262 = vadd.f32 0.0, %v2261
      %v2263 = vpop.f32.mrf.mxu0
      %v2264 = vpop.f32.mrf.mxu0
      %v2265 = vadd.f32 0.0, %v2264
      %v2266 = vpop.f32.mrf.mxu0
      %2267 = vmatprep.mubr.bf16.mxu0 0
      %2268 = vmatmul.mubr.bf16.gmra.mxu0 %v2139
      %v2269 = vpop.f32.mrf.mxu0
      %v2270 = vadd.f32 0.0, %v2269
      %v2271 = vpop.f32.mrf.mxu0
      %v2272 = vpop.f32.mrf.mxu0
      %v2273 = vadd.f32 0.0, %v2272
      %v2274 = vpop.f32.mrf.mxu0
      %2275 = vmatprep.mubr.bf16.mxu0 0
      %2276 = vmatmul.mubr.bf16.gmra.mxu0 %v2142
      %v2277 = vpop.f32.mrf.mxu0
      %v2278 = vadd.f32 0.0, %v2277
      %v2279 = vpop.f32.mrf.mxu0
      %v2280 = vpop.f32.mrf.mxu0
      %v2281 = vadd.f32 0.0, %v2280
      %v2282 = vpop.f32.mrf.mxu0
      %2283 = vmatprep.mubr.bf16.mxu0 0
      %2284 = vmatmul.mubr.bf16.gmra.mxu0 %v2145
      %v2285 = vpop.f32.mrf.mxu0
      %v2286 = vadd.f32 0.0, %v2285
      %v2287 = vpop.f32.mrf.mxu0
      %v2288 = vpop.f32.mrf.mxu0
      %v2289 = vadd.f32 0.0, %v2288
      %v2290 = vpop.f32.mrf.mxu0
      %2291 = vmatprep.mubr.bf16.mxu0 0
      %2292 = vmatmul.mubr.bf16.gmra.mxu0 %v2148
      %v2293 = vpop.f32.mrf.mxu0
      %v2294 = vadd.f32 0.0, %v2293
      %v2295 = vpop.f32.mrf.mxu0
      %v2296 = vpop.f32.mrf.mxu0
      %v2297 = vadd.f32 0.0, %v2296
      %v2298 = vpop.f32.mrf.mxu0
      %2299 = vmatprep.mubr.bf16.mxu0 0
      %2300 = vmatmul.mubr.bf16.gmra.mxu0 %v2151
      %v2301 = vpop.f32.mrf.mxu0
      %v2302 = vadd.f32 0.0, %v2301
      %v2303 = vpop.f32.mrf.mxu0
      %v2304 = vpop.f32.mrf.mxu0
      %v2305 = vadd.f32 0.0, %v2304
      %v2306 = vpop.f32.mrf.mxu0
      %2307 = vmatprep.mubr.bf16.mxu0 0
      %2308 = vmatmul.mubr.bf16.gmra.mxu0 %v2154
      %v2309 = vpop.f32.mrf.mxu0
      %v2310 = vadd.f32 0.0, %v2309
      %v2311 = vpop.f32.mrf.mxu0
      %v2312 = vpop.f32.mrf.mxu0
      %v2313 = vadd.f32 0.0, %v2312
      %v2314 = vpop.f32.mrf.mxu0
      %2315 = vmatprep.mubr.bf16.mxu0 0
      %2316 = vmatmul.mubr.bf16.gmra.mxu0 %v2157
      %v2317 = vpop.f32.mrf.mxu0
      %v2318 = vadd.f32 0.0, %v2317
      %v2319 = vpop.f32.mrf.mxu0
      %v2320 = vpop.f32.mrf.mxu0
      %v2321 = vadd.f32 0.0, %v2320
      %v2322 = vpop.f32.mrf.mxu0
      %2323 = vdwg.mxu0
      %v2324 = vld [vmem:[%s3] sm:$0x1]
      %v2326 = vlaneseq
      %v2327 = vshrl.u32 %v2326, 7
      %v2328 = vsub.s32 0, %v2327
      %v2329 = vrot.slane %v2324, %v2328
      %v2331 = vmul.f32 %v2198, %v2329
      %v2332 = vmul.f32 %v2201, %v2329
      %v2333 = vmul.f32 %v2206, %v2329
      %v2334 = vmul.f32 %v2209, %v2329
      %v2335 = vmul.f32 %v2214, %v2329
      %v2336 = vmul.f32 %v2217, %v2329
      %v2337 = vmul.f32 %v2222, %v2329
      %v2338 = vmul.f32 %v2225, %v2329
      %v2339 = vmul.f32 %v2230, %v2329
      %v2340 = vmul.f32 %v2233, %v2329
      %v2341 = vmul.f32 %v2238, %v2329
      %v2342 = vmul.f32 %v2241, %v2329
      %v2343 = vmul.f32 %v2246, %v2329
      %v2344 = vmul.f32 %v2249, %v2329
      %v2345 = vmul.f32 %v2254, %v2329
      %v2346 = vmul.f32 %v2257, %v2329
      %v2347 = vmul.f32 %v2262, %v2329
      %v2348 = vmul.f32 %v2265, %v2329
      %v2349 = vmul.f32 %v2270, %v2329
      %v2350 = vmul.f32 %v2273, %v2329
      %v2351 = vmul.f32 %v2278, %v2329
      %v2352 = vmul.f32 %v2281, %v2329
      %v2353 = vmul.f32 %v2286, %v2329
      %v2354 = vmul.f32 %v2289, %v2329
      %v2355 = vmul.f32 %v2294, %v2329
      %v2356 = vmul.f32 %v2297, %v2329
      %v2357 = vmul.f32 %v2302, %v2329
      %v2358 = vmul.f32 %v2305, %v2329
      %v2359 = vmul.f32 %v2310, %v2329
      %v2360 = vmul.f32 %v2313, %v2329
      %v2361 = vmul.f32 %v2318, %v2329
      %v2362 = vmul.f32 %v2321, %v2329
      %v2363 = vld [vmem:[%s4] sm:$0x1]
      %v2365 = vlaneseq
      %v2366 = vshrl.u32 %v2365, 7
      %v2367 = vsub.s32 0, %v2366
      %v2368 = vrot.slane %v2363, %v2367
      %v2370 = vadd.f32 %v2331, %v2368
      %v2371 = vadd.f32 %v2332, %v2368
      %v2372 = vadd.f32 %v2333, %v2368
      %v2373 = vadd.f32 %v2334, %v2368
      %v2374 = vadd.f32 %v2335, %v2368
      %v2375 = vadd.f32 %v2336, %v2368
      %v2376 = vadd.f32 %v2337, %v2368
      %v2377 = vadd.f32 %v2338, %v2368
      %v2378 = vadd.f32 %v2339, %v2368
      %v2379 = vadd.f32 %v2340, %v2368
      %v2380 = vadd.f32 %v2341, %v2368
      %v2381 = vadd.f32 %v2342, %v2368
      %v2382 = vadd.f32 %v2343, %v2368
      %v2383 = vadd.f32 %v2344, %v2368
      %v2384 = vadd.f32 %v2345, %v2368
      %v2385 = vadd.f32 %v2346, %v2368
      %v2386 = vadd.f32 %v2347, %v2368
      %v2387 = vadd.f32 %v2348, %v2368
      %v2388 = vadd.f32 %v2349, %v2368
      %v2389 = vadd.f32 %v2350, %v2368
      %v2390 = vadd.f32 %v2351, %v2368
      %v2391 = vadd.f32 %v2352, %v2368
      %v2392 = vadd.f32 %v2353, %v2368
      %v2393 = vadd.f32 %v2354, %v2368
      %v2394 = vadd.f32 %v2355, %v2368
      %v2395 = vadd.f32 %v2356, %v2368
      %v2396 = vadd.f32 %v2357, %v2368
      %v2397 = vadd.f32 %v2358, %v2368
      %v2398 = vadd.f32 %v2359, %v2368
      %v2399 = vadd.f32 %v2360, %v2368
      %v2400 = vadd.f32 %v2361, %v2368
      %v2401 = vadd.f32 %v2362, %v2368
      %v2402 = vmax.f32 %v2370, 0.0
      %v2403 = vmax.f32 %v2371, 0.0
      %v2404 = vmax.f32 %v2372, 0.0
      %v2405 = vmax.f32 %v2373, 0.0
      %v2406 = vmax.f32 %v2374, 0.0
      %v2407 = vmax.f32 %v2375, 0.0
      %v2408 = vmax.f32 %v2376, 0.0
      %v2409 = vmax.f32 %v2377, 0.0
      %v2410 = vmax.f32 %v2378, 0.0
      %v2411 = vmax.f32 %v2379, 0.0
      %v2412 = vmax.f32 %v2380, 0.0
      %v2413 = vmax.f32 %v2381, 0.0
      %v2414 = vmax.f32 %v2382, 0.0
      %v2415 = vmax.f32 %v2383, 0.0
      %v2416 = vmax.f32 %v2384, 0.0
      %v2417 = vmax.f32 %v2385, 0.0
      %v2418 = vmax.f32 %v2386, 0.0
      %v2419 = vmax.f32 %v2387, 0.0
      %v2420 = vmax.f32 %v2388, 0.0
      %v2421 = vmax.f32 %v2389, 0.0
      %v2422 = vmax.f32 %v2390, 0.0
      %v2423 = vmax.f32 %v2391, 0.0
      %v2424 = vmax.f32 %v2392, 0.0
      %v2425 = vmax.f32 %v2393, 0.0
      %v2426 = vmax.f32 %v2394, 0.0
      %v2427 = vmax.f32 %v2395, 0.0
      %v2428 = vmax.f32 %v2396, 0.0
      %v2429 = vmax.f32 %v2397, 0.0
      %v2430 = vmax.f32 %v2398, 0.0
      %v2431 = vmax.f32 %v2399, 0.0
      %v2432 = vmax.f32 %v2400, 0.0
      %v2433 = vmax.f32 %v2401, 0.0
      %2434 = vst.msk [vmem:[#allocation3] sm:$0xff] %vm280, 0.0
      %2435 = vst.msk [vmem:[#allocation3 + $0x8] sm:$0xff] %vm280, 0.0
      %2436 = vst.msk [vmem:[#allocation3 + $0x10] sm:$0x3] %vm283, 0.0
      %2437 = vst.msk [vmem:[#allocation3 + $0x18] sm:$0xff] %vm280, 0.0
      %2438 = vst.msk [vmem:[#allocation3 + $0x20] sm:$0xff] %vm280, 0.0
      %2439 = vst.msk [vmem:[#allocation3 + $0x28] sm:$0x3] %vm283, 0.0
      %2440 = vst.msk [vmem:[#allocation3 + $0x30] sm:$0xff] %vm280, 0.0
      %2441 = vst.msk [vmem:[#allocation3 + $0x38] sm:$0xff] %vm280, 0.0
      %2442 = vst.msk [vmem:[#allocation3 + $0x40] sm:$0x3] %vm283, 0.0
      %2443 = vst.msk [vmem:[#allocation3 + $0x48] sm:$0xff] %vm280, 0.0
      %2444 = vst.msk [vmem:[#allocation3 + $0x50] sm:$0xff] %vm280, 0.0
      %2445 = vst.msk [vmem:[#allocation3 + $0x58] sm:$0x3] %vm283, 0.0
      %2446 = vst.msk [vmem:[#allocation3 + $0x60] sm:$0xff] %vm280, 0.0
      %2447 = vst.msk [vmem:[#allocation3 + $0x68] sm:$0xff] %vm280, 0.0
      %2448 = vst.msk [vmem:[#allocation3 + $0x70] sm:$0x3] %vm283, 0.0
      %2449 = vst.msk [vmem:[#allocation3 + $0x78] sm:$0xff] %vm280, 0.0
      %2450 = vst.msk [vmem:[#allocation3 + $0x80] sm:$0xff] %vm280, 0.0
      %2451 = vst.msk [vmem:[#allocation3 + $0x88] sm:$0x3] %vm283, 0.0
      %2452 = vst.msk [vmem:[#allocation3 + $0x90] sm:$0xff] %vm280, 0.0
      %2453 = vst.msk [vmem:[#allocation3 + $0x98] sm:$0xff] %vm280, 0.0
      %2454 = vst.msk [vmem:[#allocation3 + $0xa0] sm:$0x3] %vm283, 0.0
      %2455 = vst.msk [vmem:[#allocation3 + $0xa8] sm:$0xff] %vm280, 0.0
      %2456 = vst.msk [vmem:[#allocation3 + $0xb0] sm:$0xff] %vm280, 0.0
      %2457 = vst.msk [vmem:[#allocation3 + $0xb8] sm:$0x3] %vm283, 0.0
      %2458 = vst.msk [vmem:[#allocation3 + $0xc0] sm:$0xff] %vm280, 0.0
      %2459 = vst.msk [vmem:[#allocation3 + $0xc8] sm:$0xff] %vm280, 0.0
      %2460 = vst.msk [vmem:[#allocation3 + $0xd0] sm:$0x3] %vm283, 0.0
      %2461 = vst.msk [vmem:[#allocation3 + $0xd8] sm:$0xff] %vm280, 0.0
      %2462 = vst.msk [vmem:[#allocation3 + $0xe0] sm:$0xff] %vm280, 0.0
      %2463 = vst.msk [vmem:[#allocation3 + $0xe8] sm:$0x3] %vm283, 0.0
      %2464 = vst.msk [vmem:[#allocation3 + $0xf0] sm:$0xff] %vm280, 0.0
      %2465 = vst.msk [vmem:[#allocation3 + $0xf8] sm:$0xff] %vm280, 0.0
      %2466 = vst.msk [vmem:[#allocation3 + $0x100] sm:$0x3] %vm283, 0.0
      %2467 = vst.msk [vmem:[#allocation3 + $0x108] sm:$0xff] %vm280, 0.0
      %2468 = vst.msk [vmem:[#allocation3 + $0x110] sm:$0xff] %vm280, 0.0
      %2469 = vst.msk [vmem:[#allocation3 + $0x118] sm:$0x3] %vm283, 0.0
      %2470 = vst.msk [vmem:[#allocation3 + $0x120] sm:$0xff] %vm280, 0.0
      %2471 = vst.msk [vmem:[#allocation3 + $0x128] sm:$0xff] %vm280, 0.0
      %2472 = vst.msk [vmem:[#allocation3 + $0x130] sm:$0x3] %vm283, 0.0
      %2473 = vst.msk [vmem:[#allocation3 + $0x138] sm:$0xff] %vm280, 0.0
      %2474 = vst.msk [vmem:[#allocation3 + $0x140] sm:$0xff] %vm280, 0.0
      %2475 = vst.msk [vmem:[#allocation3 + $0x148] sm:$0x3] %vm283, 0.0
      %2476 = vst.msk [vmem:[#allocation3 + $0x150] sm:$0xff] %vm280, 0.0
      %2477 = vst.msk [vmem:[#allocation3 + $0x158] sm:$0xff] %vm280, 0.0
      %2478 = vst.msk [vmem:[#allocation3 + $0x160] sm:$0x3] %vm283, 0.0
      %2479 = vst.msk [vmem:[#allocation3 + $0x168] sm:$0xff] %vm280, 0.0
      %2480 = vst.msk [vmem:[#allocation3 + $0x170] sm:$0xff] %vm280, 0.0
      %2481 = vst.msk [vmem:[#allocation3 + $0x178] sm:$0x3] %vm283, 0.0
      %2482 = vst.msk [vmem:[#allocation3 + $0x180] sm:$0xff] %vm280, 0.0
      %2483 = vst.msk [vmem:[#allocation3 + $0x188] sm:$0xff] %vm280, 0.0
      %2484 = vst.msk [vmem:[#allocation3 + $0x190] sm:$0x3] %vm283, 0.0
      %2485 = vst.msk [vmem:[#allocation3 + $0x198] sm:$0xff] %vm280, 0.0
      %2486 = vst.msk [vmem:[#allocation3 + $0x1a0] sm:$0xff] %vm280, 0.0
      %2487 = vst.msk [vmem:[#allocation3 + $0x1a8] sm:$0x3] %vm283, 0.0
      %s2488 = scalar_lea.vmem [#allocation3], 24
      %2489 = vst.msk [vmem:[%s2488 + $0x1] sm:$0xff] %vm280, %v2402
      %2490 = vst.msk [vmem:[%s2488 + $0x9] sm:$0xff] %vm280, %v2403
      %2491 = vst.msk [vmem:[%s2488 + $0x19] sm:$0xff] %vm280, %v2404
      %2492 = vst.msk [vmem:[%s2488 + $0x21] sm:$0xff] %vm280, %v2405
      %2493 = vst.msk [vmem:[%s2488 + $0x31] sm:$0xff] %vm280, %v2406
      %2494 = vst.msk [vmem:[%s2488 + $0x39] sm:$0xff] %vm280, %v2407
      %2495 = vst.msk [vmem:[%s2488 + $0x49] sm:$0xff] %vm280, %v2408
      %2496 = vst.msk [vmem:[%s2488 + $0x51] sm:$0xff] %vm280, %v2409
      %2497 = vst.msk [vmem:[%s2488 + $0x61] sm:$0xff] %vm280, %v2410
      %2498 = vst.msk [vmem:[%s2488 + $0x69] sm:$0xff] %vm280, %v2411
      %2499 = vst.msk [vmem:[%s2488 + $0x79] sm:$0xff] %vm280, %v2412
      %2500 = vst.msk [vmem:[%s2488 + $0x81] sm:$0xff] %vm280, %v2413
      %2501 = vst.msk [vmem:[%s2488 + $0x91] sm:$0xff] %vm280, %v2414
      %2502 = vst.msk [vmem:[%s2488 + $0x99] sm:$0xff] %vm280, %v2415
      %2503 = vst.msk [vmem:[%s2488 + $0xa9] sm:$0xff] %vm280, %v2416
      %2504 = vst.msk [vmem:[%s2488 + $0xb1] sm:$0xff] %vm280, %v2417
      %2505 = vst.msk [vmem:[%s2488 + $0xc1] sm:$0xff] %vm280, %v2418
      %2506 = vst.msk [vmem:[%s2488 + $0xc9] sm:$0xff] %vm280, %v2419
      %2507 = vst.msk [vmem:[%s2488 + $0xd9] sm:$0xff] %vm280, %v2420
      %2508 = vst.msk [vmem:[%s2488 + $0xe1] sm:$0xff] %vm280, %v2421
      %2509 = vst.msk [vmem:[%s2488 + $0xf1] sm:$0xff] %vm280, %v2422
      %2510 = vst.msk [vmem:[%s2488 + $0xf9] sm:$0xff] %vm280, %v2423
      %2511 = vst.msk [vmem:[%s2488 + $0x109] sm:$0xff] %vm280, %v2424
      %2512 = vst.msk [vmem:[%s2488 + $0x111] sm:$0xff] %vm280, %v2425
      %2513 = vst.msk [vmem:[%s2488 + $0x121] sm:$0xff] %vm280, %v2426
      %2514 = vst.msk [vmem:[%s2488 + $0x129] sm:$0xff] %vm280, %v2427
      %2515 = vst.msk [vmem:[%s2488 + $0x139] sm:$0xff] %vm280, %v2428
      %2516 = vst.msk [vmem:[%s2488 + $0x141] sm:$0xff] %vm280, %v2429
      %2517 = vst.msk [vmem:[%s2488 + $0x151] sm:$0xff] %vm280, %v2430
      %2518 = vst.msk [vmem:[%s2488 + $0x159] sm:$0xff] %vm280, %v2431
      %2519 = vst.msk [vmem:[%s2488 + $0x169] sm:$0xff] %vm280, %v2432
      %2520 = vst.msk [vmem:[%s2488 + $0x171] sm:$0xff] %vm280, %v2433
      %v2521 = vld [vmem:[#allocation3] sm:$0xff]
      %v2522 = vld [vmem:[#allocation3 + $0x8] sm:$0xff]
      %v2523 = vld [vmem:[#allocation3 + $0x18] sm:$0xff]
      %v2524 = vld [vmem:[#allocation3 + $0x20] sm:$0xff]
      %v2525 = vld [vmem:[#allocation3 + $0x30] sm:$0xff]
      %v2526 = vld [vmem:[#allocation3 + $0x38] sm:$0xff]
      %v2527 = vld [vmem:[#allocation3 + $0x48] sm:$0xff]
      %v2528 = vld [vmem:[#allocation3 + $0x50] sm:$0xff]
      %v2529 = vld [vmem:[#allocation3 + $0x60] sm:$0xff]
      %v2530 = vld [vmem:[#allocation3 + $0x68] sm:$0xff]
      %v2531 = vld [vmem:[#allocation3 + $0x78] sm:$0xff]
      %v2532 = vld [vmem:[#allocation3 + $0x80] sm:$0xff]
      %v2533 = vld [vmem:[#allocation3 + $0x90] sm:$0xff]
      %v2534 = vld [vmem:[#allocation3 + $0x98] sm:$0xff]
      %v2535 = vld [vmem:[#allocation3 + $0xa8] sm:$0xff]
      %v2536 = vld [vmem:[#allocation3 + $0xb0] sm:$0xff]
      %v2537 = vld [vmem:[#allocation3 + $0xc0] sm:$0xff]
      %v2538 = vld [vmem:[#allocation3 + $0xc8] sm:$0xff]
      %v2539 = vld [vmem:[#allocation3 + $0xd8] sm:$0xff]
      %v2540 = vld [vmem:[#allocation3 + $0xe0] sm:$0xff]
      %v2541 = vld [vmem:[#allocation3 + $0xf0] sm:$0xff]
      %v2542 = vld [vmem:[#allocation3 + $0xf8] sm:$0xff]
      %v2543 = vld [vmem:[#allocation3 + $0x108] sm:$0xff]
      %v2544 = vld [vmem:[#allocation3 + $0x110] sm:$0xff]
      %v2545 = vld [vmem:[#allocation3 + $0x120] sm:$0xff]
      %v2546 = vld [vmem:[#allocation3 + $0x128] sm:$0xff]
      %v2547 = vld [vmem:[#allocation3 + $0x138] sm:$0xff]
      %v2548 = vld [vmem:[#allocation3 + $0x140] sm:$0xff]
      %v2549 = vld [vmem:[#allocation3 + $0x150] sm:$0xff]
      %v2550 = vld [vmem:[#allocation3 + $0x158] sm:$0xff]
      %v2551 = vld [vmem:[#allocation3 + $0x168] sm:$0xff]
      %v2552 = vld [vmem:[#allocation3 + $0x170] sm:$0xff]
      %2553 = vst.msk [vmem:[#allocation4] sm:$0xff] %vm280, %v2521
      %2554 = vst.msk [vmem:[#allocation4 + $0x8] sm:$0xff] %vm280, %v2522
      %2555 = vst.msk [vmem:[#allocation4 + $0x10] sm:$0xff] %vm280, %v2523
      %2556 = vst.msk [vmem:[#allocation4 + $0x18] sm:$0xff] %vm280, %v2524
      %2557 = vst.msk [vmem:[#allocation4 + $0x20] sm:$0xff] %vm280, %v2525
      %2558 = vst.msk [vmem:[#allocation4 + $0x28] sm:$0xff] %vm280, %v2526
      %2559 = vst.msk [vmem:[#allocation4 + $0x30] sm:$0xff] %vm280, %v2527
      %2560 = vst.msk [vmem:[#allocation4 + $0x38] sm:$0xff] %vm280, %v2528
      %2561 = vst.msk [vmem:[#allocation4 + $0x40] sm:$0xff] %vm280, %v2529
      %2562 = vst.msk [vmem:[#allocation4 + $0x48] sm:$0xff] %vm280, %v2530
      %2563 = vst.msk [vmem:[#allocation4 + $0x50] sm:$0xff] %vm280, %v2531
      %2564 = vst.msk [vmem:[#allocation4 + $0x58] sm:$0xff] %vm280, %v2532
      %2565 = vst.msk [vmem:[#allocation4 + $0x60] sm:$0xff] %vm280, %v2533
      %2566 = vst.msk [vmem:[#allocation4 + $0x68] sm:$0xff] %vm280, %v2534
      %2567 = vst.msk [vmem:[#allocation4 + $0x70] sm:$0xff] %vm280, %v2535
      %2568 = vst.msk [vmem:[#allocation4 + $0x78] sm:$0xff] %vm280, %v2536
      %2569 = vst.msk [vmem:[#allocation4 + $0x80] sm:$0xff] %vm280, %v2537
      %2570 = vst.msk [vmem:[#allocation4 + $0x88] sm:$0xff] %vm280, %v2538
      %2571 = vst.msk [vmem:[#allocation4 + $0x90] sm:$0xff] %vm280, %v2539
      %2572 = vst.msk [vmem:[#allocation4 + $0x98] sm:$0xff] %vm280, %v2540
      %2573 = vst.msk [vmem:[#allocation4 + $0xa0] sm:$0xff] %vm280, %v2541
      %2574 = vst.msk [vmem:[#allocation4 + $0xa8] sm:$0xff] %vm280, %v2542
      %2575 = vst.msk [vmem:[#allocation4 + $0xb0] sm:$0xff] %vm280, %v2543
      %2576 = vst.msk [vmem:[#allocation4 + $0xb8] sm:$0xff] %vm280, %v2544
      %2577 = vst.msk [vmem:[#allocation4 + $0xc0] sm:$0xff] %vm280, %v2545
      %2578 = vst.msk [vmem:[#allocation4 + $0xc8] sm:$0xff] %vm280, %v2546
      %2579 = vst.msk [vmem:[#allocation4 + $0xd0] sm:$0xff] %vm280, %v2547
      %2580 = vst.msk [vmem:[#allocation4 + $0xd8] sm:$0xff] %vm280, %v2548
      %2581 = vst.msk [vmem:[#allocation4 + $0xe0] sm:$0xff] %vm280, %v2549
      %2582 = vst.msk [vmem:[#allocation4 + $0xe8] sm:$0xff] %vm280, %v2550
      %2583 = vst.msk [vmem:[#allocation4 + $0xf0] sm:$0xff] %vm280, %v2551
      %2584 = vst.msk [vmem:[#allocation4 + $0xf8] sm:$0xff] %vm280, %v2552
      %v2585 = vld [vmem:[#allocation3 + $0x1] sm:$0xff]
      %v2586 = vld [vmem:[#allocation3 + $0x9] sm:$0xff]
      %v2587 = vld [vmem:[#allocation3 + $0x19] sm:$0xff]
      %v2588 = vld [vmem:[#allocation3 + $0x21] sm:$0xff]
      %v2589 = vld [vmem:[#allocation3 + $0x31] sm:$0xff]
      %v2590 = vld [vmem:[#allocation3 + $0x39] sm:$0xff]
      %v2591 = vld [vmem:[#allocation3 + $0x49] sm:$0xff]
      %v2592 = vld [vmem:[#allocation3 + $0x51] sm:$0xff]
      %v2593 = vld [vmem:[#allocation3 + $0x61] sm:$0xff]
      %v2594 = vld [vmem:[#allocation3 + $0x69] sm:$0xff]
      %v2595 = vld [vmem:[#allocation3 + $0x79] sm:$0xff]
      %v2596 = vld [vmem:[#allocation3 + $0x81] sm:$0xff]
      %v2597 = vld [vmem:[#allocation3 + $0x91] sm:$0xff]
      %v2598 = vld [vmem:[#allocation3 + $0x99] sm:$0xff]
      %v2599 = vld [vmem:[#allocation3 + $0xa9] sm:$0xff]
      %v2600 = vld [vmem:[#allocation3 + $0xb1] sm:$0xff]
      %v2601 = vld [vmem:[#allocation3 + $0xc1] sm:$0xff]
      %v2602 = vld [vmem:[#allocation3 + $0xc9] sm:$0xff]
      %v2603 = vld [vmem:[#allocation3 + $0xd9] sm:$0xff]
      %v2604 = vld [vmem:[#allocation3 + $0xe1] sm:$0xff]
      %v2605 = vld [vmem:[#allocation3 + $0xf1] sm:$0xff]
      %v2606 = vld [vmem:[#allocation3 + $0xf9] sm:$0xff]
      %v2607 = vld [vmem:[#allocation3 + $0x109] sm:$0xff]
      %v2608 = vld [vmem:[#allocation3 + $0x111] sm:$0xff]
      %v2609 = vld [vmem:[#allocation3 + $0x121] sm:$0xff]
      %v2610 = vld [vmem:[#allocation3 + $0x129] sm:$0xff]
      %v2611 = vld [vmem:[#allocation3 + $0x139] sm:$0xff]
      %v2612 = vld [vmem:[#allocation3 + $0x141] sm:$0xff]
      %v2613 = vld [vmem:[#allocation3 + $0x151] sm:$0xff]
      %v2614 = vld [vmem:[#allocation3 + $0x159] sm:$0xff]
      %v2615 = vld [vmem:[#allocation3 + $0x169] sm:$0xff]
      %v2616 = vld [vmem:[#allocation3 + $0x171] sm:$0xff]
      %2649 = vrot.lane.b32.xlu0 %v2585, 4
      %v2650 = vpop.permute.xlu0 %2649
      %2651 = vrot.lane.b32.xlu0 %v2586, 4
      %v2652 = vpop.permute.xlu0 %2651
      %2653 = vrot.lane.b32.xlu0 %v2587, 4
      %v2654 = vpop.permute.xlu0 %2653
      %2655 = vrot.lane.b32.xlu0 %v2588, 4
      %v2656 = vpop.permute.xlu0 %2655
      %2657 = vrot.lane.b32.xlu0 %v2589, 4
      %v2658 = vpop.permute.xlu0 %2657
      %2659 = vrot.lane.b32.xlu0 %v2590, 4
      %v2660 = vpop.permute.xlu0 %2659
      %2661 = vrot.lane.b32.xlu0 %v2591, 4
      %v2662 = vpop.permute.xlu0 %2661
      %2663 = vrot.lane.b32.xlu0 %v2592, 4
      %v2664 = vpop.permute.xlu0 %2663
      %2665 = vrot.lane.b32.xlu0 %v2593, 4
      %v2666 = vpop.permute.xlu0 %2665
      %2667 = vrot.lane.b32.xlu0 %v2594, 4
      %v2668 = vpop.permute.xlu0 %2667
      %2669 = vrot.lane.b32.xlu0 %v2595, 4
      %v2670 = vpop.permute.xlu0 %2669
      %2671 = vrot.lane.b32.xlu0 %v2596, 4
      %v2672 = vpop.permute.xlu0 %2671
      %2673 = vrot.lane.b32.xlu0 %v2597, 4
      %v2674 = vpop.permute.xlu0 %2673
      %2675 = vrot.lane.b32.xlu0 %v2598, 4
      %v2676 = vpop.permute.xlu0 %2675
      %2677 = vrot.lane.b32.xlu0 %v2599, 4
      %v2678 = vpop.permute.xlu0 %2677
      %2679 = vrot.lane.b32.xlu0 %v2600, 4
      %v2680 = vpop.permute.xlu0 %2679
      %2681 = vrot.lane.b32.xlu0 %v2601, 4
      %v2682 = vpop.permute.xlu0 %2681
      %2683 = vrot.lane.b32.xlu0 %v2602, 4
      %v2684 = vpop.permute.xlu0 %2683
      %2685 = vrot.lane.b32.xlu0 %v2603, 4
      %v2686 = vpop.permute.xlu0 %2685
      %2687 = vrot.lane.b32.xlu0 %v2604, 4
      %v2688 = vpop.permute.xlu0 %2687
      %2689 = vrot.lane.b32.xlu0 %v2605, 4
      %v2690 = vpop.permute.xlu0 %2689
      %2691 = vrot.lane.b32.xlu0 %v2606, 4
      %v2692 = vpop.permute.xlu0 %2691
      %2693 = vrot.lane.b32.xlu0 %v2607, 4
      %v2694 = vpop.permute.xlu0 %2693
      %2695 = vrot.lane.b32.xlu0 %v2608, 4
      %v2696 = vpop.permute.xlu0 %2695
      %2697 = vrot.lane.b32.xlu0 %v2609, 4
      %v2698 = vpop.permute.xlu0 %2697
      %2699 = vrot.lane.b32.xlu0 %v2610, 4
      %v2700 = vpop.permute.xlu0 %2699
      %2701 = vrot.lane.b32.xlu0 %v2611, 4
      %v2702 = vpop.permute.xlu0 %2701
      %2703 = vrot.lane.b32.xlu0 %v2612, 4
      %v2704 = vpop.permute.xlu0 %2703
      %2705 = vrot.lane.b32.xlu0 %v2613, 4
      %v2706 = vpop.permute.xlu0 %2705
      %2707 = vrot.lane.b32.xlu0 %v2614, 4
      %v2708 = vpop.permute.xlu0 %2707
      %2709 = vrot.lane.b32.xlu0 %v2615, 4
      %v2710 = vpop.permute.xlu0 %2709
      %2711 = vrot.lane.b32.xlu0 %v2616, 4
      %v2712 = vpop.permute.xlu0 %2711
      %2745 = vst.msk [vmem:[#allocation4] sm:$0xff] %vm657, %v2650
      %2746 = vst.msk [vmem:[#allocation4 + $0x8] sm:$0xff] %vm657, %v2652
      %2747 = vst.msk [vmem:[#allocation4 + $0x10] sm:$0xff] %vm657, %v2654
      %2748 = vst.msk [vmem:[#allocation4 + $0x18] sm:$0xff] %vm657, %v2656
      %2749 = vst.msk [vmem:[#allocation4 + $0x20] sm:$0xff] %vm657, %v2658
      %2750 = vst.msk [vmem:[#allocation4 + $0x28] sm:$0xff] %vm657, %v2660
      %2751 = vst.msk [vmem:[#allocation4 + $0x30] sm:$0xff] %vm657, %v2662
      %2752 = vst.msk [vmem:[#allocation4 + $0x38] sm:$0xff] %vm657, %v2664
      %2753 = vst.msk [vmem:[#allocation4 + $0x40] sm:$0xff] %vm657, %v2666
      %2754 = vst.msk [vmem:[#allocation4 + $0x48] sm:$0xff] %vm657, %v2668
      %2755 = vst.msk [vmem:[#allocation4 + $0x50] sm:$0xff] %vm657, %v2670
      %2756 = vst.msk [vmem:[#allocation4 + $0x58] sm:$0xff] %vm657, %v2672
      %2757 = vst.msk [vmem:[#allocation4 + $0x60] sm:$0xff] %vm657, %v2674
      %2758 = vst.msk [vmem:[#allocation4 + $0x68] sm:$0xff] %vm657, %v2676
      %2759 = vst.msk [vmem:[#allocation4 + $0x70] sm:$0xff] %vm657, %v2678
      %2760 = vst.msk [vmem:[#allocation4 + $0x78] sm:$0xff] %vm657, %v2680
      %2761 = vst.msk [vmem:[#allocation4 + $0x80] sm:$0xff] %vm657, %v2682
      %2762 = vst.msk [vmem:[#allocation4 + $0x88] sm:$0xff] %vm657, %v2684
      %2763 = vst.msk [vmem:[#allocation4 + $0x90] sm:$0xff] %vm657, %v2686
      %2764 = vst.msk [vmem:[#allocation4 + $0x98] sm:$0xff] %vm657, %v2688
      %2765 = vst.msk [vmem:[#allocation4 + $0xa0] sm:$0xff] %vm657, %v2690
      %2766 = vst.msk [vmem:[#allocation4 + $0xa8] sm:$0xff] %vm657, %v2692
      %2767 = vst.msk [vmem:[#allocation4 + $0xb0] sm:$0xff] %vm657, %v2694
      %2768 = vst.msk [vmem:[#allocation4 + $0xb8] sm:$0xff] %vm657, %v2696
      %2769 = vst.msk [vmem:[#allocation4 + $0xc0] sm:$0xff] %vm657, %v2698
      %2770 = vst.msk [vmem:[#allocation4 + $0xc8] sm:$0xff] %vm657, %v2700
      %2771 = vst.msk [vmem:[#allocation4 + $0xd0] sm:$0xff] %vm657, %v2702
      %2772 = vst.msk [vmem:[#allocation4 + $0xd8] sm:$0xff] %vm657, %v2704
      %2773 = vst.msk [vmem:[#allocation4 + $0xe0] sm:$0xff] %vm657, %v2706
      %2774 = vst.msk [vmem:[#allocation4 + $0xe8] sm:$0xff] %vm657, %v2708
      %2775 = vst.msk [vmem:[#allocation4 + $0xf0] sm:$0xff] %vm657, %v2710
      %2776 = vst.msk [vmem:[#allocation4 + $0xf8] sm:$0xff] %vm657, %v2712
      %v2777 = vld [vmem:[#allocation3 + $0x2] sm:$0xff]
      %v2778 = vld [vmem:[#allocation3 + $0xa] sm:$0xff]
      %v2779 = vld [vmem:[#allocation3 + $0x1a] sm:$0xff]
      %v2780 = vld [vmem:[#allocation3 + $0x22] sm:$0xff]
      %v2781 = vld [vmem:[#allocation3 + $0x32] sm:$0xff]
      %v2782 = vld [vmem:[#allocation3 + $0x3a] sm:$0xff]
      %v2783 = vld [vmem:[#allocation3 + $0x4a] sm:$0xff]
      %v2784 = vld [vmem:[#allocation3 + $0x52] sm:$0xff]
      %v2785 = vld [vmem:[#allocation3 + $0x62] sm:$0xff]
      %v2786 = vld [vmem:[#allocation3 + $0x6a] sm:$0xff]
      %v2787 = vld [vmem:[#allocation3 + $0x7a] sm:$0xff]
      %v2788 = vld [vmem:[#allocation3 + $0x82] sm:$0xff]
      %v2789 = vld [vmem:[#allocation3 + $0x92] sm:$0xff]
      %v2790 = vld [vmem:[#allocation3 + $0x9a] sm:$0xff]
      %v2791 = vld [vmem:[#allocation3 + $0xaa] sm:$0xff]
      %v2792 = vld [vmem:[#allocation3 + $0xb2] sm:$0xff]
      %v2793 = vld [vmem:[#allocation3 + $0xc2] sm:$0xff]
      %v2794 = vld [vmem:[#allocation3 + $0xca] sm:$0xff]
      %v2795 = vld [vmem:[#allocation3 + $0xda] sm:$0xff]
      %v2796 = vld [vmem:[#allocation3 + $0xe2] sm:$0xff]
      %v2797 = vld [vmem:[#allocation3 + $0xf2] sm:$0xff]
      %v2798 = vld [vmem:[#allocation3 + $0xfa] sm:$0xff]
      %v2799 = vld [vmem:[#allocation3 + $0x10a] sm:$0xff]
      %v2800 = vld [vmem:[#allocation3 + $0x112] sm:$0xff]
      %v2801 = vld [vmem:[#allocation3 + $0x122] sm:$0xff]
      %v2802 = vld [vmem:[#allocation3 + $0x12a] sm:$0xff]
      %v2803 = vld [vmem:[#allocation3 + $0x13a] sm:$0xff]
      %v2804 = vld [vmem:[#allocation3 + $0x142] sm:$0xff]
      %v2805 = vld [vmem:[#allocation3 + $0x152] sm:$0xff]
      %v2806 = vld [vmem:[#allocation3 + $0x15a] sm:$0xff]
      %v2807 = vld [vmem:[#allocation3 + $0x16a] sm:$0xff]
      %v2808 = vld [vmem:[#allocation3 + $0x172] sm:$0xff]
      %2841 = vrot.lane.b32.xlu0 %v2777, 8
      %v2842 = vpop.permute.xlu0 %2841
      %2843 = vrot.lane.b32.xlu0 %v2778, 8
      %v2844 = vpop.permute.xlu0 %2843
      %2845 = vrot.lane.b32.xlu0 %v2779, 8
      %v2846 = vpop.permute.xlu0 %2845
      %2847 = vrot.lane.b32.xlu0 %v2780, 8
      %v2848 = vpop.permute.xlu0 %2847
      %2849 = vrot.lane.b32.xlu0 %v2781, 8
      %v2850 = vpop.permute.xlu0 %2849
      %2851 = vrot.lane.b32.xlu0 %v2782, 8
      %v2852 = vpop.permute.xlu0 %2851
      %2853 = vrot.lane.b32.xlu0 %v2783, 8
      %v2854 = vpop.permute.xlu0 %2853
      %2855 = vrot.lane.b32.xlu0 %v2784, 8
      %v2856 = vpop.permute.xlu0 %2855
      %2857 = vrot.lane.b32.xlu0 %v2785, 8
      %v2858 = vpop.permute.xlu0 %2857
      %2859 = vrot.lane.b32.xlu0 %v2786, 8
      %v2860 = vpop.permute.xlu0 %2859
      %2861 = vrot.lane.b32.xlu0 %v2787, 8
      %v2862 = vpop.permute.xlu0 %2861
      %2863 = vrot.lane.b32.xlu0 %v2788, 8
      %v2864 = vpop.permute.xlu0 %2863
      %2865 = vrot.lane.b32.xlu0 %v2789, 8
      %v2866 = vpop.permute.xlu0 %2865
      %2867 = vrot.lane.b32.xlu0 %v2790, 8
      %v2868 = vpop.permute.xlu0 %2867
      %2869 = vrot.lane.b32.xlu0 %v2791, 8
      %v2870 = vpop.permute.xlu0 %2869
      %2871 = vrot.lane.b32.xlu0 %v2792, 8
      %v2872 = vpop.permute.xlu0 %2871
      %2873 = vrot.lane.b32.xlu0 %v2793, 8
      %v2874 = vpop.permute.xlu0 %2873
      %2875 = vrot.lane.b32.xlu0 %v2794, 8
      %v2876 = vpop.permute.xlu0 %2875
      %2877 = vrot.lane.b32.xlu0 %v2795, 8
      %v2878 = vpop.permute.xlu0 %2877
      %2879 = vrot.lane.b32.xlu0 %v2796, 8
      %v2880 = vpop.permute.xlu0 %2879
      %2881 = vrot.lane.b32.xlu0 %v2797, 8
      %v2882 = vpop.permute.xlu0 %2881
      %2883 = vrot.lane.b32.xlu0 %v2798, 8
      %v2884 = vpop.permute.xlu0 %2883
      %2885 = vrot.lane.b32.xlu0 %v2799, 8
      %v2886 = vpop.permute.xlu0 %2885
      %2887 = vrot.lane.b32.xlu0 %v2800, 8
      %v2888 = vpop.permute.xlu0 %2887
      %2889 = vrot.lane.b32.xlu0 %v2801, 8
      %v2890 = vpop.permute.xlu0 %2889
      %2891 = vrot.lane.b32.xlu0 %v2802, 8
      %v2892 = vpop.permute.xlu0 %2891
      %2893 = vrot.lane.b32.xlu0 %v2803, 8
      %v2894 = vpop.permute.xlu0 %2893
      %2895 = vrot.lane.b32.xlu0 %v2804, 8
      %v2896 = vpop.permute.xlu0 %2895
      %2897 = vrot.lane.b32.xlu0 %v2805, 8
      %v2898 = vpop.permute.xlu0 %2897
      %2899 = vrot.lane.b32.xlu0 %v2806, 8
      %v2900 = vpop.permute.xlu0 %2899
      %2901 = vrot.lane.b32.xlu0 %v2807, 8
      %v2902 = vpop.permute.xlu0 %2901
      %2903 = vrot.lane.b32.xlu0 %v2808, 8
      %v2904 = vpop.permute.xlu0 %2903
      %2937 = vst.msk [vmem:[#allocation4] sm:$0xff] %vm850, %v2842
      %2938 = vst.msk [vmem:[#allocation4 + $0x8] sm:$0xff] %vm850, %v2844
      %2939 = vst.msk [vmem:[#allocation4 + $0x10] sm:$0xff] %vm850, %v2846
      %2940 = vst.msk [vmem:[#allocation4 + $0x18] sm:$0xff] %vm850, %v2848
      %2941 = vst.msk [vmem:[#allocation4 + $0x20] sm:$0xff] %vm850, %v2850
      %2942 = vst.msk [vmem:[#allocation4 + $0x28] sm:$0xff] %vm850, %v2852
      %2943 = vst.msk [vmem:[#allocation4 + $0x30] sm:$0xff] %vm850, %v2854
      %2944 = vst.msk [vmem:[#allocation4 + $0x38] sm:$0xff] %vm850, %v2856
      %2945 = vst.msk [vmem:[#allocation4 + $0x40] sm:$0xff] %vm850, %v2858
      %2946 = vst.msk [vmem:[#allocation4 + $0x48] sm:$0xff] %vm850, %v2860
      %2947 = vst.msk [vmem:[#allocation4 + $0x50] sm:$0xff] %vm850, %v2862
      %2948 = vst.msk [vmem:[#allocation4 + $0x58] sm:$0xff] %vm850, %v2864
      %2949 = vst.msk [vmem:[#allocation4 + $0x60] sm:$0xff] %vm850, %v2866
      %2950 = vst.msk [vmem:[#allocation4 + $0x68] sm:$0xff] %vm850, %v2868
      %2951 = vst.msk [vmem:[#allocation4 + $0x70] sm:$0xff] %vm850, %v2870
      %2952 = vst.msk [vmem:[#allocation4 + $0x78] sm:$0xff] %vm850, %v2872
      %2953 = vst.msk [vmem:[#allocation4 + $0x80] sm:$0xff] %vm850, %v2874
      %2954 = vst.msk [vmem:[#allocation4 + $0x88] sm:$0xff] %vm850, %v2876
      %2955 = vst.msk [vmem:[#allocation4 + $0x90] sm:$0xff] %vm850, %v2878
      %2956 = vst.msk [vmem:[#allocation4 + $0x98] sm:$0xff] %vm850, %v2880
      %2957 = vst.msk [vmem:[#allocation4 + $0xa0] sm:$0xff] %vm850, %v2882
      %2958 = vst.msk [vmem:[#allocation4 + $0xa8] sm:$0xff] %vm850, %v2884
      %2959 = vst.msk [vmem:[#allocation4 + $0xb0] sm:$0xff] %vm850, %v2886
      %2960 = vst.msk [vmem:[#allocation4 + $0xb8] sm:$0xff] %vm850, %v2888
      %2961 = vst.msk [vmem:[#allocation4 + $0xc0] sm:$0xff] %vm850, %v2890
      %2962 = vst.msk [vmem:[#allocation4 + $0xc8] sm:$0xff] %vm850, %v2892
      %2963 = vst.msk [vmem:[#allocation4 + $0xd0] sm:$0xff] %vm850, %v2894
      %2964 = vst.msk [vmem:[#allocation4 + $0xd8] sm:$0xff] %vm850, %v2896
      %2965 = vst.msk [vmem:[#allocation4 + $0xe0] sm:$0xff] %vm850, %v2898
      %2966 = vst.msk [vmem:[#allocation4 + $0xe8] sm:$0xff] %vm850, %v2900
      %2967 = vst.msk [vmem:[#allocation4 + $0xf0] sm:$0xff] %vm850, %v2902
      %2968 = vst.msk [vmem:[#allocation4 + $0xf8] sm:$0xff] %vm850, %v2904
      %v2969 = vld [vmem:[%s2488] sm:$0xff]
      %v2970 = vld [vmem:[%s2488 + $0x8] sm:$0xff]
      %v2971 = vld [vmem:[%s2488 + $0x18] sm:$0xff]
      %v2972 = vld [vmem:[%s2488 + $0x20] sm:$0xff]
      %v2973 = vld [vmem:[%s2488 + $0x30] sm:$0xff]
      %v2974 = vld [vmem:[%s2488 + $0x38] sm:$0xff]
      %v2975 = vld [vmem:[%s2488 + $0x48] sm:$0xff]
      %v2976 = vld [vmem:[%s2488 + $0x50] sm:$0xff]
      %v2977 = vld [vmem:[%s2488 + $0x60] sm:$0xff]
      %v2978 = vld [vmem:[%s2488 + $0x68] sm:$0xff]
      %v2979 = vld [vmem:[%s2488 + $0x78] sm:$0xff]
      %v2980 = vld [vmem:[%s2488 + $0x80] sm:$0xff]
      %v2981 = vld [vmem:[%s2488 + $0x90] sm:$0xff]
      %v2982 = vld [vmem:[%s2488 + $0x98] sm:$0xff]
      %v2983 = vld [vmem:[%s2488 + $0xa8] sm:$0xff]
      %v2984 = vld [vmem:[%s2488 + $0xb0] sm:$0xff]
      %v2985 = vld [vmem:[%s2488 + $0xc0] sm:$0xff]
      %v2986 = vld [vmem:[%s2488 + $0xc8] sm:$0xff]
      %v2987 = vld [vmem:[%s2488 + $0xd8] sm:$0xff]
      %v2988 = vld [vmem:[%s2488 + $0xe0] sm:$0xff]
      %v2989 = vld [vmem:[%s2488 + $0xf0] sm:$0xff]
      %v2990 = vld [vmem:[%s2488 + $0xf8] sm:$0xff]
      %v2991 = vld [vmem:[%s2488 + $0x108] sm:$0xff]
      %v2992 = vld [vmem:[%s2488 + $0x110] sm:$0xff]
      %v2993 = vld [vmem:[%s2488 + $0x120] sm:$0xff]
      %v2994 = vld [vmem:[%s2488 + $0x128] sm:$0xff]
      %v2995 = vld [vmem:[%s2488 + $0x138] sm:$0xff]
      %v2996 = vld [vmem:[%s2488 + $0x140] sm:$0xff]
      %v2997 = vld [vmem:[%s2488 + $0x150] sm:$0xff]
      %v2998 = vld [vmem:[%s2488 + $0x158] sm:$0xff]
      %v2999 = vld [vmem:[%s2488 + $0x168] sm:$0xff]
      %v3000 = vld [vmem:[%s2488 + $0x170] sm:$0xff]
      %3033 = vrot.lane.b32.xlu0 %v2969, 12
      %v3034 = vpop.permute.xlu0 %3033
      %3035 = vrot.lane.b32.xlu0 %v2970, 12
      %v3036 = vpop.permute.xlu0 %3035
      %3037 = vrot.lane.b32.xlu0 %v2971, 12
      %v3038 = vpop.permute.xlu0 %3037
      %3039 = vrot.lane.b32.xlu0 %v2972, 12
      %v3040 = vpop.permute.xlu0 %3039
      %3041 = vrot.lane.b32.xlu0 %v2973, 12
      %v3042 = vpop.permute.xlu0 %3041
      %3043 = vrot.lane.b32.xlu0 %v2974, 12
      %v3044 = vpop.permute.xlu0 %3043
      %3045 = vrot.lane.b32.xlu0 %v2975, 12
      %v3046 = vpop.permute.xlu0 %3045
      %3047 = vrot.lane.b32.xlu0 %v2976, 12
      %v3048 = vpop.permute.xlu0 %3047
      %3049 = vrot.lane.b32.xlu0 %v2977, 12
      %v3050 = vpop.permute.xlu0 %3049
      %3051 = vrot.lane.b32.xlu0 %v2978, 12
      %v3052 = vpop.permute.xlu0 %3051
      %3053 = vrot.lane.b32.xlu0 %v2979, 12
      %v3054 = vpop.permute.xlu0 %3053
      %3055 = vrot.lane.b32.xlu0 %v2980, 12
      %v3056 = vpop.permute.xlu0 %3055
      %3057 = vrot.lane.b32.xlu0 %v2981, 12
      %v3058 = vpop.permute.xlu0 %3057
      %3059 = vrot.lane.b32.xlu0 %v2982, 12
      %v3060 = vpop.permute.xlu0 %3059
      %3061 = vrot.lane.b32.xlu0 %v2983, 12
      %v3062 = vpop.permute.xlu0 %3061
      %3063 = vrot.lane.b32.xlu0 %v2984, 12
      %v3064 = vpop.permute.xlu0 %3063
      %3065 = vrot.lane.b32.xlu0 %v2985, 12
      %v3066 = vpop.permute.xlu0 %3065
      %3067 = vrot.lane.b32.xlu0 %v2986, 12
      %v3068 = vpop.permute.xlu0 %3067
      %3069 = vrot.lane.b32.xlu0 %v2987, 12
      %v3070 = vpop.permute.xlu0 %3069
      %3071 = vrot.lane.b32.xlu0 %v2988, 12
      %v3072 = vpop.permute.xlu0 %3071
      %3073 = vrot.lane.b32.xlu0 %v2989, 12
      %v3074 = vpop.permute.xlu0 %3073
      %3075 = vrot.lane.b32.xlu0 %v2990, 12
      %v3076 = vpop.permute.xlu0 %3075
      %3077 = vrot.lane.b32.xlu0 %v2991, 12
      %v3078 = vpop.permute.xlu0 %3077
      %3079 = vrot.lane.b32.xlu0 %v2992, 12
      %v3080 = vpop.permute.xlu0 %3079
      %3081 = vrot.lane.b32.xlu0 %v2993, 12
      %v3082 = vpop.permute.xlu0 %3081
      %3083 = vrot.lane.b32.xlu0 %v2994, 12
      %v3084 = vpop.permute.xlu0 %3083
      %3085 = vrot.lane.b32.xlu0 %v2995, 12
      %v3086 = vpop.permute.xlu0 %3085
      %3087 = vrot.lane.b32.xlu0 %v2996, 12
      %v3088 = vpop.permute.xlu0 %3087
      %3089 = vrot.lane.b32.xlu0 %v2997, 12
      %v3090 = vpop.permute.xlu0 %3089
      %3091 = vrot.lane.b32.xlu0 %v2998, 12
      %v3092 = vpop.permute.xlu0 %3091
      %3093 = vrot.lane.b32.xlu0 %v2999, 12
      %v3094 = vpop.permute.xlu0 %3093
      %3095 = vrot.lane.b32.xlu0 %v3000, 12
      %v3096 = vpop.permute.xlu0 %3095
      %3129 = vst.msk [vmem:[#allocation4] sm:$0xff] %vm1043, %v3034
      %3130 = vst.msk [vmem:[#allocation4 + $0x8] sm:$0xff] %vm1043, %v3036
      %3131 = vst.msk [vmem:[#allocation4 + $0x10] sm:$0xff] %vm1043, %v3038
      %3132 = vst.msk [vmem:[#allocation4 + $0x18] sm:$0xff] %vm1043, %v3040
      %3133 = vst.msk [vmem:[#allocation4 + $0x20] sm:$0xff] %vm1043, %v3042
      %3134 = vst.msk [vmem:[#allocation4 + $0x28] sm:$0xff] %vm1043, %v3044
      %3135 = vst.msk [vmem:[#allocation4 + $0x30] sm:$0xff] %vm1043, %v3046
      %3136 = vst.msk [vmem:[#allocation4 + $0x38] sm:$0xff] %vm1043, %v3048
      %3137 = vst.msk [vmem:[#allocation4 + $0x40] sm:$0xff] %vm1043, %v3050
      %3138 = vst.msk [vmem:[#allocation4 + $0x48] sm:$0xff] %vm1043, %v3052
      %3139 = vst.msk [vmem:[#allocation4 + $0x50] sm:$0xff] %vm1043, %v3054
      %3140 = vst.msk [vmem:[#allocation4 + $0x58] sm:$0xff] %vm1043, %v3056
      %3141 = vst.msk [vmem:[#allocation4 + $0x60] sm:$0xff] %vm1043, %v3058
      %3142 = vst.msk [vmem:[#allocation4 + $0x68] sm:$0xff] %vm1043, %v3060
      %3143 = vst.msk [vmem:[#allocation4 + $0x70] sm:$0xff] %vm1043, %v3062
      %3144 = vst.msk [vmem:[#allocation4 + $0x78] sm:$0xff] %vm1043, %v3064
      %3145 = vst.msk [vmem:[#allocation4 + $0x80] sm:$0xff] %vm1043, %v3066
      %3146 = vst.msk [vmem:[#allocation4 + $0x88] sm:$0xff] %vm1043, %v3068
      %3147 = vst.msk [vmem:[#allocation4 + $0x90] sm:$0xff] %vm1043, %v3070
      %3148 = vst.msk [vmem:[#allocation4 + $0x98] sm:$0xff] %vm1043, %v3072
      %3149 = vst.msk [vmem:[#allocation4 + $0xa0] sm:$0xff] %vm1043, %v3074
      %3150 = vst.msk [vmem:[#allocation4 + $0xa8] sm:$0xff] %vm1043, %v3076
      %3151 = vst.msk [vmem:[#allocation4 + $0xb0] sm:$0xff] %vm1043, %v3078
      %3152 = vst.msk [vmem:[#allocation4 + $0xb8] sm:$0xff] %vm1043, %v3080
      %3153 = vst.msk [vmem:[#allocation4 + $0xc0] sm:$0xff] %vm1043, %v3082
      %3154 = vst.msk [vmem:[#allocation4 + $0xc8] sm:$0xff] %vm1043, %v3084
      %3155 = vst.msk [vmem:[#allocation4 + $0xd0] sm:$0xff] %vm1043, %v3086
      %3156 = vst.msk [vmem:[#allocation4 + $0xd8] sm:$0xff] %vm1043, %v3088
      %3157 = vst.msk [vmem:[#allocation4 + $0xe0] sm:$0xff] %vm1043, %v3090
      %3158 = vst.msk [vmem:[#allocation4 + $0xe8] sm:$0xff] %vm1043, %v3092
      %3159 = vst.msk [vmem:[#allocation4 + $0xf0] sm:$0xff] %vm1043, %v3094
      %3160 = vst.msk [vmem:[#allocation4 + $0xf8] sm:$0xff] %vm1043, %v3096
      %v3161 = vld [vmem:[%s2488 + $0x1] sm:$0xff]
      %v3162 = vld [vmem:[%s2488 + $0x9] sm:$0xff]
      %v3163 = vld [vmem:[%s2488 + $0x19] sm:$0xff]
      %v3164 = vld [vmem:[%s2488 + $0x21] sm:$0xff]
      %v3165 = vld [vmem:[%s2488 + $0x31] sm:$0xff]
      %v3166 = vld [vmem:[%s2488 + $0x39] sm:$0xff]
      %v3167 = vld [vmem:[%s2488 + $0x49] sm:$0xff]
      %v3168 = vld [vmem:[%s2488 + $0x51] sm:$0xff]
      %v3169 = vld [vmem:[%s2488 + $0x61] sm:$0xff]
      %v3170 = vld [vmem:[%s2488 + $0x69] sm:$0xff]
      %v3171 = vld [vmem:[%s2488 + $0x79] sm:$0xff]
      %v3172 = vld [vmem:[%s2488 + $0x81] sm:$0xff]
      %v3173 = vld [vmem:[%s2488 + $0x91] sm:$0xff]
      %v3174 = vld [vmem:[%s2488 + $0x99] sm:$0xff]
      %v3175 = vld [vmem:[%s2488 + $0xa9] sm:$0xff]
      %v3176 = vld [vmem:[%s2488 + $0xb1] sm:$0xff]
      %v3177 = vld [vmem:[%s2488 + $0xc1] sm:$0xff]
      %v3178 = vld [vmem:[%s2488 + $0xc9] sm:$0xff]
      %v3179 = vld [vmem:[%s2488 + $0xd9] sm:$0xff]
      %v3180 = vld [vmem:[%s2488 + $0xe1] sm:$0xff]
      %v3181 = vld [vmem:[%s2488 + $0xf1] sm:$0xff]
      %v3182 = vld [vmem:[%s2488 + $0xf9] sm:$0xff]
      %v3183 = vld [vmem:[%s2488 + $0x109] sm:$0xff]
      %v3184 = vld [vmem:[%s2488 + $0x111] sm:$0xff]
      %v3185 = vld [vmem:[%s2488 + $0x121] sm:$0xff]
      %v3186 = vld [vmem:[%s2488 + $0x129] sm:$0xff]
      %v3187 = vld [vmem:[%s2488 + $0x139] sm:$0xff]
      %v3188 = vld [vmem:[%s2488 + $0x141] sm:$0xff]
      %v3189 = vld [vmem:[%s2488 + $0x151] sm:$0xff]
      %v3190 = vld [vmem:[%s2488 + $0x159] sm:$0xff]
      %v3191 = vld [vmem:[%s2488 + $0x169] sm:$0xff]
      %v3192 = vld [vmem:[%s2488 + $0x171] sm:$0xff]
      %3225 = vrot.lane.b32.xlu0 %v3161, 16
      %v3226 = vpop.permute.xlu0 %3225
      %3227 = vrot.lane.b32.xlu0 %v3162, 16
      %v3228 = vpop.permute.xlu0 %3227
      %3229 = vrot.lane.b32.xlu0 %v3163, 16
      %v3230 = vpop.permute.xlu0 %3229
      %3231 = vrot.lane.b32.xlu0 %v3164, 16
      %v3232 = vpop.permute.xlu0 %3231
      %3233 = vrot.lane.b32.xlu0 %v3165, 16
      %v3234 = vpop.permute.xlu0 %3233
      %3235 = vrot.lane.b32.xlu0 %v3166, 16
      %v3236 = vpop.permute.xlu0 %3235
      %3237 = vrot.lane.b32.xlu0 %v3167, 16
      %v3238 = vpop.permute.xlu0 %3237
      %3239 = vrot.lane.b32.xlu0 %v3168, 16
      %v3240 = vpop.permute.xlu0 %3239
      %3241 = vrot.lane.b32.xlu0 %v3169, 16
      %v3242 = vpop.permute.xlu0 %3241
      %3243 = vrot.lane.b32.xlu0 %v3170, 16
      %v3244 = vpop.permute.xlu0 %3243
      %3245 = vrot.lane.b32.xlu0 %v3171, 16
      %v3246 = vpop.permute.xlu0 %3245
      %3247 = vrot.lane.b32.xlu0 %v3172, 16
      %v3248 = vpop.permute.xlu0 %3247
      %3249 = vrot.lane.b32.xlu0 %v3173, 16
      %v3250 = vpop.permute.xlu0 %3249
      %3251 = vrot.lane.b32.xlu0 %v3174, 16
      %v3252 = vpop.permute.xlu0 %3251
      %3253 = vrot.lane.b32.xlu0 %v3175, 16
      %v3254 = vpop.permute.xlu0 %3253
      %3255 = vrot.lane.b32.xlu0 %v3176, 16
      %v3256 = vpop.permute.xlu0 %3255
      %3257 = vrot.lane.b32.xlu0 %v3177, 16
      %v3258 = vpop.permute.xlu0 %3257
      %3259 = vrot.lane.b32.xlu0 %v3178, 16
      %v3260 = vpop.permute.xlu0 %3259
      %3261 = vrot.lane.b32.xlu0 %v3179, 16
      %v3262 = vpop.permute.xlu0 %3261
      %3263 = vrot.lane.b32.xlu0 %v3180, 16
      %v3264 = vpop.permute.xlu0 %3263
      %3265 = vrot.lane.b32.xlu0 %v3181, 16
      %v3266 = vpop.permute.xlu0 %3265
      %3267 = vrot.lane.b32.xlu0 %v3182, 16
      %v3268 = vpop.permute.xlu0 %3267
      %3269 = vrot.lane.b32.xlu0 %v3183, 16
      %v3270 = vpop.permute.xlu0 %3269
      %3271 = vrot.lane.b32.xlu0 %v3184, 16
      %v3272 = vpop.permute.xlu0 %3271
      %3273 = vrot.lane.b32.xlu0 %v3185, 16
      %v3274 = vpop.permute.xlu0 %3273
      %3275 = vrot.lane.b32.xlu0 %v3186, 16
      %v3276 = vpop.permute.xlu0 %3275
      %3277 = vrot.lane.b32.xlu0 %v3187, 16
      %v3278 = vpop.permute.xlu0 %3277
      %3279 = vrot.lane.b32.xlu0 %v3188, 16
      %v3280 = vpop.permute.xlu0 %3279
      %3281 = vrot.lane.b32.xlu0 %v3189, 16
      %v3282 = vpop.permute.xlu0 %3281
      %3283 = vrot.lane.b32.xlu0 %v3190, 16
      %v3284 = vpop.permute.xlu0 %3283
      %3285 = vrot.lane.b32.xlu0 %v3191, 16
      %v3286 = vpop.permute.xlu0 %3285
      %3287 = vrot.lane.b32.xlu0 %v3192, 16
      %v3288 = vpop.permute.xlu0 %3287
      %3321 = vst.msk [vmem:[#allocation4] sm:$0xff] %vm1236, %v3226
      %3322 = vst.msk [vmem:[#allocation4 + $0x8] sm:$0xff] %vm1236, %v3228
      %3323 = vst.msk [vmem:[#allocation4 + $0x10] sm:$0xff] %vm1236, %v3230
      %3324 = vst.msk [vmem:[#allocation4 + $0x18] sm:$0xff] %vm1236, %v3232
      %3325 = vst.msk [vmem:[#allocation4 + $0x20] sm:$0xff] %vm1236, %v3234
      %3326 = vst.msk [vmem:[#allocation4 + $0x28] sm:$0xff] %vm1236, %v3236
      %3327 = vst.msk [vmem:[#allocation4 + $0x30] sm:$0xff] %vm1236, %v3238
      %3328 = vst.msk [vmem:[#allocation4 + $0x38] sm:$0xff] %vm1236, %v3240
      %3329 = vst.msk [vmem:[#allocation4 + $0x40] sm:$0xff] %vm1236, %v3242
      %3330 = vst.msk [vmem:[#allocation4 + $0x48] sm:$0xff] %vm1236, %v3244
      %3331 = vst.msk [vmem:[#allocation4 + $0x50] sm:$0xff] %vm1236, %v3246
      %3332 = vst.msk [vmem:[#allocation4 + $0x58] sm:$0xff] %vm1236, %v3248
      %3333 = vst.msk [vmem:[#allocation4 + $0x60] sm:$0xff] %vm1236, %v3250
      %3334 = vst.msk [vmem:[#allocation4 + $0x68] sm:$0xff] %vm1236, %v3252
      %3335 = vst.msk [vmem:[#allocation4 + $0x70] sm:$0xff] %vm1236, %v3254
      %3336 = vst.msk [vmem:[#allocation4 + $0x78] sm:$0xff] %vm1236, %v3256
      %3337 = vst.msk [vmem:[#allocation4 + $0x80] sm:$0xff] %vm1236, %v3258
      %3338 = vst.msk [vmem:[#allocation4 + $0x88] sm:$0xff] %vm1236, %v3260
      %3339 = vst.msk [vmem:[#allocation4 + $0x90] sm:$0xff] %vm1236, %v3262
      %3340 = vst.msk [vmem:[#allocation4 + $0x98] sm:$0xff] %vm1236, %v3264
      %3341 = vst.msk [vmem:[#allocation4 + $0xa0] sm:$0xff] %vm1236, %v3266
      %3342 = vst.msk [vmem:[#allocation4 + $0xa8] sm:$0xff] %vm1236, %v3268
      %3343 = vst.msk [vmem:[#allocation4 + $0xb0] sm:$0xff] %vm1236, %v3270
      %3344 = vst.msk [vmem:[#allocation4 + $0xb8] sm:$0xff] %vm1236, %v3272
      %3345 = vst.msk [vmem:[#allocation4 + $0xc0] sm:$0xff] %vm1236, %v3274
      %3346 = vst.msk [vmem:[#allocation4 + $0xc8] sm:$0xff] %vm1236, %v3276
      %3347 = vst.msk [vmem:[#allocation4 + $0xd0] sm:$0xff] %vm1236, %v3278
      %3348 = vst.msk [vmem:[#allocation4 + $0xd8] sm:$0xff] %vm1236, %v3280
      %3349 = vst.msk [vmem:[#allocation4 + $0xe0] sm:$0xff] %vm1236, %v3282
      %3350 = vst.msk [vmem:[#allocation4 + $0xe8] sm:$0xff] %vm1236, %v3284
      %3351 = vst.msk [vmem:[#allocation4 + $0xf0] sm:$0xff] %vm1236, %v3286
      %3352 = vst.msk [vmem:[#allocation4 + $0xf8] sm:$0xff] %vm1236, %v3288
      %v3353 = vld [vmem:[%s2488 + $0x2] sm:$0xff]
      %v3354 = vld [vmem:[%s2488 + $0xa] sm:$0xff]
      %v3355 = vld [vmem:[%s2488 + $0x1a] sm:$0xff]
      %v3356 = vld [vmem:[%s2488 + $0x22] sm:$0xff]
      %v3357 = vld [vmem:[%s2488 + $0x32] sm:$0xff]
      %v3358 = vld [vmem:[%s2488 + $0x3a] sm:$0xff]
      %v3359 = vld [vmem:[%s2488 + $0x4a] sm:$0xff]
      %v3360 = vld [vmem:[%s2488 + $0x52] sm:$0xff]
      %v3361 = vld [vmem:[%s2488 + $0x62] sm:$0xff]
      %v3362 = vld [vmem:[%s2488 + $0x6a] sm:$0xff]
      %v3363 = vld [vmem:[%s2488 + $0x7a] sm:$0xff]
      %v3364 = vld [vmem:[%s2488 + $0x82] sm:$0xff]
      %v3365 = vld [vmem:[%s2488 + $0x92] sm:$0xff]
      %v3366 = vld [vmem:[%s2488 + $0x9a] sm:$0xff]
      %v3367 = vld [vmem:[%s2488 + $0xaa] sm:$0xff]
      %v3368 = vld [vmem:[%s2488 + $0xb2] sm:$0xff]
      %v3369 = vld [vmem:[%s2488 + $0xc2] sm:$0xff]
      %v3370 = vld [vmem:[%s2488 + $0xca] sm:$0xff]
      %v3371 = vld [vmem:[%s2488 + $0xda] sm:$0xff]
      %v3372 = vld [vmem:[%s2488 + $0xe2] sm:$0xff]
      %v3373 = vld [vmem:[%s2488 + $0xf2] sm:$0xff]
      %v3374 = vld [vmem:[%s2488 + $0xfa] sm:$0xff]
      %v3375 = vld [vmem:[%s2488 + $0x10a] sm:$0xff]
      %v3376 = vld [vmem:[%s2488 + $0x112] sm:$0xff]
      %v3377 = vld [vmem:[%s2488 + $0x122] sm:$0xff]
      %v3378 = vld [vmem:[%s2488 + $0x12a] sm:$0xff]
      %v3379 = vld [vmem:[%s2488 + $0x13a] sm:$0xff]
      %v3380 = vld [vmem:[%s2488 + $0x142] sm:$0xff]
      %v3381 = vld [vmem:[%s2488 + $0x152] sm:$0xff]
      %v3382 = vld [vmem:[%s2488 + $0x15a] sm:$0xff]
      %v3383 = vld [vmem:[%s2488 + $0x16a] sm:$0xff]
      %v3384 = vld [vmem:[%s2488 + $0x172] sm:$0xff]
      %3417 = vrot.lane.b32.xlu0 %v3353, 20
      %v3418 = vpop.permute.xlu0 %3417
      %3419 = vrot.lane.b32.xlu0 %v3354, 20
      %v3420 = vpop.permute.xlu0 %3419
      %3421 = vrot.lane.b32.xlu0 %v3355, 20
      %v3422 = vpop.permute.xlu0 %3421
      %3423 = vrot.lane.b32.xlu0 %v3356, 20
      %v3424 = vpop.permute.xlu0 %3423
      %3425 = vrot.lane.b32.xlu0 %v3357, 20
      %v3426 = vpop.permute.xlu0 %3425
      %3427 = vrot.lane.b32.xlu0 %v3358, 20
      %v3428 = vpop.permute.xlu0 %3427
      %3429 = vrot.lane.b32.xlu0 %v3359, 20
      %v3430 = vpop.permute.xlu0 %3429
      %3431 = vrot.lane.b32.xlu0 %v3360, 20
      %v3432 = vpop.permute.xlu0 %3431
      %3433 = vrot.lane.b32.xlu0 %v3361, 20
      %v3434 = vpop.permute.xlu0 %3433
      %3435 = vrot.lane.b32.xlu0 %v3362, 20
      %v3436 = vpop.permute.xlu0 %3435
      %3437 = vrot.lane.b32.xlu0 %v3363, 20
      %v3438 = vpop.permute.xlu0 %3437
      %3439 = vrot.lane.b32.xlu0 %v3364, 20
      %v3440 = vpop.permute.xlu0 %3439
      %3441 = vrot.lane.b32.xlu0 %v3365, 20
      %v3442 = vpop.permute.xlu0 %3441
      %3443 = vrot.lane.b32.xlu0 %v3366, 20
      %v3444 = vpop.permute.xlu0 %3443
      %3445 = vrot.lane.b32.xlu0 %v3367, 20
      %v3446 = vpop.permute.xlu0 %3445
      %3447 = vrot.lane.b32.xlu0 %v3368, 20
      %v3448 = vpop.permute.xlu0 %3447
      %3449 = vrot.lane.b32.xlu0 %v3369, 20
      %v3450 = vpop.permute.xlu0 %3449
      %3451 = vrot.lane.b32.xlu0 %v3370, 20
      %v3452 = vpop.permute.xlu0 %3451
      %3453 = vrot.lane.b32.xlu0 %v3371, 20
      %v3454 = vpop.permute.xlu0 %3453
      %3455 = vrot.lane.b32.xlu0 %v3372, 20
      %v3456 = vpop.permute.xlu0 %3455
      %3457 = vrot.lane.b32.xlu0 %v3373, 20
      %v3458 = vpop.permute.xlu0 %3457
      %3459 = vrot.lane.b32.xlu0 %v3374, 20
      %v3460 = vpop.permute.xlu0 %3459
      %3461 = vrot.lane.b32.xlu0 %v3375, 20
      %v3462 = vpop.permute.xlu0 %3461
      %3463 = vrot.lane.b32.xlu0 %v3376, 20
      %v3464 = vpop.permute.xlu0 %3463
      %3465 = vrot.lane.b32.xlu0 %v3377, 20
      %v3466 = vpop.permute.xlu0 %3465
      %3467 = vrot.lane.b32.xlu0 %v3378, 20
      %v3468 = vpop.permute.xlu0 %3467
      %3469 = vrot.lane.b32.xlu0 %v3379, 20
      %v3470 = vpop.permute.xlu0 %3469
      %3471 = vrot.lane.b32.xlu0 %v3380, 20
      %v3472 = vpop.permute.xlu0 %3471
      %3473 = vrot.lane.b32.xlu0 %v3381, 20
      %v3474 = vpop.permute.xlu0 %3473
      %3475 = vrot.lane.b32.xlu0 %v3382, 20
      %v3476 = vpop.permute.xlu0 %3475
      %3477 = vrot.lane.b32.xlu0 %v3383, 20
      %v3478 = vpop.permute.xlu0 %3477
      %3479 = vrot.lane.b32.xlu0 %v3384, 20
      %v3480 = vpop.permute.xlu0 %3479
      %3513 = vst.msk [vmem:[#allocation4] sm:$0xff] %vm1429, %v3418
      %3514 = vst.msk [vmem:[#allocation4 + $0x8] sm:$0xff] %vm1429, %v3420
      %3515 = vst.msk [vmem:[#allocation4 + $0x10] sm:$0xff] %vm1429, %v3422
      %3516 = vst.msk [vmem:[#allocation4 + $0x18] sm:$0xff] %vm1429, %v3424
      %3517 = vst.msk [vmem:[#allocation4 + $0x20] sm:$0xff] %vm1429, %v3426
      %3518 = vst.msk [vmem:[#allocation4 + $0x28] sm:$0xff] %vm1429, %v3428
      %3519 = vst.msk [vmem:[#allocation4 + $0x30] sm:$0xff] %vm1429, %v3430
      %3520 = vst.msk [vmem:[#allocation4 + $0x38] sm:$0xff] %vm1429, %v3432
      %3521 = vst.msk [vmem:[#allocation4 + $0x40] sm:$0xff] %vm1429, %v3434
      %3522 = vst.msk [vmem:[#allocation4 + $0x48] sm:$0xff] %vm1429, %v3436
      %3523 = vst.msk [vmem:[#allocation4 + $0x50] sm:$0xff] %vm1429, %v3438
      %3524 = vst.msk [vmem:[#allocation4 + $0x58] sm:$0xff] %vm1429, %v3440
      %3525 = vst.msk [vmem:[#allocation4 + $0x60] sm:$0xff] %vm1429, %v3442
      %3526 = vst.msk [vmem:[#allocation4 + $0x68] sm:$0xff] %vm1429, %v3444
      %3527 = vst.msk [vmem:[#allocation4 + $0x70] sm:$0xff] %vm1429, %v3446
      %3528 = vst.msk [vmem:[#allocation4 + $0x78] sm:$0xff] %vm1429, %v3448
      %3529 = vst.msk [vmem:[#allocation4 + $0x80] sm:$0xff] %vm1429, %v3450
      %3530 = vst.msk [vmem:[#allocation4 + $0x88] sm:$0xff] %vm1429, %v3452
      %3531 = vst.msk [vmem:[#allocation4 + $0x90] sm:$0xff] %vm1429, %v3454
      %3532 = vst.msk [vmem:[#allocation4 + $0x98] sm:$0xff] %vm1429, %v3456
      %3533 = vst.msk [vmem:[#allocation4 + $0xa0] sm:$0xff] %vm1429, %v3458
      %3534 = vst.msk [vmem:[#allocation4 + $0xa8] sm:$0xff] %vm1429, %v3460
      %3535 = vst.msk [vmem:[#allocation4 + $0xb0] sm:$0xff] %vm1429, %v3462
      %3536 = vst.msk [vmem:[#allocation4 + $0xb8] sm:$0xff] %vm1429, %v3464
      %3537 = vst.msk [vmem:[#allocation4 + $0xc0] sm:$0xff] %vm1429, %v3466
      %3538 = vst.msk [vmem:[#allocation4 + $0xc8] sm:$0xff] %vm1429, %v3468
      %3539 = vst.msk [vmem:[#allocation4 + $0xd0] sm:$0xff] %vm1429, %v3470
      %3540 = vst.msk [vmem:[#allocation4 + $0xd8] sm:$0xff] %vm1429, %v3472
      %3541 = vst.msk [vmem:[#allocation4 + $0xe0] sm:$0xff] %vm1429, %v3474
      %3542 = vst.msk [vmem:[#allocation4 + $0xe8] sm:$0xff] %vm1429, %v3476
      %3543 = vst.msk [vmem:[#allocation4 + $0xf0] sm:$0xff] %vm1429, %v3478
      %3544 = vst.msk [vmem:[#allocation4 + $0xf8] sm:$0xff] %vm1429, %v3480
      %s3545 = scalar_lea.vmem [#allocation3], 48
      %v3546 = vld [vmem:[%s3545] sm:$0xff]
      %v3547 = vld [vmem:[%s3545 + $0x8] sm:$0xff]
      %v3548 = vld [vmem:[%s3545 + $0x18] sm:$0xff]
      %v3549 = vld [vmem:[%s3545 + $0x20] sm:$0xff]
      %v3550 = vld [vmem:[%s3545 + $0x30] sm:$0xff]
      %v3551 = vld [vmem:[%s3545 + $0x38] sm:$0xff]
      %v3552 = vld [vmem:[%s3545 + $0x48] sm:$0xff]
      %v3553 = vld [vmem:[%s3545 + $0x50] sm:$0xff]
      %v3554 = vld [vmem:[%s3545 + $0x60] sm:$0xff]
      %v3555 = vld [vmem:[%s3545 + $0x68] sm:$0xff]
      %v3556 = vld [vmem:[%s3545 + $0x78] sm:$0xff]
      %v3557 = vld [vmem:[%s3545 + $0x80] sm:$0xff]
      %v3558 = vld [vmem:[%s3545 + $0x90] sm:$0xff]
      %v3559 = vld [vmem:[%s3545 + $0x98] sm:$0xff]
      %v3560 = vld [vmem:[%s3545 + $0xa8] sm:$0xff]
      %v3561 = vld [vmem:[%s3545 + $0xb0] sm:$0xff]
      %v3562 = vld [vmem:[%s3545 + $0xc0] sm:$0xff]
      %v3563 = vld [vmem:[%s3545 + $0xc8] sm:$0xff]
      %v3564 = vld [vmem:[%s3545 + $0xd8] sm:$0xff]
      %v3565 = vld [vmem:[%s3545 + $0xe0] sm:$0xff]
      %v3566 = vld [vmem:[%s3545 + $0xf0] sm:$0xff]
      %v3567 = vld [vmem:[%s3545 + $0xf8] sm:$0xff]
      %v3568 = vld [vmem:[%s3545 + $0x108] sm:$0xff]
      %v3569 = vld [vmem:[%s3545 + $0x110] sm:$0xff]
      %v3570 = vld [vmem:[%s3545 + $0x120] sm:$0xff]
      %v3571 = vld [vmem:[%s3545 + $0x128] sm:$0xff]
      %v3572 = vld [vmem:[%s3545 + $0x138] sm:$0xff]
      %v3573 = vld [vmem:[%s3545 + $0x140] sm:$0xff]
      %v3574 = vld [vmem:[%s3545 + $0x150] sm:$0xff]
      %v3575 = vld [vmem:[%s3545 + $0x158] sm:$0xff]
      %v3576 = vld [vmem:[%s3545 + $0x168] sm:$0xff]
      %v3577 = vld [vmem:[%s3545 + $0x170] sm:$0xff]
      %3610 = vrot.lane.b32.xlu0 %v3546, 24
      %v3611 = vpop.permute.xlu0 %3610
      %3612 = vrot.lane.b32.xlu0 %v3547, 24
      %v3613 = vpop.permute.xlu0 %3612
      %3614 = vrot.lane.b32.xlu0 %v3548, 24
      %v3615 = vpop.permute.xlu0 %3614
      %3616 = vrot.lane.b32.xlu0 %v3549, 24
      %v3617 = vpop.permute.xlu0 %3616
      %3618 = vrot.lane.b32.xlu0 %v3550, 24
      %v3619 = vpop.permute.xlu0 %3618
      %3620 = vrot.lane.b32.xlu0 %v3551, 24
      %v3621 = vpop.permute.xlu0 %3620
      %3622 = vrot.lane.b32.xlu0 %v3552, 24
      %v3623 = vpop.permute.xlu0 %3622
      %3624 = vrot.lane.b32.xlu0 %v3553, 24
      %v3625 = vpop.permute.xlu0 %3624
      %3626 = vrot.lane.b32.xlu0 %v3554, 24
      %v3627 = vpop.permute.xlu0 %3626
      %3628 = vrot.lane.b32.xlu0 %v3555, 24
      %v3629 = vpop.permute.xlu0 %3628
      %3630 = vrot.lane.b32.xlu0 %v3556, 24
      %v3631 = vpop.permute.xlu0 %3630
      %3632 = vrot.lane.b32.xlu0 %v3557, 24
      %v3633 = vpop.permute.xlu0 %3632
      %3634 = vrot.lane.b32.xlu0 %v3558, 24
      %v3635 = vpop.permute.xlu0 %3634
      %3636 = vrot.lane.b32.xlu0 %v3559, 24
      %v3637 = vpop.permute.xlu0 %3636
      %3638 = vrot.lane.b32.xlu0 %v3560, 24
      %v3639 = vpop.permute.xlu0 %3638
      %3640 = vrot.lane.b32.xlu0 %v3561, 24
      %v3641 = vpop.permute.xlu0 %3640
      %3642 = vrot.lane.b32.xlu0 %v3562, 24
      %v3643 = vpop.permute.xlu0 %3642
      %3644 = vrot.lane.b32.xlu0 %v3563, 24
      %v3645 = vpop.permute.xlu0 %3644
      %3646 = vrot.lane.b32.xlu0 %v3564, 24
      %v3647 = vpop.permute.xlu0 %3646
      %3648 = vrot.lane.b32.xlu0 %v3565, 24
      %v3649 = vpop.permute.xlu0 %3648
      %3650 = vrot.lane.b32.xlu0 %v3566, 24
      %v3651 = vpop.permute.xlu0 %3650
      %3652 = vrot.lane.b32.xlu0 %v3567, 24
      %v3653 = vpop.permute.xlu0 %3652
      %3654 = vrot.lane.b32.xlu0 %v3568, 24
      %v3655 = vpop.permute.xlu0 %3654
      %3656 = vrot.lane.b32.xlu0 %v3569, 24
      %v3657 = vpop.permute.xlu0 %3656
      %3658 = vrot.lane.b32.xlu0 %v3570, 24
      %v3659 = vpop.permute.xlu0 %3658
      %3660 = vrot.lane.b32.xlu0 %v3571, 24
      %v3661 = vpop.permute.xlu0 %3660
      %3662 = vrot.lane.b32.xlu0 %v3572, 24
      %v3663 = vpop.permute.xlu0 %3662
      %3664 = vrot.lane.b32.xlu0 %v3573, 24
      %v3665 = vpop.permute.xlu0 %3664
      %3666 = vrot.lane.b32.xlu0 %v3574, 24
      %v3667 = vpop.permute.xlu0 %3666
      %3668 = vrot.lane.b32.xlu0 %v3575, 24
      %v3669 = vpop.permute.xlu0 %3668
      %3670 = vrot.lane.b32.xlu0 %v3576, 24
      %v3671 = vpop.permute.xlu0 %3670
      %3672 = vrot.lane.b32.xlu0 %v3577, 24
      %v3673 = vpop.permute.xlu0 %3672
      %3706 = vst.msk [vmem:[#allocation4] sm:$0xff] %vm1623, %v3611
      %3707 = vst.msk [vmem:[#allocation4 + $0x8] sm:$0xff] %vm1623, %v3613
      %3708 = vst.msk [vmem:[#allocation4 + $0x10] sm:$0xff] %vm1623, %v3615
      %3709 = vst.msk [vmem:[#allocation4 + $0x18] sm:$0xff] %vm1623, %v3617
      %3710 = vst.msk [vmem:[#allocation4 + $0x20] sm:$0xff] %vm1623, %v3619
      %3711 = vst.msk [vmem:[#allocation4 + $0x28] sm:$0xff] %vm1623, %v3621
      %3712 = vst.msk [vmem:[#allocation4 + $0x30] sm:$0xff] %vm1623, %v3623
      %3713 = vst.msk [vmem:[#allocation4 + $0x38] sm:$0xff] %vm1623, %v3625
      %3714 = vst.msk [vmem:[#allocation4 + $0x40] sm:$0xff] %vm1623, %v3627
      %3715 = vst.msk [vmem:[#allocation4 + $0x48] sm:$0xff] %vm1623, %v3629
      %3716 = vst.msk [vmem:[#allocation4 + $0x50] sm:$0xff] %vm1623, %v3631
      %3717 = vst.msk [vmem:[#allocation4 + $0x58] sm:$0xff] %vm1623, %v3633
      %3718 = vst.msk [vmem:[#allocation4 + $0x60] sm:$0xff] %vm1623, %v3635
      %3719 = vst.msk [vmem:[#allocation4 + $0x68] sm:$0xff] %vm1623, %v3637
      %3720 = vst.msk [vmem:[#allocation4 + $0x70] sm:$0xff] %vm1623, %v3639
      %3721 = vst.msk [vmem:[#allocation4 + $0x78] sm:$0xff] %vm1623, %v3641
      %3722 = vst.msk [vmem:[#allocation4 + $0x80] sm:$0xff] %vm1623, %v3643
      %3723 = vst.msk [vmem:[#allocation4 + $0x88] sm:$0xff] %vm1623, %v3645
      %3724 = vst.msk [vmem:[#allocation4 + $0x90] sm:$0xff] %vm1623, %v3647
      %3725 = vst.msk [vmem:[#allocation4 + $0x98] sm:$0xff] %vm1623, %v3649
      %3726 = vst.msk [vmem:[#allocation4 + $0xa0] sm:$0xff] %vm1623, %v3651
      %3727 = vst.msk [vmem:[#allocation4 + $0xa8] sm:$0xff] %vm1623, %v3653
      %3728 = vst.msk [vmem:[#allocation4 + $0xb0] sm:$0xff] %vm1623, %v3655
      %3729 = vst.msk [vmem:[#allocation4 + $0xb8] sm:$0xff] %vm1623, %v3657
      %3730 = vst.msk [vmem:[#allocation4 + $0xc0] sm:$0xff] %vm1623, %v3659
      %3731 = vst.msk [vmem:[#allocation4 + $0xc8] sm:$0xff] %vm1623, %v3661
      %3732 = vst.msk [vmem:[#allocation4 + $0xd0] sm:$0xff] %vm1623, %v3663
      %3733 = vst.msk [vmem:[#allocation4 + $0xd8] sm:$0xff] %vm1623, %v3665
      %3734 = vst.msk [vmem:[#allocation4 + $0xe0] sm:$0xff] %vm1623, %v3667
      %3735 = vst.msk [vmem:[#allocation4 + $0xe8] sm:$0xff] %vm1623, %v3669
      %3736 = vst.msk [vmem:[#allocation4 + $0xf0] sm:$0xff] %vm1623, %v3671
      %3737 = vst.msk [vmem:[#allocation4 + $0xf8] sm:$0xff] %vm1623, %v3673
      %v3738 = vld [vmem:[%s3545 + $0x1] sm:$0xff]
      %v3739 = vld [vmem:[%s3545 + $0x9] sm:$0xff]
      %v3740 = vld [vmem:[%s3545 + $0x19] sm:$0xff]
      %v3741 = vld [vmem:[%s3545 + $0x21] sm:$0xff]
      %v3742 = vld [vmem:[%s3545 + $0x31] sm:$0xff]
      %v3743 = vld [vmem:[%s3545 + $0x39] sm:$0xff]
      %v3744 = vld [vmem:[%s3545 + $0x49] sm:$0xff]
      %v3745 = vld [vmem:[%s3545 + $0x51] sm:$0xff]
      %v3746 = vld [vmem:[%s3545 + $0x61] sm:$0xff]
      %v3747 = vld [vmem:[%s3545 + $0x69] sm:$0xff]
      %v3748 = vld [vmem:[%s3545 + $0x79] sm:$0xff]
      %v3749 = vld [vmem:[%s3545 + $0x81] sm:$0xff]
      %v3750 = vld [vmem:[%s3545 + $0x91] sm:$0xff]
      %v3751 = vld [vmem:[%s3545 + $0x99] sm:$0xff]
      %v3752 = vld [vmem:[%s3545 + $0xa9] sm:$0xff]
      %v3753 = vld [vmem:[%s3545 + $0xb1] sm:$0xff]
      %v3754 = vld [vmem:[%s3545 + $0xc1] sm:$0xff]
      %v3755 = vld [vmem:[%s3545 + $0xc9] sm:$0xff]
      %v3756 = vld [vmem:[%s3545 + $0xd9] sm:$0xff]
      %v3757 = vld [vmem:[%s3545 + $0xe1] sm:$0xff]
      %v3758 = vld [vmem:[%s3545 + $0xf1] sm:$0xff]
      %v3759 = vld [vmem:[%s3545 + $0xf9] sm:$0xff]
      %v3760 = vld [vmem:[%s3545 + $0x109] sm:$0xff]
      %v3761 = vld [vmem:[%s3545 + $0x111] sm:$0xff]
      %v3762 = vld [vmem:[%s3545 + $0x121] sm:$0xff]
      %v3763 = vld [vmem:[%s3545 + $0x129] sm:$0xff]
      %v3764 = vld [vmem:[%s3545 + $0x139] sm:$0xff]
      %v3765 = vld [vmem:[%s3545 + $0x141] sm:$0xff]
      %v3766 = vld [vmem:[%s3545 + $0x151] sm:$0xff]
      %v3767 = vld [vmem:[%s3545 + $0x159] sm:$0xff]
      %v3768 = vld [vmem:[%s3545 + $0x169] sm:$0xff]
      %v3769 = vld [vmem:[%s3545 + $0x171] sm:$0xff]
      %3802 = vrot.lane.b32.xlu0 %v3738, 28
      %v3803 = vpop.permute.xlu0 %3802
      %3804 = vrot.lane.b32.xlu0 %v3739, 28
      %v3805 = vpop.permute.xlu0 %3804
      %3806 = vrot.lane.b32.xlu0 %v3740, 28
      %v3807 = vpop.permute.xlu0 %3806
      %3808 = vrot.lane.b32.xlu0 %v3741, 28
      %v3809 = vpop.permute.xlu0 %3808
      %3810 = vrot.lane.b32.xlu0 %v3742, 28
      %v3811 = vpop.permute.xlu0 %3810
      %3812 = vrot.lane.b32.xlu0 %v3743, 28
      %v3813 = vpop.permute.xlu0 %3812
      %3814 = vrot.lane.b32.xlu0 %v3744, 28
      %v3815 = vpop.permute.xlu0 %3814
      %3816 = vrot.lane.b32.xlu0 %v3745, 28
      %v3817 = vpop.permute.xlu0 %3816
      %3818 = vrot.lane.b32.xlu0 %v3746, 28
      %v3819 = vpop.permute.xlu0 %3818
      %3820 = vrot.lane.b32.xlu0 %v3747, 28
      %v3821 = vpop.permute.xlu0 %3820
      %3822 = vrot.lane.b32.xlu0 %v3748, 28
      %v3823 = vpop.permute.xlu0 %3822
      %3824 = vrot.lane.b32.xlu0 %v3749, 28
      %v3825 = vpop.permute.xlu0 %3824
      %3826 = vrot.lane.b32.xlu0 %v3750, 28
      %v3827 = vpop.permute.xlu0 %3826
      %3828 = vrot.lane.b32.xlu0 %v3751, 28
      %v3829 = vpop.permute.xlu0 %3828
      %3830 = vrot.lane.b32.xlu0 %v3752, 28
      %v3831 = vpop.permute.xlu0 %3830
      %3832 = vrot.lane.b32.xlu0 %v3753, 28
      %v3833 = vpop.permute.xlu0 %3832
      %3834 = vrot.lane.b32.xlu0 %v3754, 28
      %v3835 = vpop.permute.xlu0 %3834
      %3836 = vrot.lane.b32.xlu0 %v3755, 28
      %v3837 = vpop.permute.xlu0 %3836
      %3838 = vrot.lane.b32.xlu0 %v3756, 28
      %v3839 = vpop.permute.xlu0 %3838
      %3840 = vrot.lane.b32.xlu0 %v3757, 28
      %v3841 = vpop.permute.xlu0 %3840
      %3842 = vrot.lane.b32.xlu0 %v3758, 28
      %v3843 = vpop.permute.xlu0 %3842
      %3844 = vrot.lane.b32.xlu0 %v3759, 28
      %v3845 = vpop.permute.xlu0 %3844
      %3846 = vrot.lane.b32.xlu0 %v3760, 28
      %v3847 = vpop.permute.xlu0 %3846
      %3848 = vrot.lane.b32.xlu0 %v3761, 28
      %v3849 = vpop.permute.xlu0 %3848
      %3850 = vrot.lane.b32.xlu0 %v3762, 28
      %v3851 = vpop.permute.xlu0 %3850
      %3852 = vrot.lane.b32.xlu0 %v3763, 28
      %v3853 = vpop.permute.xlu0 %3852
      %3854 = vrot.lane.b32.xlu0 %v3764, 28
      %v3855 = vpop.permute.xlu0 %3854
      %3856 = vrot.lane.b32.xlu0 %v3765, 28
      %v3857 = vpop.permute.xlu0 %3856
      %3858 = vrot.lane.b32.xlu0 %v3766, 28
      %v3859 = vpop.permute.xlu0 %3858
      %3860 = vrot.lane.b32.xlu0 %v3767, 28
      %v3861 = vpop.permute.xlu0 %3860
      %3862 = vrot.lane.b32.xlu0 %v3768, 28
      %v3863 = vpop.permute.xlu0 %3862
      %3864 = vrot.lane.b32.xlu0 %v3769, 28
      %v3865 = vpop.permute.xlu0 %3864
      %3898 = vst.msk [vmem:[#allocation4] sm:$0xff] %vm1816, %v3803
      %3899 = vst.msk [vmem:[#allocation4 + $0x8] sm:$0xff] %vm1816, %v3805
      %3900 = vst.msk [vmem:[#allocation4 + $0x10] sm:$0xff] %vm1816, %v3807
      %3901 = vst.msk [vmem:[#allocation4 + $0x18] sm:$0xff] %vm1816, %v3809
      %3902 = vst.msk [vmem:[#allocation4 + $0x20] sm:$0xff] %vm1816, %v3811
      %3903 = vst.msk [vmem:[#allocation4 + $0x28] sm:$0xff] %vm1816, %v3813
      %3904 = vst.msk [vmem:[#allocation4 + $0x30] sm:$0xff] %vm1816, %v3815
      %3905 = vst.msk [vmem:[#allocation4 + $0x38] sm:$0xff] %vm1816, %v3817
      %3906 = vst.msk [vmem:[#allocation4 + $0x40] sm:$0xff] %vm1816, %v3819
      %3907 = vst.msk [vmem:[#allocation4 + $0x48] sm:$0xff] %vm1816, %v3821
      %3908 = vst.msk [vmem:[#allocation4 + $0x50] sm:$0xff] %vm1816, %v3823
      %3909 = vst.msk [vmem:[#allocation4 + $0x58] sm:$0xff] %vm1816, %v3825
      %3910 = vst.msk [vmem:[#allocation4 + $0x60] sm:$0xff] %vm1816, %v3827
      %3911 = vst.msk [vmem:[#allocation4 + $0x68] sm:$0xff] %vm1816, %v3829
      %3912 = vst.msk [vmem:[#allocation4 + $0x70] sm:$0xff] %vm1816, %v3831
      %3913 = vst.msk [vmem:[#allocation4 + $0x78] sm:$0xff] %vm1816, %v3833
      %3914 = vst.msk [vmem:[#allocation4 + $0x80] sm:$0xff] %vm1816, %v3835
      %3915 = vst.msk [vmem:[#allocation4 + $0x88] sm:$0xff] %vm1816, %v3837
      %3916 = vst.msk [vmem:[#allocation4 + $0x90] sm:$0xff] %vm1816, %v3839
      %3917 = vst.msk [vmem:[#allocation4 + $0x98] sm:$0xff] %vm1816, %v3841
      %3918 = vst.msk [vmem:[#allocation4 + $0xa0] sm:$0xff] %vm1816, %v3843
      %3919 = vst.msk [vmem:[#allocation4 + $0xa8] sm:$0xff] %vm1816, %v3845
      %3920 = vst.msk [vmem:[#allocation4 + $0xb0] sm:$0xff] %vm1816, %v3847
      %3921 = vst.msk [vmem:[#allocation4 + $0xb8] sm:$0xff] %vm1816, %v3849
      %3922 = vst.msk [vmem:[#allocation4 + $0xc0] sm:$0xff] %vm1816, %v3851
      %3923 = vst.msk [vmem:[#allocation4 + $0xc8] sm:$0xff] %vm1816, %v3853
      %3924 = vst.msk [vmem:[#allocation4 + $0xd0] sm:$0xff] %vm1816, %v3855
      %3925 = vst.msk [vmem:[#allocation4 + $0xd8] sm:$0xff] %vm1816, %v3857
      %3926 = vst.msk [vmem:[#allocation4 + $0xe0] sm:$0xff] %vm1816, %v3859
      %3927 = vst.msk [vmem:[#allocation4 + $0xe8] sm:$0xff] %vm1816, %v3861
      %3928 = vst.msk [vmem:[#allocation4 + $0xf0] sm:$0xff] %vm1816, %v3863
      %3929 = vst.msk [vmem:[#allocation4 + $0xf8] sm:$0xff] %vm1816, %v3865
      %v3930 = vld [vmem:[%s3545 + $0x2] sm:$0xff]
      %v3931 = vld [vmem:[%s3545 + $0xa] sm:$0xff]
      %v3932 = vld [vmem:[%s3545 + $0x1a] sm:$0xff]
      %v3933 = vld [vmem:[%s3545 + $0x22] sm:$0xff]
      %v3934 = vld [vmem:[%s3545 + $0x32] sm:$0xff]
      %v3935 = vld [vmem:[%s3545 + $0x3a] sm:$0xff]
      %v3936 = vld [vmem:[%s3545 + $0x4a] sm:$0xff]
      %v3937 = vld [vmem:[%s3545 + $0x52] sm:$0xff]
      %v3938 = vld [vmem:[%s3545 + $0x62] sm:$0xff]
      %v3939 = vld [vmem:[%s3545 + $0x6a] sm:$0xff]
      %v3940 = vld [vmem:[%s3545 + $0x7a] sm:$0xff]
      %v3941 = vld [vmem:[%s3545 + $0x82] sm:$0xff]
      %v3942 = vld [vmem:[%s3545 + $0x92] sm:$0xff]
      %v3943 = vld [vmem:[%s3545 + $0x9a] sm:$0xff]
      %v3944 = vld [vmem:[%s3545 + $0xaa] sm:$0xff]
      %v3945 = vld [vmem:[%s3545 + $0xb2] sm:$0xff]
      %v3946 = vld [vmem:[%s3545 + $0xc2] sm:$0xff]
      %v3947 = vld [vmem:[%s3545 + $0xca] sm:$0xff]
      %v3948 = vld [vmem:[%s3545 + $0xda] sm:$0xff]
      %v3949 = vld [vmem:[%s3545 + $0xe2] sm:$0xff]
      %v3950 = vld [vmem:[%s3545 + $0xf2] sm:$0xff]
      %v3951 = vld [vmem:[%s3545 + $0xfa] sm:$0xff]
      %v3952 = vld [vmem:[%s3545 + $0x10a] sm:$0xff]
      %v3953 = vld [vmem:[%s3545 + $0x112] sm:$0xff]
      %v3954 = vld [vmem:[%s3545 + $0x122] sm:$0xff]
      %v3955 = vld [vmem:[%s3545 + $0x12a] sm:$0xff]
      %v3956 = vld [vmem:[%s3545 + $0x13a] sm:$0xff]
      %v3957 = vld [vmem:[%s3545 + $0x142] sm:$0xff]
      %v3958 = vld [vmem:[%s3545 + $0x152] sm:$0xff]
      %v3959 = vld [vmem:[%s3545 + $0x15a] sm:$0xff]
      %v3960 = vld [vmem:[%s3545 + $0x16a] sm:$0xff]
      %v3961 = vld [vmem:[%s3545 + $0x172] sm:$0xff]
      %3994 = vrot.lane.b32.xlu0 %v3930, 32
      %v3995 = vpop.permute.xlu0 %3994
      %3996 = vrot.lane.b32.xlu0 %v3931, 32
      %v3997 = vpop.permute.xlu0 %3996
      %3998 = vrot.lane.b32.xlu0 %v3932, 32
      %v3999 = vpop.permute.xlu0 %3998
      %4000 = vrot.lane.b32.xlu0 %v3933, 32
      %v4001 = vpop.permute.xlu0 %4000
      %4002 = vrot.lane.b32.xlu0 %v3934, 32
      %v4003 = vpop.permute.xlu0 %4002
      %4004 = vrot.lane.b32.xlu0 %v3935, 32
      %v4005 = vpop.permute.xlu0 %4004
      %4006 = vrot.lane.b32.xlu0 %v3936, 32
      %v4007 = vpop.permute.xlu0 %4006
      %4008 = vrot.lane.b32.xlu0 %v3937, 32
      %v4009 = vpop.permute.xlu0 %4008
      %4010 = vrot.lane.b32.xlu0 %v3938, 32
      %v4011 = vpop.permute.xlu0 %4010
      %4012 = vrot.lane.b32.xlu0 %v3939, 32
      %v4013 = vpop.permute.xlu0 %4012
      %4014 = vrot.lane.b32.xlu0 %v3940, 32
      %v4015 = vpop.permute.xlu0 %4014
      %4016 = vrot.lane.b32.xlu0 %v3941, 32
      %v4017 = vpop.permute.xlu0 %4016
      %4018 = vrot.lane.b32.xlu0 %v3942, 32
      %v4019 = vpop.permute.xlu0 %4018
      %4020 = vrot.lane.b32.xlu0 %v3943, 32
      %v4021 = vpop.permute.xlu0 %4020
      %4022 = vrot.lane.b32.xlu0 %v3944, 32
      %v4023 = vpop.permute.xlu0 %4022
      %4024 = vrot.lane.b32.xlu0 %v3945, 32
      %v4025 = vpop.permute.xlu0 %4024
      %4026 = vrot.lane.b32.xlu0 %v3946, 32
      %v4027 = vpop.permute.xlu0 %4026
      %4028 = vrot.lane.b32.xlu0 %v3947, 32
      %v4029 = vpop.permute.xlu0 %4028
      %4030 = vrot.lane.b32.xlu0 %v3948, 32
      %v4031 = vpop.permute.xlu0 %4030
      %4032 = vrot.lane.b32.xlu0 %v3949, 32
      %v4033 = vpop.permute.xlu0 %4032
      %4034 = vrot.lane.b32.xlu0 %v3950, 32
      %v4035 = vpop.permute.xlu0 %4034
      %4036 = vrot.lane.b32.xlu0 %v3951, 32
      %v4037 = vpop.permute.xlu0 %4036
      %4038 = vrot.lane.b32.xlu0 %v3952, 32
      %v4039 = vpop.permute.xlu0 %4038
      %4040 = vrot.lane.b32.xlu0 %v3953, 32
      %v4041 = vpop.permute.xlu0 %4040
      %4042 = vrot.lane.b32.xlu0 %v3954, 32
      %v4043 = vpop.permute.xlu0 %4042
      %4044 = vrot.lane.b32.xlu0 %v3955, 32
      %v4045 = vpop.permute.xlu0 %4044
      %4046 = vrot.lane.b32.xlu0 %v3956, 32
      %v4047 = vpop.permute.xlu0 %4046
      %4048 = vrot.lane.b32.xlu0 %v3957, 32
      %v4049 = vpop.permute.xlu0 %4048
      %4050 = vrot.lane.b32.xlu0 %v3958, 32
      %v4051 = vpop.permute.xlu0 %4050
      %4052 = vrot.lane.b32.xlu0 %v3959, 32
      %v4053 = vpop.permute.xlu0 %4052
      %4054 = vrot.lane.b32.xlu0 %v3960, 32
      %v4055 = vpop.permute.xlu0 %4054
      %4056 = vrot.lane.b32.xlu0 %v3961, 32
      %v4057 = vpop.permute.xlu0 %4056
      %4090 = vst.msk [vmem:[#allocation4] sm:$0xff] %vm2009, %v3995
      %4091 = vst.msk [vmem:[#allocation4 + $0x8] sm:$0xff] %vm2009, %v3997
      %4092 = vst.msk [vmem:[#allocation4 + $0x10] sm:$0xff] %vm2009, %v3999
      %4093 = vst.msk [vmem:[#allocation4 + $0x18] sm:$0xff] %vm2009, %v4001
      %4094 = vst.msk [vmem:[#allocation4 + $0x20] sm:$0xff] %vm2009, %v4003
      %4095 = vst.msk [vmem:[#allocation4 + $0x28] sm:$0xff] %vm2009, %v4005
      %4096 = vst.msk [vmem:[#allocation4 + $0x30] sm:$0xff] %vm2009, %v4007
      %4097 = vst.msk [vmem:[#allocation4 + $0x38] sm:$0xff] %vm2009, %v4009
      %4098 = vst.msk [vmem:[#allocation4 + $0x40] sm:$0xff] %vm2009, %v4011
      %4099 = vst.msk [vmem:[#allocation4 + $0x48] sm:$0xff] %vm2009, %v4013
      %4100 = vst.msk [vmem:[#allocation4 + $0x50] sm:$0xff] %vm2009, %v4015
      %4101 = vst.msk [vmem:[#allocation4 + $0x58] sm:$0xff] %vm2009, %v4017
      %4102 = vst.msk [vmem:[#allocation4 + $0x60] sm:$0xff] %vm2009, %v4019
      %4103 = vst.msk [vmem:[#allocation4 + $0x68] sm:$0xff] %vm2009, %v4021
      %4104 = vst.msk [vmem:[#allocation4 + $0x70] sm:$0xff] %vm2009, %v4023
      %4105 = vst.msk [vmem:[#allocation4 + $0x78] sm:$0xff] %vm2009, %v4025
      %4106 = vst.msk [vmem:[#allocation4 + $0x80] sm:$0xff] %vm2009, %v4027
      %4107 = vst.msk [vmem:[#allocation4 + $0x88] sm:$0xff] %vm2009, %v4029
      %4108 = vst.msk [vmem:[#allocation4 + $0x90] sm:$0xff] %vm2009, %v4031
      %4109 = vst.msk [vmem:[#allocation4 + $0x98] sm:$0xff] %vm2009, %v4033
      %4110 = vst.msk [vmem:[#allocation4 + $0xa0] sm:$0xff] %vm2009, %v4035
      %4111 = vst.msk [vmem:[#allocation4 + $0xa8] sm:$0xff] %vm2009, %v4037
      %4112 = vst.msk [vmem:[#allocation4 + $0xb0] sm:$0xff] %vm2009, %v4039
      %4113 = vst.msk [vmem:[#allocation4 + $0xb8] sm:$0xff] %vm2009, %v4041
      %4114 = vst.msk [vmem:[#allocation4 + $0xc0] sm:$0xff] %vm2009, %v4043
      %4115 = vst.msk [vmem:[#allocation4 + $0xc8] sm:$0xff] %vm2009, %v4045
      %4116 = vst.msk [vmem:[#allocation4 + $0xd0] sm:$0xff] %vm2009, %v4047
      %4117 = vst.msk [vmem:[#allocation4 + $0xd8] sm:$0xff] %vm2009, %v4049
      %4118 = vst.msk [vmem:[#allocation4 + $0xe0] sm:$0xff] %vm2009, %v4051
      %4119 = vst.msk [vmem:[#allocation4 + $0xe8] sm:$0xff] %vm2009, %v4053
      %4120 = vst.msk [vmem:[#allocation4 + $0xf0] sm:$0xff] %vm2009, %v4055
      %4121 = vst.msk [vmem:[#allocation4 + $0xf8] sm:$0xff] %vm2009, %v4057
      %v4122 = vld [vmem:[#allocation4] sm:$0xff]
      %v4123 = vld [vmem:[#allocation4 + $0x8] sm:$0xff]
      %v4124 = vld [vmem:[#allocation4 + $0x10] sm:$0xff]
      %v4125 = vld [vmem:[#allocation4 + $0x18] sm:$0xff]
      %v4126 = vld [vmem:[#allocation4 + $0x20] sm:$0xff]
      %v4127 = vld [vmem:[#allocation4 + $0x28] sm:$0xff]
      %v4128 = vld [vmem:[#allocation4 + $0x30] sm:$0xff]
      %v4129 = vld [vmem:[#allocation4 + $0x38] sm:$0xff]
      %v4130 = vld [vmem:[#allocation4 + $0x40] sm:$0xff]
      %v4131 = vld [vmem:[#allocation4 + $0x48] sm:$0xff]
      %v4132 = vld [vmem:[#allocation4 + $0x50] sm:$0xff]
      %v4133 = vld [vmem:[#allocation4 + $0x58] sm:$0xff]
      %v4134 = vld [vmem:[#allocation4 + $0x60] sm:$0xff]
      %v4135 = vld [vmem:[#allocation4 + $0x68] sm:$0xff]
      %v4136 = vld [vmem:[#allocation4 + $0x70] sm:$0xff]
      %v4137 = vld [vmem:[#allocation4 + $0x78] sm:$0xff]
      %v4138 = vld [vmem:[#allocation4 + $0x80] sm:$0xff]
      %v4139 = vld [vmem:[#allocation4 + $0x88] sm:$0xff]
      %v4140 = vld [vmem:[#allocation4 + $0x90] sm:$0xff]
      %v4141 = vld [vmem:[#allocation4 + $0x98] sm:$0xff]
      %v4142 = vld [vmem:[#allocation4 + $0xa0] sm:$0xff]
      %v4143 = vld [vmem:[#allocation4 + $0xa8] sm:$0xff]
      %v4144 = vld [vmem:[#allocation4 + $0xb0] sm:$0xff]
      %v4145 = vld [vmem:[#allocation4 + $0xb8] sm:$0xff]
      %v4146 = vld [vmem:[#allocation4 + $0xc0] sm:$0xff]
      %v4147 = vld [vmem:[#allocation4 + $0xc8] sm:$0xff]
      %v4148 = vld [vmem:[#allocation4 + $0xd0] sm:$0xff]
      %v4149 = vld [vmem:[#allocation4 + $0xd8] sm:$0xff]
      %v4150 = vld [vmem:[#allocation4 + $0xe0] sm:$0xff]
      %v4151 = vld [vmem:[#allocation4 + $0xe8] sm:$0xff]
      %v4152 = vld [vmem:[#allocation4 + $0xf0] sm:$0xff]
      %v4153 = vld [vmem:[#allocation4 + $0xf8] sm:$0xff]
      %v4154 = vpack.c.bf16 %v4123, %v4122
      %v4155 = vpack.c.bf16 %v4125, %v4124
      %v4156 = vpack.c.bf16 %v4127, %v4126
      %v4157 = vpack.c.bf16 %v4129, %v4128
      %v4158 = vpack.c.bf16 %v4131, %v4130
      %v4159 = vpack.c.bf16 %v4133, %v4132
      %v4160 = vpack.c.bf16 %v4135, %v4134
      %v4161 = vpack.c.bf16 %v4137, %v4136
      %v4162 = vpack.c.bf16 %v4139, %v4138
      %v4163 = vpack.c.bf16 %v4141, %v4140
      %v4164 = vpack.c.bf16 %v4143, %v4142
      %v4165 = vpack.c.bf16 %v4145, %v4144
      %v4166 = vpack.c.bf16 %v4147, %v4146
      %v4167 = vpack.c.bf16 %v4149, %v4148
      %v4168 = vpack.c.bf16 %v4151, %v4150
      %v4169 = vpack.c.bf16 %v4153, %v4152
      %v4170 = vld [vmem:[%s2] sm:$0xf]
      %v4171 = vld [vmem:[%s2 + $0x4] sm:$0xf]
      %v4172 = vld [vmem:[%s2 + $0x8] sm:$0xf]
      %v4173 = vld [vmem:[%s2 + $0xc] sm:$0xf]
      %v4174 = vld [vmem:[%s2 + $0x10] sm:$0x3]
      %v4180 = vunpack.c.l.b16 %v4170
      %v4181 = vunpack.c.l.b16 %v4171
      %v4182 = vunpack.c.l.b16 %v4172
      %v4183 = vunpack.c.l.b16 %v4173
      %v4184 = vunpack.c.l.b16 %v4174
      %v4185 = vpack.c.b16 %v4181, %v4180
      %v4186 = vpack.c.b16 %v4183, %v4182
      %v4187 = vpack.c.b16 %v4184, %v4184
      %v4191 = vsel %vm2110, %v4154, 0
      %v4194 = vsel %vm2110, %v4155, 0
      %v4197 = vsel %vm2110, %v4156, 0
      %v4200 = vsel %vm2110, %v4157, 0
      %v4203 = vsel %vm2110, %v4158, 0
      %v4206 = vsel %vm2110, %v4159, 0
      %v4209 = vsel %vm2110, %v4160, 0
      %v4212 = vsel %vm2110, %v4161, 0
      %v4215 = vsel %vm2110, %v4162, 0
      %v4218 = vsel %vm2110, %v4163, 0
      %v4221 = vsel %vm2110, %v4164, 0
      %v4224 = vsel %vm2110, %v4165, 0
      %v4227 = vsel %vm2110, %v4166, 0
      %v4230 = vsel %vm2110, %v4167, 0
      %v4233 = vsel %vm2110, %v4168, 0
      %v4236 = vsel %vm2110, %v4169, 0
      %v4239 = vsel %vm2159, %v4187, 0
      %4241 = vmatprep.subr.bf16.mxu0 0
      %4242 = vmatpush1.bf16.msra.mxu0 0
      %4243 = vmatprep.subr.bf16.mxu0 0
      %4244 = vmatpush1.bf16.msra.mxu0 0
      %4245 = vmatprep.subr.bf16.mxu0 0
      %4246 = vmatpush1.bf16.msra.mxu0 0
      %4247 = vmatprep.subr.bf16.mxu0 0
      %4248 = vmatpush1.bf16.msra.mxu0 0
      %4249 = vmatprep.subr.bf16.mxu0 0
      %4250 = vmatpush1.bf16.msra.mxu0 0
      %4251 = vmatprep.subr.bf16.mxu0 0
      %4252 = vmatpush1.bf16.msra.mxu0 %v4239
      %4253 = vmatprep.subr.bf16.mxu0 0
      %4254 = vmatpush1.bf16.msra.mxu0 %v4186
      %4255 = vmatprep.subr.bf16.mxu0 0
      %4256 = vmatpush1.bf16.msra.mxu0 %v4185
      %4257 = vmatprep.subr.bf16.mxu0 0
      %4258 = vmatpush2.bf16.msra.mxu0 0
      %4259 = vmatprep.subr.bf16.mxu0 0
      %4260 = vmatpush2.bf16.msra.mxu0 0
      %4261 = vmatprep.subr.bf16.mxu0 0
      %4262 = vmatpush2.bf16.msra.mxu0 0
      %4263 = vmatprep.subr.bf16.mxu0 0
      %4264 = vmatpush2.bf16.msra.mxu0 0
      %4265 = vmatprep.subr.bf16.mxu0 0
      %4266 = vmatpush2.bf16.msra.mxu0 0
      %4267 = vmatprep.subr.bf16.mxu0 0
      %4268 = vmatpush2.bf16.msra.mxu0 0
      %4269 = vmatprep.subr.bf16.mxu0 0
      %4270 = vmatpush2.bf16.msra.mxu0 0
      %4271 = vmatprep.subr.bf16.mxu0 0
      %4272 = vmatpush2.bf16.msra.mxu0 0
      %4273 = vmatprep.mubr.bf16.mxu0 0
      %4274 = vmatmul.mubr.bf16.gmra.mxu0 %v4191
      %v4275 = vpop.f32.mrf.mxu0
      %v4276 = vadd.f32 0.0, %v4275
      %v4277 = vpop.f32.mrf.mxu0
      %v4278 = vpop.f32.mrf.mxu0
      %v4279 = vadd.f32 0.0, %v4278
      %v4280 = vpop.f32.mrf.mxu0
      %4281 = vmatprep.mubr.bf16.mxu0 0
      %4282 = vmatmul.mubr.bf16.gmra.mxu0 %v4194
      %v4283 = vpop.f32.mrf.mxu0
      %v4284 = vadd.f32 0.0, %v4283
      %v4285 = vpop.f32.mrf.mxu0
      %v4286 = vpop.f32.mrf.mxu0
      %v4287 = vadd.f32 0.0, %v4286
      %v4288 = vpop.f32.mrf.mxu0
      %4289 = vmatprep.mubr.bf16.mxu0 0
      %4290 = vmatmul.mubr.bf16.gmra.mxu0 %v4197
      %v4291 = vpop.f32.mrf.mxu0
      %v4292 = vadd.f32 0.0, %v4291
      %v4293 = vpop.f32.mrf.mxu0
      %v4294 = vpop.f32.mrf.mxu0
      %v4295 = vadd.f32 0.0, %v4294
      %v4296 = vpop.f32.mrf.mxu0
      %4297 = vmatprep.mubr.bf16.mxu0 0
      %4298 = vmatmul.mubr.bf16.gmra.mxu0 %v4200
      %v4299 = vpop.f32.mrf.mxu0
      %v4300 = vadd.f32 0.0, %v4299
      %v4301 = vpop.f32.mrf.mxu0
      %v4302 = vpop.f32.mrf.mxu0
      %v4303 = vadd.f32 0.0, %v4302
      %v4304 = vpop.f32.mrf.mxu0
      %4305 = vmatprep.mubr.bf16.mxu0 0
      %4306 = vmatmul.mubr.bf16.gmra.mxu0 %v4203
      %v4307 = vpop.f32.mrf.mxu0
      %v4308 = vadd.f32 0.0, %v4307
      %v4309 = vpop.f32.mrf.mxu0
      %v4310 = vpop.f32.mrf.mxu0
      %v4311 = vadd.f32 0.0, %v4310
      %v4312 = vpop.f32.mrf.mxu0
      %4313 = vmatprep.mubr.bf16.mxu0 0
      %4314 = vmatmul.mubr.bf16.gmra.mxu0 %v4206
      %v4315 = vpop.f32.mrf.mxu0
      %v4316 = vadd.f32 0.0, %v4315
      %v4317 = vpop.f32.mrf.mxu0
      %v4318 = vpop.f32.mrf.mxu0
      %v4319 = vadd.f32 0.0, %v4318
      %v4320 = vpop.f32.mrf.mxu0
      %4321 = vmatprep.mubr.bf16.mxu0 0
      %4322 = vmatmul.mubr.bf16.gmra.mxu0 %v4209
      %v4323 = vpop.f32.mrf.mxu0
      %v4324 = vadd.f32 0.0, %v4323
      %v4325 = vpop.f32.mrf.mxu0
      %v4326 = vpop.f32.mrf.mxu0
      %v4327 = vadd.f32 0.0, %v4326
      %v4328 = vpop.f32.mrf.mxu0
      %4329 = vmatprep.mubr.bf16.mxu0 0
      %4330 = vmatmul.mubr.bf16.gmra.mxu0 %v4212
      %v4331 = vpop.f32.mrf.mxu0
      %v4332 = vadd.f32 0.0, %v4331
      %v4333 = vpop.f32.mrf.mxu0
      %v4334 = vpop.f32.mrf.mxu0
      %v4335 = vadd.f32 0.0, %v4334
      %v4336 = vpop.f32.mrf.mxu0
      %4337 = vmatprep.mubr.bf16.mxu0 0
      %4338 = vmatmul.mubr.bf16.gmra.mxu0 %v4215
      %v4339 = vpop.f32.mrf.mxu0
      %v4340 = vadd.f32 0.0, %v4339
      %v4341 = vpop.f32.mrf.mxu0
      %v4342 = vpop.f32.mrf.mxu0
      %v4343 = vadd.f32 0.0, %v4342
      %v4344 = vpop.f32.mrf.mxu0
      %4345 = vmatprep.mubr.bf16.mxu0 0
      %4346 = vmatmul.mubr.bf16.gmra.mxu0 %v4218
      %v4347 = vpop.f32.mrf.mxu0
      %v4348 = vadd.f32 0.0, %v4347
      %v4349 = vpop.f32.mrf.mxu0
      %v4350 = vpop.f32.mrf.mxu0
      %v4351 = vadd.f32 0.0, %v4350
      %v4352 = vpop.f32.mrf.mxu0
      %4353 = vmatprep.mubr.bf16.mxu0 0
      %4354 = vmatmul.mubr.bf16.gmra.mxu0 %v4221
      %v4355 = vpop.f32.mrf.mxu0
      %v4356 = vadd.f32 0.0, %v4355
      %v4357 = vpop.f32.mrf.mxu0
      %v4358 = vpop.f32.mrf.mxu0
      %v4359 = vadd.f32 0.0, %v4358
      %v4360 = vpop.f32.mrf.mxu0
      %4361 = vmatprep.mubr.bf16.mxu0 0
      %4362 = vmatmul.mubr.bf16.gmra.mxu0 %v4224
      %v4363 = vpop.f32.mrf.mxu0
      %v4364 = vadd.f32 0.0, %v4363
      %v4365 = vpop.f32.mrf.mxu0
      %v4366 = vpop.f32.mrf.mxu0
      %v4367 = vadd.f32 0.0, %v4366
      %v4368 = vpop.f32.mrf.mxu0
      %4369 = vmatprep.mubr.bf16.mxu0 0
      %4370 = vmatmul.mubr.bf16.gmra.mxu0 %v4227
      %v4371 = vpop.f32.mrf.mxu0
      %v4372 = vadd.f32 0.0, %v4371
      %v4373 = vpop.f32.mrf.mxu0
      %v4374 = vpop.f32.mrf.mxu0
      %v4375 = vadd.f32 0.0, %v4374
      %v4376 = vpop.f32.mrf.mxu0
      %4377 = vmatprep.mubr.bf16.mxu0 0
      %4378 = vmatmul.mubr.bf16.gmra.mxu0 %v4230
      %v4379 = vpop.f32.mrf.mxu0
      %v4380 = vadd.f32 0.0, %v4379
      %v4381 = vpop.f32.mrf.mxu0
      %v4382 = vpop.f32.mrf.mxu0
      %v4383 = vadd.f32 0.0, %v4382
      %v4384 = vpop.f32.mrf.mxu0
      %4385 = vmatprep.mubr.bf16.mxu0 0
      %4386 = vmatmul.mubr.bf16.gmra.mxu0 %v4233
      %v4387 = vpop.f32.mrf.mxu0
      %v4388 = vadd.f32 0.0, %v4387
      %v4389 = vpop.f32.mrf.mxu0
      %v4390 = vpop.f32.mrf.mxu0
      %v4391 = vadd.f32 0.0, %v4390
      %v4392 = vpop.f32.mrf.mxu0
      %4393 = vmatprep.mubr.bf16.mxu0 0
      %4394 = vmatmul.mubr.bf16.gmra.mxu0 %v4236
      %v4395 = vpop.f32.mrf.mxu0
      %v4396 = vadd.f32 0.0, %v4395
      %v4397 = vpop.f32.mrf.mxu0
      %v4398 = vpop.f32.mrf.mxu0
      %v4399 = vadd.f32 0.0, %v4398
      %v4400 = vpop.f32.mrf.mxu0
      %4401 = vdwg.mxu0
      %v4402 = vld [vmem:[%s400 + $0x1] sm:$0xff]
      %v4403 = vld [vmem:[%s400 + $0x9] sm:$0xff]
      %v4404 = vld [vmem:[%s400 + $0x19] sm:$0xff]
      %v4405 = vld [vmem:[%s400 + $0x21] sm:$0xff]
      %v4406 = vld [vmem:[%s400 + $0x31] sm:$0xff]
      %v4407 = vld [vmem:[%s400 + $0x39] sm:$0xff]
      %v4408 = vld [vmem:[%s400 + $0x49] sm:$0xff]
      %v4409 = vld [vmem:[%s400 + $0x51] sm:$0xff]
      %v4410 = vld [vmem:[%s400 + $0x61] sm:$0xff]
      %v4411 = vld [vmem:[%s400 + $0x69] sm:$0xff]
      %v4412 = vld [vmem:[%s400 + $0x79] sm:$0xff]
      %v4413 = vld [vmem:[%s400 + $0x81] sm:$0xff]
      %v4414 = vld [vmem:[%s400 + $0x91] sm:$0xff]
      %v4415 = vld [vmem:[%s400 + $0x99] sm:$0xff]
      %v4416 = vld [vmem:[%s400 + $0xa9] sm:$0xff]
      %v4417 = vld [vmem:[%s400 + $0xb1] sm:$0xff]
      %v4418 = vld [vmem:[%s400 + $0xc1] sm:$0xff]
      %v4419 = vld [vmem:[%s400 + $0xc9] sm:$0xff]
      %v4420 = vld [vmem:[%s400 + $0xd9] sm:$0xff]
      %v4421 = vld [vmem:[%s400 + $0xe1] sm:$0xff]
      %v4422 = vld [vmem:[%s400 + $0xf1] sm:$0xff]
      %v4423 = vld [vmem:[%s400 + $0xf9] sm:$0xff]
      %v4424 = vld [vmem:[%s400 + $0x109] sm:$0xff]
      %v4425 = vld [vmem:[%s400 + $0x111] sm:$0xff]
      %v4426 = vld [vmem:[%s400 + $0x121] sm:$0xff]
      %v4427 = vld [vmem:[%s400 + $0x129] sm:$0xff]
      %v4428 = vld [vmem:[%s400 + $0x139] sm:$0xff]
      %v4429 = vld [vmem:[%s400 + $0x141] sm:$0xff]
      %v4430 = vld [vmem:[%s400 + $0x151] sm:$0xff]
      %v4431 = vld [vmem:[%s400 + $0x159] sm:$0xff]
      %v4432 = vld [vmem:[%s400 + $0x169] sm:$0xff]
      %v4433 = vld [vmem:[%s400 + $0x171] sm:$0xff]
      %v4434 = vld [vmem:[%s5] sm:$0x1]
      %v4436 = vlaneseq
      %v4437 = vshrl.u32 %v4436, 7
      %v4438 = vsub.s32 0, %v4437
      %v4439 = vrot.slane %v4434, %v4438
      %v4441 = vmul.f32 %v4276, %v4439
      %v4442 = vmul.f32 %v4279, %v4439
      %v4443 = vmul.f32 %v4284, %v4439
      %v4444 = vmul.f32 %v4287, %v4439
      %v4445 = vmul.f32 %v4292, %v4439
      %v4446 = vmul.f32 %v4295, %v4439
      %v4447 = vmul.f32 %v4300, %v4439
      %v4448 = vmul.f32 %v4303, %v4439
      %v4449 = vmul.f32 %v4308, %v4439
      %v4450 = vmul.f32 %v4311, %v4439
      %v4451 = vmul.f32 %v4316, %v4439
      %v4452 = vmul.f32 %v4319, %v4439
      %v4453 = vmul.f32 %v4324, %v4439
      %v4454 = vmul.f32 %v4327, %v4439
      %v4455 = vmul.f32 %v4332, %v4439
      %v4456 = vmul.f32 %v4335, %v4439
      %v4457 = vmul.f32 %v4340, %v4439
      %v4458 = vmul.f32 %v4343, %v4439
      %v4459 = vmul.f32 %v4348, %v4439
      %v4460 = vmul.f32 %v4351, %v4439
      %v4461 = vmul.f32 %v4356, %v4439
      %v4462 = vmul.f32 %v4359, %v4439
      %v4463 = vmul.f32 %v4364, %v4439
      %v4464 = vmul.f32 %v4367, %v4439
      %v4465 = vmul.f32 %v4372, %v4439
      %v4466 = vmul.f32 %v4375, %v4439
      %v4467 = vmul.f32 %v4380, %v4439
      %v4468 = vmul.f32 %v4383, %v4439
      %v4469 = vmul.f32 %v4388, %v4439
      %v4470 = vmul.f32 %v4391, %v4439
      %v4471 = vmul.f32 %v4396, %v4439
      %v4472 = vmul.f32 %v4399, %v4439
      %v4473 = vld [vmem:[%s6] sm:$0x1]
      %v4475 = vlaneseq
      %v4476 = vshrl.u32 %v4475, 7
      %v4477 = vsub.s32 0, %v4476
      %v4478 = vrot.slane %v4473, %v4477
      %v4480 = vadd.f32 %v4441, %v4478
      %v4481 = vadd.f32 %v4442, %v4478
      %v4482 = vadd.f32 %v4443, %v4478
      %v4483 = vadd.f32 %v4444, %v4478
      %v4484 = vadd.f32 %v4445, %v4478
      %v4485 = vadd.f32 %v4446, %v4478
      %v4486 = vadd.f32 %v4447, %v4478
      %v4487 = vadd.f32 %v4448, %v4478
      %v4488 = vadd.f32 %v4449, %v4478
      %v4489 = vadd.f32 %v4450, %v4478
      %v4490 = vadd.f32 %v4451, %v4478
      %v4491 = vadd.f32 %v4452, %v4478
      %v4492 = vadd.f32 %v4453, %v4478
      %v4493 = vadd.f32 %v4454, %v4478
      %v4494 = vadd.f32 %v4455, %v4478
      %v4495 = vadd.f32 %v4456, %v4478
      %v4496 = vadd.f32 %v4457, %v4478
      %v4497 = vadd.f32 %v4458, %v4478
      %v4498 = vadd.f32 %v4459, %v4478
      %v4499 = vadd.f32 %v4460, %v4478
      %v4500 = vadd.f32 %v4461, %v4478
      %v4501 = vadd.f32 %v4462, %v4478
      %v4502 = vadd.f32 %v4463, %v4478
      %v4503 = vadd.f32 %v4464, %v4478
      %v4504 = vadd.f32 %v4465, %v4478
      %v4505 = vadd.f32 %v4466, %v4478
      %v4506 = vadd.f32 %v4467, %v4478
      %v4507 = vadd.f32 %v4468, %v4478
      %v4508 = vadd.f32 %v4469, %v4478
      %v4509 = vadd.f32 %v4470, %v4478
      %v4510 = vadd.f32 %v4471, %v4478
      %v4511 = vadd.f32 %v4472, %v4478
      %v4512 = vadd.f32 %v4480, %v4402
      %v4513 = vadd.f32 %v4481, %v4403
      %v4514 = vadd.f32 %v4482, %v4404
      %v4515 = vadd.f32 %v4483, %v4405
      %v4516 = vadd.f32 %v4484, %v4406
      %v4517 = vadd.f32 %v4485, %v4407
      %v4518 = vadd.f32 %v4486, %v4408
      %v4519 = vadd.f32 %v4487, %v4409
      %v4520 = vadd.f32 %v4488, %v4410
      %v4521 = vadd.f32 %v4489, %v4411
      %v4522 = vadd.f32 %v4490, %v4412
      %v4523 = vadd.f32 %v4491, %v4413
      %v4524 = vadd.f32 %v4492, %v4414
      %v4525 = vadd.f32 %v4493, %v4415
      %v4526 = vadd.f32 %v4494, %v4416
      %v4527 = vadd.f32 %v4495, %v4417
      %v4528 = vadd.f32 %v4496, %v4418
      %v4529 = vadd.f32 %v4497, %v4419
      %v4530 = vadd.f32 %v4498, %v4420
      %v4531 = vadd.f32 %v4499, %v4421
      %v4532 = vadd.f32 %v4500, %v4422
      %v4533 = vadd.f32 %v4501, %v4423
      %v4534 = vadd.f32 %v4502, %v4424
      %v4535 = vadd.f32 %v4503, %v4425
      %v4536 = vadd.f32 %v4504, %v4426
      %v4537 = vadd.f32 %v4505, %v4427
      %v4538 = vadd.f32 %v4506, %v4428
      %v4539 = vadd.f32 %v4507, %v4429
      %v4540 = vadd.f32 %v4508, %v4430
      %v4541 = vadd.f32 %v4509, %v4431
      %v4542 = vadd.f32 %v4510, %v4432
      %v4543 = vadd.f32 %v4511, %v4433
      %v4544 = vmax.f32 %v4512, 0.0
      %v4545 = vmax.f32 %v4513, 0.0
      %v4546 = vmax.f32 %v4514, 0.0
      %v4547 = vmax.f32 %v4515, 0.0
      %v4548 = vmax.f32 %v4516, 0.0
      %v4549 = vmax.f32 %v4517, 0.0
      %v4550 = vmax.f32 %v4518, 0.0
      %v4551 = vmax.f32 %v4519, 0.0
      %v4552 = vmax.f32 %v4520, 0.0
      %v4553 = vmax.f32 %v4521, 0.0
      %v4554 = vmax.f32 %v4522, 0.0
      %v4555 = vmax.f32 %v4523, 0.0
      %v4556 = vmax.f32 %v4524, 0.0
      %v4557 = vmax.f32 %v4525, 0.0
      %v4558 = vmax.f32 %v4526, 0.0
      %v4559 = vmax.f32 %v4527, 0.0
      %v4560 = vmax.f32 %v4528, 0.0
      %v4561 = vmax.f32 %v4529, 0.0
      %v4562 = vmax.f32 %v4530, 0.0
      %v4563 = vmax.f32 %v4531, 0.0
      %v4564 = vmax.f32 %v4532, 0.0
      %v4565 = vmax.f32 %v4533, 0.0
      %v4566 = vmax.f32 %v4534, 0.0
      %v4567 = vmax.f32 %v4535, 0.0
      %v4568 = vmax.f32 %v4536, 0.0
      %v4569 = vmax.f32 %v4537, 0.0
      %v4570 = vmax.f32 %v4538, 0.0
      %v4571 = vmax.f32 %v4539, 0.0
      %v4572 = vmax.f32 %v4540, 0.0
      %v4573 = vmax.f32 %v4541, 0.0
      %v4574 = vmax.f32 %v4542, 0.0
      %v4575 = vmax.f32 %v4543, 0.0
      %4576 = vst.msk [vmem:[%s278] sm:$0xff] %vm280, %v4544
      %4577 = vst.msk [vmem:[%s278 + $0x8] sm:$0xff] %vm280, %v4545
      %4578 = vst.msk [vmem:[%s278 + $0x10] sm:$0xff] %vm280, %v4546
      %4579 = vst.msk [vmem:[%s278 + $0x18] sm:$0xff] %vm280, %v4547
      %4580 = vst.msk [vmem:[%s278 + $0x20] sm:$0xff] %vm280, %v4548
      %4581 = vst.msk [vmem:[%s278 + $0x28] sm:$0xff] %vm280, %v4549
      %4582 = vst.msk [vmem:[%s278 + $0x30] sm:$0xff] %vm280, %v4550
      %4583 = vst.msk [vmem:[%s278 + $0x38] sm:$0xff] %vm280, %v4551
      %4584 = vst.msk [vmem:[%s278 + $0x40] sm:$0xff] %vm280, %v4552
      %4585 = vst.msk [vmem:[%s278 + $0x48] sm:$0xff] %vm280, %v4553
      %4586 = vst.msk [vmem:[%s278 + $0x50] sm:$0xff] %vm280, %v4554
      %4587 = vst.msk [vmem:[%s278 + $0x58] sm:$0xff] %vm280, %v4555
      %4588 = vst.msk [vmem:[%s278 + $0x60] sm:$0xff] %vm280, %v4556
      %4589 = vst.msk [vmem:[%s278 + $0x68] sm:$0xff] %vm280, %v4557
      %4590 = vst.msk [vmem:[%s278 + $0x70] sm:$0xff] %vm280, %v4558
      %4591 = vst.msk [vmem:[%s278 + $0x78] sm:$0xff] %vm280, %v4559
      %4592 = vst.msk [vmem:[%s278 + $0x80] sm:$0xff] %vm280, %v4560
      %4593 = vst.msk [vmem:[%s278 + $0x88] sm:$0xff] %vm280, %v4561
      %4594 = vst.msk [vmem:[%s278 + $0x90] sm:$0xff] %vm280, %v4562
      %4595 = vst.msk [vmem:[%s278 + $0x98] sm:$0xff] %vm280, %v4563
      %4596 = vst.msk [vmem:[%s278 + $0xa0] sm:$0xff] %vm280, %v4564
      %4597 = vst.msk [vmem:[%s278 + $0xa8] sm:$0xff] %vm280, %v4565
      %4598 = vst.msk [vmem:[%s278 + $0xb0] sm:$0xff] %vm280, %v4566
      %4599 = vst.msk [vmem:[%s278 + $0xb8] sm:$0xff] %vm280, %v4567
      %4600 = vst.msk [vmem:[%s278 + $0xc0] sm:$0xff] %vm280, %v4568
      %4601 = vst.msk [vmem:[%s278 + $0xc8] sm:$0xff] %vm280, %v4569
      %4602 = vst.msk [vmem:[%s278 + $0xd0] sm:$0xff] %vm280, %v4570
      %4603 = vst.msk [vmem:[%s278 + $0xd8] sm:$0xff] %vm280, %v4571
      %4604 = vst.msk [vmem:[%s278 + $0xe0] sm:$0xff] %vm280, %v4572
      %4605 = vst.msk [vmem:[%s278 + $0xe8] sm:$0xff] %vm280, %v4573
      %4606 = vst.msk [vmem:[%s278 + $0xf0] sm:$0xff] %vm280, %v4574
      %4607 = vst.msk [vmem:[%s278 + $0xf8] sm:$0xff] %vm280, %v4575
      %p4608 = scmp.lt.s32.totalorder %s18, 1
      %s4609 = scalar_select %p4608, %s18, 1
      %s4610 = smul.addr %s4609, 32
      %s4611 = smul.addr %s4610, 8
      %s4612 = scalar_lea.vmem %s7, %s4611
      // Predicated region
      $region49: #{tpu_custom_call.1} parent=47 // pred_check
        %p4613 = pneg %p188
      $region50: #{tpu_custom_call.1} parent=47 // pred_check_branch
        %4615 = sbr.rel (%p4613) target = $region52
      $region51: #{tpu_custom_call.1} parent=47 // pred_region
        _
      $region52: #{tpu_custom_call.1} parent=47 // pred_fallthru
        _
    $region48: #{tpu_custom_call.1} parent=5 // pred_fallthru
      _
    %p4616 = scmp.le.s32.totalorder 2, %s13
    // Predicated region
    $region53: #{tpu_custom_call.1} parent=5 // pred_check
      %p4617 = pneg %p4616
    $region54: #{tpu_custom_call.1} parent=5 // pred_check_branch
      %4619 = sbr.rel (%p4617) target = $region56
    $region55: #{tpu_custom_call.1} parent=5 // pred_region
      %s4620 = ssub.s32 %s13, 2
      // Predicated region
      $region57: #{tpu_custom_call.1} parent=55 // pred_check
        %p4621 = pneg %p194
      $region58: #{tpu_custom_call.1} parent=55 // pred_check_branch
        %4623 = sbr.rel (%p4621) target = $region60
      $region59: #{tpu_custom_call.1} parent=55 // pred_region
        %p4624 = scmp.lt.s32.totalorder %s19, 1
        %s4625 = scalar_select %p4624, %s19, 1
        %s4626 = smul.addr %s4625, 32
        %s4627 = smul.addr %s4626, 8
        %s4628 = scalar_lea.vmem %s7, %s4627
      $region60: #{tpu_custom_call.1} parent=55 // pred_fallthru
        _
    $region56: #{tpu_custom_call.1} parent=5 // pred_fallthru
      _
  $region6: #{tpu_custom_call.1} parent=0 // loop_footer
    %s17 = sadd.s32 1, %s13
  $region7: #{tpu_custom_call.1} parent=0 // loop_footer_branch
    %12 = sbr.rel target = $region3
  $region8: #{tpu_custom_call.1} parent=0 // loop_exit
    _

</llo_original>
